<compile_context>
chip_gen: v6e
topology: v6e:2x2x1
jax: 0.10.0
libtpu: 0.0.40
codegen_flags: <defaults>
</compile_context>

<pallas_src>
import functools

import jax
import jax.numpy as jnp
from jax import lax
from jax.experimental import pallas as pl
from jax.experimental.pallas import tpu as pltpu


def _round_up(x, m):
    return (x + m - 1) // m * m


def _fused_face_loc_kernel(x_ref, w1_ref, b1_ref, w2_ref, b2_ref, o_ref,
                           p1_ref, *, cin, ow, npix, b_tile, pref):
    """One grid step = b_tile images.

    x_ref : VMEM (1, B, 25*cin, P)  tap-phase planes; row (th*5+tw)*cin+ci holds
            xpad[ci, 4i+th, 4j+tw] flattened over pixels p = i*ow + j.
    w1_ref: VMEM (cin*9, 8, 1)      conv1 weight columns  [ci*9+kh*3+kw, o, 0]
    b1_ref: VMEM (8, 1)
    w2_ref: VMEM (9, 16, 8)         conv2 per-tap matrices [kh*3+kw, o, c]
    b2_ref: VMEM (16, 1)
    o_ref : VMEM (1, B, 16, P)      lane-dense output block (NCHW after reshape)
    p1_ref: VMEM scratch (32, pref+P): 4 parity planes of ReLU(conv1), each
            starting at lane `pref` (aligned); lanes [0,pref) stay zero and act
            as conv2's zero padding for the shifted taps.
    """
    f32 = jnp.float32

    # Zero only the small constant prefix (conv2 zero-padding region).  The
    # plane interiors are fully rewritten for every image, so nothing else
    # needs clearing.  (Not guarded by program_id==0: scratch is per-core.)
    p1_ref[:, 0:pref] = jnp.zeros((32, pref), f32)

    # Hoisted lane mask: zero where output column j == 0 (left-edge padding of
    # conv2's kw==0 taps).  Computed once per grid step.
    col_idx = lax.broadcasted_iota(jnp.int32, (1, npix), 1)
    m_col = (col_idx % ow != 0).astype(f32)

    def per_image(b, carry):
        # ---------------- conv1 + ReLU : 4 stride-2 parities ----------------
        for rh in range(2):
            for rw in range(2):
                acc1 = jnp.zeros((8, npix), f32)
                for kh in range(3):
                    for kw in range(3):
                        t = (2 * rh + kh) * 5 + (2 * rw + kw)
                        for ci in range(cin):
                            r = t * cin + ci
                            row = x_ref[0, b, r:r + 1, :]          # (1, P)
                            wcol = w1_ref[ci * 9 + kh * 3 + kw]    # (8, 1)
                            acc1 = acc1 + wcol * row               # (8, P) FMA
                y1 = jnp.maximum(acc1 + b1_ref[...], 0.0)
                pidx = rh * 2 + rw
                # Aligned full-width store of the parity plane.
                p1_ref[pidx * 8:(pidx + 1) * 8, pref:pref + npix] = y1

        # ---------------- conv2 + ReLU : 9 taps on the MXU -------------------
        acc2 = jnp.zeros((16, npix), f32)
        for kh2 in range(3):
            for kw2 in range(3):
                rhp = 0 if kh2 == 1 else 1
                dh = 1 if kh2 == 0 else 0
                rwp = 0 if kw2 == 1 else 1
                dw = 1 if kw2 == 0 else 0
                pidx = rhp * 2 + rwp
                off = pref - dh * ow - dw          # shifted slice, prefix = 0s
                blk = p1_ref[pidx * 8:(pidx + 1) * 8, off:off + npix]  # (8, P)
                if dw:
                    blk = blk * m_col              # zero the j==0 column
                acc2 = acc2 + lax.dot_general(
                    w2_ref[kh2 * 3 + kw2], blk,
                    (((1,), (0,)), ((), ())),
                    precision=lax.Precision.HIGHEST,
                    preferred_element_type=f32)
        out2 = jnp.maximum(acc2 + b2_ref[...], 0.0)
        o_ref[0, b] = out2.astype(o_ref.dtype)
        return carry

    lax.fori_loop(0, b_tile, per_image, 0)


def _build_tap_phase_planes(x):
    """(N, cin, H, W) -> (N, 25*cin, oh*ow) stride-4 tap-phase planes (f32)."""
    n, cin, h, w = x.shape
    oh, ow = h // 4, w // 4
    xpad = jnp.pad(x.astype(jnp.float32), ((0, 0), (0, 0), (1, 0), (1, 0)))
    planes = []
    for th in range(5):
        for tw in range(5):
            planes.append(xpad[:, :, th:th + 4 * oh:4, tw:tw + 4 * ow:4])
    xs = jnp.stack(planes, axis=1)                # (n, 25, cin, oh, ow)
    return xs.reshape(n, 25 * cin, oh * ow)


def init_face_loc_encoder_params(key, dim=1):
    """Deterministic synthetic parameters matching the module's __init__ shapes."""
    k1, k2, k3, k4 = jax.random.split(key, 4)
    return {
        "conv1_w": jax.random.normal(k1, (8, dim, 3, 3), jnp.float32) * 0.1,
        "conv1_b": jax.random.normal(k2, (8,), jnp.float32) * 0.1,
        "conv2_w": jax.random.normal(k3, (16, 8, 3, 3), jnp.float32) * 0.1,
        "conv2_b": jax.random.normal(k4, (16,), jnp.float32) * 0.1,
    }


@functools.partial(jax.jit, static_argnames=("batch_tile",))
def face_loc_encoder_forward(params, x_nchw, batch_tile=8):
    """Forward pass matching Face_loc_Encoder.forward (NCHW in, NCHW out)."""
    n, cin, h, w = x_nchw.shape
    assert h % 4 == 0 and w % 4 == 0, "H and W must be multiples of 4"
    oh, ow = h // 4, w // 4
    npix = oh * ow

    xs = _build_tap_phase_planes(x_nchw)          # (n, 25*cin, P)

    # Batch tiling: several images per grid step (opt 1).
    b_tile = max(1, min(batch_tile, n))
    n_tiles = -(-n // b_tile)
    n_pad = n_tiles * b_tile
    if n_pad != n:
        xs = jnp.pad(xs, ((0, n_pad - n), (0, 0), (0, 0)))
    xs = xs.reshape(n_tiles, b_tile, 25 * cin, npix)

    # Weights pre-laid-out for the kernel (VMEM, no scalar SMEM loads).
    w1_cols = jnp.transpose(params["conv1_w"].astype(jnp.float32),
                            (1, 2, 3, 0)).reshape(cin * 9, 8, 1)
    b1_col = params["conv1_b"].astype(jnp.float32).reshape(8, 1)
    w2_taps = jnp.transpose(params["conv2_w"].astype(jnp.float32),
                            (2, 3, 0, 1)).reshape(9, 16, 8)
    b2_col = params["conv2_b"].astype(jnp.float32).reshape(16, 1)

    pref = _round_up(ow + 1, 128)                 # aligned zero prefix width

    kernel = functools.partial(_fused_face_loc_kernel, cin=cin, ow=ow,
                               npix=npix, b_tile=b_tile, pref=pref)

    out = pl.pallas_call(
        kernel,
        out_shape=jax.ShapeDtypeStruct((n_tiles, b_tile, 16, npix), jnp.float32),
        grid=(n_tiles,),
        in_specs=[
            pl.BlockSpec((1, b_tile, 25 * cin, npix), lambda t: (t, 0, 0, 0)),
            pl.BlockSpec((cin * 9, 8, 1), lambda t: (0, 0, 0)),
            pl.BlockSpec((8, 1), lambda t: (0, 0)),
            pl.BlockSpec((9, 16, 8), lambda t: (0, 0, 0)),
            pl.BlockSpec((16, 1), lambda t: (0, 0)),
        ],
        out_specs=pl.BlockSpec((1, b_tile, 16, npix), lambda t: (t, 0, 0, 0)),
        scratch_shapes=[pltpu.VMEM((32, pref + npix), jnp.float32)],
        compiler_params=pltpu.CompilerParams(
            dimension_semantics=("parallel",)),
    )(xs, w1_cols, b1_col, w2_taps, b2_col)

    out = out.reshape(n_pad, 16, oh, ow)          # free reshape back to NCHW
    return out[:n] if n_pad != n else out


def _reference_forward(params, x):
    dn = ("NCHW", "OIHW", "NCHW")
    y = lax.conv_general_dilated(x, params["conv1_w"], (2, 2), ((1, 1), (1, 1)),
                                 dimension_numbers=dn,
                                 precision=lax.Precision.HIGHEST)
    y = jnp.maximum(y + params["conv1_b"][None, :, None, None], 0.0)
    y = lax.conv_general_dilated(y, params["conv2_w"], (2, 2), ((1, 1), (1, 1)),
                                 dimension_numbers=dn,
                                 precision=lax.Precision.HIGHEST)
    y = jnp.maximum(y + params["conv2_b"][None, :, None, None], 0.0)
    return y


if __name__ == "__main__":
    key = jax.random.PRNGKey(0)
    kx, kp = jax.random.split(key)

    # small deterministic input consistent with the module (dim=1 default)
    batch, dim, h, w = 2, 1, 16, 16
    x = jax.random.normal(kx, (batch, dim, h, w), jnp.float32)
    params = init_face_loc_encoder_params(kp, dim=dim)

    y = face_loc_encoder_forward(params, x)
    y = jax.block_until_ready(y)

    assert y.shape == (batch, 16, h // 4, w // 4), y.shape
    assert bool(jnp.all(y >= 0.0))                      # ReLU output
    y_ref = _reference_forward(params, x)
    err = float(jnp.max(jnp.abs(y - y_ref)))
    assert bool(jnp.allclose(y, y_ref, atol=1e-4, rtol=1e-4)), err
    print("KERNEL_OK")
</pallas_src>

<mosaic_0001>
module attributes {stable_mosaic.version = 11 : i64} {
  func.func @_fused_face_loc_kernel(%arg0: i32, %arg1: memref<1x2x25x16xf32, #tpu.memory_space<vmem>>, %arg2: memref<9x8x1xf32, #tpu.memory_space<vmem>>, %arg3: memref<8x1xf32, #tpu.memory_space<vmem>>, %arg4: memref<9x16x8xf32, #tpu.memory_space<vmem>>, %arg5: memref<16x1xf32, #tpu.memory_space<vmem>>, %arg6: memref<1x2x16x16xf32, #tpu.memory_space<vmem>>, %arg7: memref<32x144xf32, #tpu.memory_space<vmem>>) attributes {dimension_semantics = [#tpu.dimension_semantics<parallel>], iteration_bounds = array<i64: 1>, scalar_prefetch = 0 : i64, scratch_operands = 1 : i64, tpu.core_type = #tpu.core_type<tc>, window_params = [{transform_indices = @transform_0, window_bounds = array<i64: 1, 2, 25, 16>}, {pipeline_mode = #tpu.pipeline_mode<synchronous>, transform_indices = @transform_1, window_bounds = array<i64: 9, 8, 1>}, {pipeline_mode = #tpu.pipeline_mode<synchronous>, transform_indices = @transform_2, window_bounds = array<i64: 8, 1>}, {pipeline_mode = #tpu.pipeline_mode<synchronous>, transform_indices = @transform_3, window_bounds = array<i64: 9, 16, 8>}, {pipeline_mode = #tpu.pipeline_mode<synchronous>, transform_indices = @transform_4, window_bounds = array<i64: 16, 1>}, {transform_indices = @transform_5, window_bounds = array<i64: 1, 2, 16, 16>}]} {
    %cst = arith.constant 0.000000e+00 : f32
    %0 = vector.broadcast %cst : f32 to vector<32x128xf32>
    %c0 = arith.constant 0 : index
    %c0_0 = arith.constant 0 : index
    %1 = vector.load %arg7[%c0, %c0_0] : memref<32x144xf32, #tpu.memory_space<vmem>>, vector<32x128xf32>
    tpu.vector_store %arg7[%c0, %c0_0], %0 {strides = array<i32>} : memref<32x144xf32, #tpu.memory_space<vmem>>, vector<32x128xf32>,
    %2 = tpu.iota {dimensions = array<i32: 1>} : vector<1x16xi32>
    %c4_i32 = arith.constant 4 : i32
    %c0_i32 = arith.constant 0 : i32
    %3 = arith.cmpi eq, %c4_i32, %c0_i32 : i32
    %c1_i32 = arith.constant 1 : i32
    %4 = arith.select %3, %c1_i32, %c4_i32 : i32
    %5 = vector.broadcast %4 : i32 to vector<1x16xi32>
    %6 = arith.remsi %2, %5 : vector<1x16xi32>
    %c0_i32_1 = arith.constant 0 : i32
    %7 = vector.broadcast %c0_i32_1 : i32 to vector<1x16xi32>
    %8 = arith.cmpi ne, %6, %7 : vector<1x16xi32>
    %c0_i32_2 = arith.constant 0 : i32
    %9 = vector.broadcast %c0_i32_2 : i32 to vector<1x16xi32>
    %10 = arith.cmpi slt, %6, %9 : vector<1x16xi32>
    %c0_i32_3 = arith.constant 0 : i32
    %11 = arith.cmpi slt, %4, %c0_i32_3 : i32
    %12 = vector.broadcast %11 : i1 to vector<1x16xi1>
    %13 = vector.broadcast %12 : vector<1x16xi1> to vector<1x16xi1>
    %14 = arith.xori %10, %13 : vector<1x16xi1>
    %15 = arith.andi %14, %8 : vector<1x16xi1>
    %16 = vector.broadcast %4 : i32 to vector<1x16xi32>
    %17 = arith.addi %6, %16 : vector<1x16xi32>
    %18 = arith.select %15, %17, %6 : vector<1x16xi1>, vector<1x16xi32>
    %c0_i32_4 = arith.constant 0 : i32
    %19 = vector.broadcast %c0_i32_4 : i32 to vector<1x16xi32>
    %20 = arith.cmpi ne, %18, %19 : vector<1x16xi32>
    %21 = arith.extui %20 : vector<1x16xi1> to vector<1x16xi32>
    %22 = arith.sitofp %21 : vector<1x16xi32> to vector<1x16xf32>
    %c0_i32_5 = arith.constant 0 : i32
    %c2_i32 = arith.constant 2 : i32
    %23 = arith.addi %c0_i32_5, %c2_i32 : i32
    %c1_i32_6 = arith.constant 1 : i32
    scf.for %arg8 = %c0_i32_5 to %23 step %c1_i32_6  : i32 {
      %cst_8 = arith.constant 0.000000e+00 : f32
      %24 = vector.broadcast %cst_8 : f32 to vector<8x16xf32>
      %c0_9 = arith.constant 0 : index
      %25 = arith.index_cast %arg8 : i32 to index
      %c0_10 = arith.constant 0 : index
      %c0_11 = arith.constant 0 : index
      %26 = vector.load %arg1[%c0_9, %25, %c0_10, %c0_11] : memref<1x2x25x16xf32, #tpu.memory_space<vmem>>, vector<1x1x1x16xf32>
      %27 = vector.shape_cast %26 : vector<1x1x1x16xf32> to vector<1x16xf32>
      %c0_12 = arith.constant 0 : index
      %c0_13 = arith.constant 0 : index
      %c0_14 = arith.constant 0 : index
      %28 = vector.load %arg2[%c0_12, %c0_13, %c0_14] : memref<9x8x1xf32, #tpu.memory_space<vmem>>, vector<1x8x1xf32>
      %29 = vector.shape_cast %28 : vector<1x8x1xf32> to vector<8x1xf32>
      %30 = vector.broadcast %29 : vector<8x1xf32> to vector<8x16xf32>
      %31 = vector.broadcast %27 : vector<1x16xf32> to vector<8x16xf32>
      %32 = arith.mulf %30, %31 : vector<8x16xf32>
      %33 = arith.addf %24, %32 : vector<8x16xf32>
      %c0_15 = arith.constant 0 : index
      %34 = arith.index_cast %arg8 : i32 to index
      %c1 = arith.constant 1 : index
      %c0_16 = arith.constant 0 : index
      %35 = vector.load %arg1[%c0_15, %34, %c1, %c0_16] : memref<1x2x25x16xf32, #tpu.memory_space<vmem>>, vector<1x1x1x16xf32>
      %36 = vector.shape_cast %35 : vector<1x1x1x16xf32> to vector<1x16xf32>
      %c1_17 = arith.constant 1 : index
      %c0_18 = arith.constant 0 : index
      %c0_19 = arith.constant 0 : index
      %37 = vector.load %arg2[%c1_17, %c0_18, %c0_19] : memref<9x8x1xf32, #tpu.memory_space<vmem>>, vector<1x8x1xf32>
      %38 = vector.shape_cast %37 : vector<1x8x1xf32> to vector<8x1xf32>
      %39 = vector.broadcast %38 : vector<8x1xf32> to vector<8x16xf32>
      %40 = vector.broadcast %36 : vector<1x16xf32> to vector<8x16xf32>
      %41 = arith.mulf %39, %40 : vector<8x16xf32>
      %42 = arith.addf %33, %41 : vector<8x16xf32>
      %c0_20 = arith.constant 0 : index
      %43 = arith.index_cast %arg8 : i32 to index
      %c2 = arith.constant 2 : index
      %c0_21 = arith.constant 0 : index
      %44 = vector.load %arg1[%c0_20, %43, %c2, %c0_21] : memref<1x2x25x16xf32, #tpu.memory_space<vmem>>, vector<1x1x1x16xf32>
      %45 = vector.shape_cast %44 : vector<1x1x1x16xf32> to vector<1x16xf32>
      %c2_22 = arith.constant 2 : index
      %c0_23 = arith.constant 0 : index
      %c0_24 = arith.constant 0 : index
      %46 = vector.load %arg2[%c2_22, %c0_23, %c0_24] : memref<9x8x1xf32, #tpu.memory_space<vmem>>, vector<1x8x1xf32>
      %47 = vector.shape_cast %46 : vector<1x8x1xf32> to vector<8x1xf32>
      %48 = vector.broadcast %47 : vector<8x1xf32> to vector<8x16xf32>
      %49 = vector.broadcast %45 : vector<1x16xf32> to vector<8x16xf32>
      %50 = arith.mulf %48, %49 : vector<8x16xf32>
      %51 = arith.addf %42, %50 : vector<8x16xf32>
      %c0_25 = arith.constant 0 : index
      %52 = arith.index_cast %arg8 : i32 to index
      %c5 = arith.constant 5 : index
      %c0_26 = arith.constant 0 : index
      %53 = vector.load %arg1[%c0_25, %52, %c5, %c0_26] : memref<1x2x25x16xf32, #tpu.memory_space<vmem>>, vector<1x1x1x16xf32>
      %54 = vector.shape_cast %53 : vector<1x1x1x16xf32> to vector<1x16xf32>
      %c3 = arith.constant 3 : index
      %c0_27 = arith.constant 0 : index
      %c0_28 = arith.constant 0 : index
      %55 = vector.load %arg2[%c3, %c0_27, %c0_28] : memref<9x8x1xf32, #tpu.memory_space<vmem>>, vector<1x8x1xf32>
      %56 = vector.shape_cast %55 : vector<1x8x1xf32> to vector<8x1xf32>
      %57 = vector.broadcast %56 : vector<8x1xf32> to vector<8x16xf32>
      %58 = vector.broadcast %54 : vector<1x16xf32> to vector<8x16xf32>
      %59 = arith.mulf %57, %58 : vector<8x16xf32>
      %60 = arith.addf %51, %59 : vector<8x16xf32>
      %c0_29 = arith.constant 0 : index
      %61 = arith.index_cast %arg8 : i32 to index
      %c6 = arith.constant 6 : index
      %c0_30 = arith.constant 0 : index
      %62 = vector.load %arg1[%c0_29, %61, %c6, %c0_30] : memref<1x2x25x16xf32, #tpu.memory_space<vmem>>, vector<1x1x1x16xf32>
      %63 = vector.shape_cast %62 : vector<1x1x1x16xf32> to vector<1x16xf32>
      %c4 = arith.constant 4 : index
      %c0_31 = arith.constant 0 : index
      %c0_32 = arith.constant 0 : index
      %64 = vector.load %arg2[%c4, %c0_31, %c0_32] : memref<9x8x1xf32, #tpu.memory_space<vmem>>, vector<1x8x1xf32>
      %65 = vector.shape_cast %64 : vector<1x8x1xf32> to vector<8x1xf32>
      %66 = vector.broadcast %65 : vector<8x1xf32> to vector<8x16xf32>
      %67 = vector.broadcast %63 : vector<1x16xf32> to vector<8x16xf32>
      %68 = arith.mulf %66, %67 : vector<8x16xf32>
      %69 = arith.addf %60, %68 : vector<8x16xf32>
      %c0_33 = arith.constant 0 : index
      %70 = arith.index_cast %arg8 : i32 to index
      %c7 = arith.constant 7 : index
      %c0_34 = arith.constant 0 : index
      %71 = vector.load %arg1[%c0_33, %70, %c7, %c0_34] : memref<1x2x25x16xf32, #tpu.memory_space<vmem>>, vector<1x1x1x16xf32>
      %72 = vector.shape_cast %71 : vector<1x1x1x16xf32> to vector<1x16xf32>
      %c5_35 = arith.constant 5 : index
      %c0_36 = arith.constant 0 : index
      %c0_37 = arith.constant 0 : index
      %73 = vector.load %arg2[%c5_35, %c0_36, %c0_37] : memref<9x8x1xf32, #tpu.memory_space<vmem>>, vector<1x8x1xf32>
      %74 = vector.shape_cast %73 : vector<1x8x1xf32> to vector<8x1xf32>
      %75 = vector.broadcast %74 : vector<8x1xf32> to vector<8x16xf32>
      %76 = vector.broadcast %72 : vector<1x16xf32> to vector<8x16xf32>
      %77 = arith.mulf %75, %76 : vector<8x16xf32>
      %78 = arith.addf %69, %77 : vector<8x16xf32>
      %c0_38 = arith.constant 0 : index
      %79 = arith.index_cast %arg8 : i32 to index
      %c10 = arith.constant 10 : index
      %c0_39 = arith.constant 0 : index
      %80 = vector.load %arg1[%c0_38, %79, %c10, %c0_39] : memref<1x2x25x16xf32, #tpu.memory_space<vmem>>, vector<1x1x1x16xf32>
      %81 = vector.shape_cast %80 : vector<1x1x1x16xf32> to vector<1x16xf32>
      %c6_40 = arith.constant 6 : index
      %c0_41 = arith.constant 0 : index
      %c0_42 = arith.constant 0 : index
      %82 = vector.load %arg2[%c6_40, %c0_41, %c0_42] : memref<9x8x1xf32, #tpu.memory_space<vmem>>, vector<1x8x1xf32>
      %83 = vector.shape_cast %82 : vector<1x8x1xf32> to vector<8x1xf32>
      %84 = vector.broadcast %83 : vector<8x1xf32> to vector<8x16xf32>
      %85 = vector.broadcast %81 : vector<1x16xf32> to vector<8x16xf32>
      %86 = arith.mulf %84, %85 : vector<8x16xf32>
      %87 = arith.addf %78, %86 : vector<8x16xf32>
      %c0_43 = arith.constant 0 : index
      %88 = arith.index_cast %arg8 : i32 to index
      %c11 = arith.constant 11 : index
      %c0_44 = arith.constant 0 : index
      %89 = vector.load %arg1[%c0_43, %88, %c11, %c0_44] : memref<1x2x25x16xf32, #tpu.memory_space<vmem>>, vector<1x1x1x16xf32>
      %90 = vector.shape_cast %89 : vector<1x1x1x16xf32> to vector<1x16xf32>
      %c7_45 = arith.constant 7 : index
      %c0_46 = arith.constant 0 : index
      %c0_47 = arith.constant 0 : index
      %91 = vector.load %arg2[%c7_45, %c0_46, %c0_47] : memref<9x8x1xf32, #tpu.memory_space<vmem>>, vector<1x8x1xf32>
      %92 = vector.shape_cast %91 : vector<1x8x1xf32> to vector<8x1xf32>
      %93 = vector.broadcast %92 : vector<8x1xf32> to vector<8x16xf32>
      %94 = vector.broadcast %90 : vector<1x16xf32> to vector<8x16xf32>
      %95 = arith.mulf %93, %94 : vector<8x16xf32>
      %96 = arith.addf %87, %95 : vector<8x16xf32>
      %c0_48 = arith.constant 0 : index
      %97 = arith.index_cast %arg8 : i32 to index
      %c12 = arith.constant 12 : index
      %c0_49 = arith.constant 0 : index
      %98 = vector.load %arg1[%c0_48, %97, %c12, %c0_49] : memref<1x2x25x16xf32, #tpu.memory_space<vmem>>, vector<1x1x1x16xf32>
      %99 = vector.shape_cast %98 : vector<1x1x1x16xf32> to vector<1x16xf32>
      %c8 = arith.constant 8 : index
      %c0_50 = arith.constant 0 : index
      %c0_51 = arith.constant 0 : index
      %100 = vector.load %arg2[%c8, %c0_50, %c0_51] : memref<9x8x1xf32, #tpu.memory_space<vmem>>, vector<1x8x1xf32>
      %101 = vector.shape_cast %100 : vector<1x8x1xf32> to vector<8x1xf32>
      %102 = vector.broadcast %101 : vector<8x1xf32> to vector<8x16xf32>
      %103 = vector.broadcast %99 : vector<1x16xf32> to vector<8x16xf32>
      %104 = arith.mulf %102, %103 : vector<8x16xf32>
      %105 = arith.addf %96, %104 : vector<8x16xf32>
      %c0_52 = arith.constant 0 : index
      %c0_53 = arith.constant 0 : index
      %106 = vector.load %arg3[%c0_52, %c0_53] : memref<8x1xf32, #tpu.memory_space<vmem>>, vector<8x1xf32>
      %107 = vector.broadcast %106 : vector<8x1xf32> to vector<8x16xf32>
      %108 = arith.addf %105, %107 : vector<8x16xf32>
      %cst_54 = arith.constant 0.000000e+00 : f32
      %109 = vector.broadcast %cst_54 : f32 to vector<8x16xf32>
      %110 = arith.maximumf %108, %109 : vector<8x16xf32>
      %c0_55 = arith.constant 0 : index
      %c128 = arith.constant 128 : index
      %111 = vector.load %arg7[%c0_55, %c128] : memref<32x144xf32, #tpu.memory_space<vmem>>, vector<8x16xf32>
      tpu.vector_store %arg7[%c0_55, %c128], %110 {strides = array<i32>} : memref<32x144xf32, #tpu.memory_space<vmem>>, vector<8x16xf32>,
      %cst_56 = arith.constant 0.000000e+00 : f32
      %112 = vector.broadcast %cst_56 : f32 to vector<8x16xf32>
      %c0_57 = arith.constant 0 : index
      %113 = arith.index_cast %arg8 : i32 to index
      %c2_58 = arith.constant 2 : index
      %c0_59 = arith.constant 0 : index
      %114 = vector.load %arg1[%c0_57, %113, %c2_58, %c0_59] : memref<1x2x25x16xf32, #tpu.memory_space<vmem>>, vector<1x1x1x16xf32>
      %115 = vector.shape_cast %114 : vector<1x1x1x16xf32> to vector<1x16xf32>
      %c0_60 = arith.constant 0 : index
      %c0_61 = arith.constant 0 : index
      %c0_62 = arith.constant 0 : index
      %116 = vector.load %arg2[%c0_60, %c0_61, %c0_62] : memref<9x8x1xf32, #tpu.memory_space<vmem>>, vector<1x8x1xf32>
      %117 = vector.shape_cast %116 : vector<1x8x1xf32> to vector<8x1xf32>
      %118 = vector.broadcast %117 : vector<8x1xf32> to vector<8x16xf32>
      %119 = vector.broadcast %115 : vector<1x16xf32> to vector<8x16xf32>
      %120 = arith.mulf %118, %119 : vector<8x16xf32>
      %121 = arith.addf %112, %120 : vector<8x16xf32>
      %c0_63 = arith.constant 0 : index
      %122 = arith.index_cast %arg8 : i32 to index
      %c3_64 = arith.constant 3 : index
      %c0_65 = arith.constant 0 : index
      %123 = vector.load %arg1[%c0_63, %122, %c3_64, %c0_65] : memref<1x2x25x16xf32, #tpu.memory_space<vmem>>, vector<1x1x1x16xf32>
      %124 = vector.shape_cast %123 : vector<1x1x1x16xf32> to vector<1x16xf32>
      %c1_66 = arith.constant 1 : index
      %c0_67 = arith.constant 0 : index
      %c0_68 = arith.constant 0 : index
      %125 = vector.load %arg2[%c1_66, %c0_67, %c0_68] : memref<9x8x1xf32, #tpu.memory_space<vmem>>, vector<1x8x1xf32>
      %126 = vector.shape_cast %125 : vector<1x8x1xf32> to vector<8x1xf32>
      %127 = vector.broadcast %126 : vector<8x1xf32> to vector<8x16xf32>
      %128 = vector.broadcast %124 : vector<1x16xf32> to vector<8x16xf32>
      %129 = arith.mulf %127, %128 : vector<8x16xf32>
      %130 = arith.addf %121, %129 : vector<8x16xf32>
      %c0_69 = arith.constant 0 : index
      %131 = arith.index_cast %arg8 : i32 to index
      %c4_70 = arith.constant 4 : index
      %c0_71 = arith.constant 0 : index
      %132 = vector.load %arg1[%c0_69, %131, %c4_70, %c0_71] : memref<1x2x25x16xf32, #tpu.memory_space<vmem>>, vector<1x1x1x16xf32>
      %133 = vector.shape_cast %132 : vector<1x1x1x16xf32> to vector<1x16xf32>
      %c2_72 = arith.constant 2 : index
      %c0_73 = arith.constant 0 : index
      %c0_74 = arith.constant 0 : index
      %134 = vector.load %arg2[%c2_72, %c0_73, %c0_74] : memref<9x8x1xf32, #tpu.memory_space<vmem>>, vector<1x8x1xf32>
      %135 = vector.shape_cast %134 : vector<1x8x1xf32> to vector<8x1xf32>
      %136 = vector.broadcast %135 : vector<8x1xf32> to vector<8x16xf32>
      %137 = vector.broadcast %133 : vector<1x16xf32> to vector<8x16xf32>
      %138 = arith.mulf %136, %137 : vector<8x16xf32>
      %139 = arith.addf %130, %138 : vector<8x16xf32>
      %c0_75 = arith.constant 0 : index
      %140 = arith.index_cast %arg8 : i32 to index
      %c7_76 = arith.constant 7 : index
      %c0_77 = arith.constant 0 : index
      %141 = vector.load %arg1[%c0_75, %140, %c7_76, %c0_77] : memref<1x2x25x16xf32, #tpu.memory_space<vmem>>, vector<1x1x1x16xf32>
      %142 = vector.shape_cast %141 : vector<1x1x1x16xf32> to vector<1x16xf32>
      %c3_78 = arith.constant 3 : index
      %c0_79 = arith.constant 0 : index
      %c0_80 = arith.constant 0 : index
      %143 = vector.load %arg2[%c3_78, %c0_79, %c0_80] : memref<9x8x1xf32, #tpu.memory_space<vmem>>, vector<1x8x1xf32>
      %144 = vector.shape_cast %143 : vector<1x8x1xf32> to vector<8x1xf32>
      %145 = vector.broadcast %144 : vector<8x1xf32> to vector<8x16xf32>
      %146 = vector.broadcast %142 : vector<1x16xf32> to vector<8x16xf32>
      %147 = arith.mulf %145, %146 : vector<8x16xf32>
      %148 = arith.addf %139, %147 : vector<8x16xf32>
      %c0_81 = arith.constant 0 : index
      %149 = arith.index_cast %arg8 : i32 to index
      %c8_82 = arith.constant 8 : index
      %c0_83 = arith.constant 0 : index
      %150 = vector.load %arg1[%c0_81, %149, %c8_82, %c0_83] : memref<1x2x25x16xf32, #tpu.memory_space<vmem>>, vector<1x1x1x16xf32>
      %151 = vector.shape_cast %150 : vector<1x1x1x16xf32> to vector<1x16xf32>
      %c4_84 = arith.constant 4 : index
      %c0_85 = arith.constant 0 : index
      %c0_86 = arith.constant 0 : index
      %152 = vector.load %arg2[%c4_84, %c0_85, %c0_86] : memref<9x8x1xf32, #tpu.memory_space<vmem>>, vector<1x8x1xf32>
      %153 = vector.shape_cast %152 : vector<1x8x1xf32> to vector<8x1xf32>
      %154 = vector.broadcast %153 : vector<8x1xf32> to vector<8x16xf32>
      %155 = vector.broadcast %151 : vector<1x16xf32> to vector<8x16xf32>
      %156 = arith.mulf %154, %155 : vector<8x16xf32>
      %157 = arith.addf %148, %156 : vector<8x16xf32>
      %c0_87 = arith.constant 0 : index
      %158 = arith.index_cast %arg8 : i32 to index
      %c9 = arith.constant 9 : index
      %c0_88 = arith.constant 0 : index
      %159 = vector.load %arg1[%c0_87, %158, %c9, %c0_88] : memref<1x2x25x16xf32, #tpu.memory_space<vmem>>, vector<1x1x1x16xf32>
      %160 = vector.shape_cast %159 : vector<1x1x1x16xf32> to vector<1x16xf32>
      %c5_89 = arith.constant 5 : index
      %c0_90 = arith.constant 0 : index
      %c0_91 = arith.constant 0 : index
      %161 = vector.load %arg2[%c5_89, %c0_90, %c0_91] : memref<9x8x1xf32, #tpu.memory_space<vmem>>, vector<1x8x1xf32>
      %162 = vector.shape_cast %161 : vector<1x8x1xf32> to vector<8x1xf32>
      %163 = vector.broadcast %162 : vector<8x1xf32> to vector<8x16xf32>
      %164 = vector.broadcast %160 : vector<1x16xf32> to vector<8x16xf32>
      %165 = arith.mulf %163, %164 : vector<8x16xf32>
      %166 = arith.addf %157, %165 : vector<8x16xf32>
      %c0_92 = arith.constant 0 : index
      %167 = arith.index_cast %arg8 : i32 to index
      %c12_93 = arith.constant 12 : index
      %c0_94 = arith.constant 0 : index
      %168 = vector.load %arg1[%c0_92, %167, %c12_93, %c0_94] : memref<1x2x25x16xf32, #tpu.memory_space<vmem>>, vector<1x1x1x16xf32>
      %169 = vector.shape_cast %168 : vector<1x1x1x16xf32> to vector<1x16xf32>
      %c6_95 = arith.constant 6 : index
      %c0_96 = arith.constant 0 : index
      %c0_97 = arith.constant 0 : index
      %170 = vector.load %arg2[%c6_95, %c0_96, %c0_97] : memref<9x8x1xf32, #tpu.memory_space<vmem>>, vector<1x8x1xf32>
      %171 = vector.shape_cast %170 : vector<1x8x1xf32> to vector<8x1xf32>
      %172 = vector.broadcast %171 : vector<8x1xf32> to vector<8x16xf32>
      %173 = vector.broadcast %169 : vector<1x16xf32> to vector<8x16xf32>
      %174 = arith.mulf %172, %173 : vector<8x16xf32>
      %175 = arith.addf %166, %174 : vector<8x16xf32>
      %c0_98 = arith.constant 0 : index
      %176 = arith.index_cast %arg8 : i32 to index
      %c13 = arith.constant 13 : index
      %c0_99 = arith.constant 0 : index
      %177 = vector.load %arg1[%c0_98, %176, %c13, %c0_99] : memref<1x2x25x16xf32, #tpu.memory_space<vmem>>, vector<1x1x1x16xf32>
      %178 = vector.shape_cast %177 : vector<1x1x1x16xf32> to vector<1x16xf32>
      %c7_100 = arith.constant 7 : index
      %c0_101 = arith.constant 0 : index
      %c0_102 = arith.constant 0 : index
      %179 = vector.load %arg2[%c7_100, %c0_101, %c0_102] : memref<9x8x1xf32, #tpu.memory_space<vmem>>, vector<1x8x1xf32>
      %180 = vector.shape_cast %179 : vector<1x8x1xf32> to vector<8x1xf32>
      %181 = vector.broadcast %180 : vector<8x1xf32> to vector<8x16xf32>
      %182 = vector.broadcast %178 : vector<1x16xf32> to vector<8x16xf32>
      %183 = arith.mulf %181, %182 : vector<8x16xf32>
      %184 = arith.addf %175, %183 : vector<8x16xf32>
      %c0_103 = arith.constant 0 : index
      %185 = arith.index_cast %arg8 : i32 to index
      %c14 = arith.constant 14 : index
      %c0_104 = arith.constant 0 : index
      %186 = vector.load %arg1[%c0_103, %185, %c14, %c0_104] : memref<1x2x25x16xf32, #tpu.memory_space<vmem>>, vector<1x1x1x16xf32>
      %187 = vector.shape_cast %186 : vector<1x1x1x16xf32> to vector<1x16xf32>
      %c8_105 = arith.constant 8 : index
      %c0_106 = arith.constant 0 : index
      %c0_107 = arith.constant 0 : index
      %188 = vector.load %arg2[%c8_105, %c0_106, %c0_107] : memref<9x8x1xf32, #tpu.memory_space<vmem>>, vector<1x8x1xf32>
      %189 = vector.shape_cast %188 : vector<1x8x1xf32> to vector<8x1xf32>
      %190 = vector.broadcast %189 : vector<8x1xf32> to vector<8x16xf32>
      %191 = vector.broadcast %187 : vector<1x16xf32> to vector<8x16xf32>
      %192 = arith.mulf %190, %191 : vector<8x16xf32>
      %193 = arith.addf %184, %192 : vector<8x16xf32>
      %c0_108 = arith.constant 0 : index
      %c0_109 = arith.constant 0 : index
      %194 = vector.load %arg3[%c0_108, %c0_109] : memref<8x1xf32, #tpu.memory_space<vmem>>, vector<8x1xf32>
      %195 = vector.broadcast %194 : vector<8x1xf32> to vector<8x16xf32>
      %196 = arith.addf %193, %195 : vector<8x16xf32>
      %cst_110 = arith.constant 0.000000e+00 : f32
      %197 = vector.broadcast %cst_110 : f32 to vector<8x16xf32>
      %198 = arith.maximumf %196, %197 : vector<8x16xf32>
      %c8_111 = arith.constant 8 : index
      %c128_112 = arith.constant 128 : index
      %199 = vector.load %arg7[%c8_111, %c128_112] : memref<32x144xf32, #tpu.memory_space<vmem>>, vector<8x16xf32>
      tpu.vector_store %arg7[%c8_111, %c128_112], %198 {strides = array<i32>} : memref<32x144xf32, #tpu.memory_space<vmem>>, vector<8x16xf32>,
      %cst_113 = arith.constant 0.000000e+00 : f32
      %200 = vector.broadcast %cst_113 : f32 to vector<8x16xf32>
      %c0_114 = arith.constant 0 : index
      %201 = arith.index_cast %arg8 : i32 to index
      %c10_115 = arith.constant 10 : index
      %c0_116 = arith.constant 0 : index
      %202 = vector.load %arg1[%c0_114, %201, %c10_115, %c0_116] : memref<1x2x25x16xf32, #tpu.memory_space<vmem>>, vector<1x1x1x16xf32>
      %203 = vector.shape_cast %202 : vector<1x1x1x16xf32> to vector<1x16xf32>
      %c0_117 = arith.constant 0 : index
      %c0_118 = arith.constant 0 : index
      %c0_119 = arith.constant 0 : index
      %204 = vector.load %arg2[%c0_117, %c0_118, %c0_119] : memref<9x8x1xf32, #tpu.memory_space<vmem>>, vector<1x8x1xf32>
      %205 = vector.shape_cast %204 : vector<1x8x1xf32> to vector<8x1xf32>
      %206 = vector.broadcast %205 : vector<8x1xf32> to vector<8x16xf32>
      %207 = vector.broadcast %203 : vector<1x16xf32> to vector<8x16xf32>
      %208 = arith.mulf %206, %207 : vector<8x16xf32>
      %209 = arith.addf %200, %208 : vector<8x16xf32>
      %c0_120 = arith.constant 0 : index
      %210 = arith.index_cast %arg8 : i32 to index
      %c11_121 = arith.constant 11 : index
      %c0_122 = arith.constant 0 : index
      %211 = vector.load %arg1[%c0_120, %210, %c11_121, %c0_122] : memref<1x2x25x16xf32, #tpu.memory_space<vmem>>, vector<1x1x1x16xf32>
      %212 = vector.shape_cast %211 : vector<1x1x1x16xf32> to vector<1x16xf32>
      %c1_123 = arith.constant 1 : index
      %c0_124 = arith.constant 0 : index
      %c0_125 = arith.constant 0 : index
      %213 = vector.load %arg2[%c1_123, %c0_124, %c0_125] : memref<9x8x1xf32, #tpu.memory_space<vmem>>, vector<1x8x1xf32>
      %214 = vector.shape_cast %213 : vector<1x8x1xf32> to vector<8x1xf32>
      %215 = vector.broadcast %214 : vector<8x1xf32> to vector<8x16xf32>
      %216 = vector.broadcast %212 : vector<1x16xf32> to vector<8x16xf32>
      %217 = arith.mulf %215, %216 : vector<8x16xf32>
      %218 = arith.addf %209, %217 : vector<8x16xf32>
      %c0_126 = arith.constant 0 : index
      %219 = arith.index_cast %arg8 : i32 to index
      %c12_127 = arith.constant 12 : index
      %c0_128 = arith.constant 0 : index
      %220 = vector.load %arg1[%c0_126, %219, %c12_127, %c0_128] : memref<1x2x25x16xf32, #tpu.memory_space<vmem>>, vector<1x1x1x16xf32>
      %221 = vector.shape_cast %220 : vector<1x1x1x16xf32> to vector<1x16xf32>
      %c2_129 = arith.constant 2 : index
      %c0_130 = arith.constant 0 : index
      %c0_131 = arith.constant 0 : index
      %222 = vector.load %arg2[%c2_129, %c0_130, %c0_131] : memref<9x8x1xf32, #tpu.memory_space<vmem>>, vector<1x8x1xf32>
      %223 = vector.shape_cast %222 : vector<1x8x1xf32> to vector<8x1xf32>
      %224 = vector.broadcast %223 : vector<8x1xf32> to vector<8x16xf32>
      %225 = vector.broadcast %221 : vector<1x16xf32> to vector<8x16xf32>
      %226 = arith.mulf %224, %225 : vector<8x16xf32>
      %227 = arith.addf %218, %226 : vector<8x16xf32>
      %c0_132 = arith.constant 0 : index
      %228 = arith.index_cast %arg8 : i32 to index
      %c15 = arith.constant 15 : index
      %c0_133 = arith.constant 0 : index
      %229 = vector.load %arg1[%c0_132, %228, %c15, %c0_133] : memref<1x2x25x16xf32, #tpu.memory_space<vmem>>, vector<1x1x1x16xf32>
      %230 = vector.shape_cast %229 : vector<1x1x1x16xf32> to vector<1x16xf32>
      %c3_134 = arith.constant 3 : index
      %c0_135 = arith.constant 0 : index
      %c0_136 = arith.constant 0 : index
      %231 = vector.load %arg2[%c3_134, %c0_135, %c0_136] : memref<9x8x1xf32, #tpu.memory_space<vmem>>, vector<1x8x1xf32>
      %232 = vector.shape_cast %231 : vector<1x8x1xf32> to vector<8x1xf32>
      %233 = vector.broadcast %232 : vector<8x1xf32> to vector<8x16xf32>
      %234 = vector.broadcast %230 : vector<1x16xf32> to vector<8x16xf32>
      %235 = arith.mulf %233, %234 : vector<8x16xf32>
      %236 = arith.addf %227, %235 : vector<8x16xf32>
      %c0_137 = arith.constant 0 : index
      %237 = arith.index_cast %arg8 : i32 to index
      %c16 = arith.constant 16 : index
      %c0_138 = arith.constant 0 : index
      %238 = vector.load %arg1[%c0_137, %237, %c16, %c0_138] : memref<1x2x25x16xf32, #tpu.memory_space<vmem>>, vector<1x1x1x16xf32>
      %239 = vector.shape_cast %238 : vector<1x1x1x16xf32> to vector<1x16xf32>
      %c4_139 = arith.constant 4 : index
      %c0_140 = arith.constant 0 : index
      %c0_141 = arith.constant 0 : index
      %240 = vector.load %arg2[%c4_139, %c0_140, %c0_141] : memref<9x8x1xf32, #tpu.memory_space<vmem>>, vector<1x8x1xf32>
      %241 = vector.shape_cast %240 : vector<1x8x1xf32> to vector<8x1xf32>
      %242 = vector.broadcast %241 : vector<8x1xf32> to vector<8x16xf32>
      %243 = vector.broadcast %239 : vector<1x16xf32> to vector<8x16xf32>
      %244 = arith.mulf %242, %243 : vector<8x16xf32>
      %245 = arith.addf %236, %244 : vector<8x16xf32>
      %c0_142 = arith.constant 0 : index
      %246 = arith.index_cast %arg8 : i32 to index
      %c17 = arith.constant 17 : index
      %c0_143 = arith.constant 0 : index
      %247 = vector.load %arg1[%c0_142, %246, %c17, %c0_143] : memref<1x2x25x16xf32, #tpu.memory_space<vmem>>, vector<1x1x1x16xf32>
      %248 = vector.shape_cast %247 : vector<1x1x1x16xf32> to vector<1x16xf32>
      %c5_144 = arith.constant 5 : index
      %c0_145 = arith.constant 0 : index
      %c0_146 = arith.constant 0 : index
      %249 = vector.load %arg2[%c5_144, %c0_145, %c0_146] : memref<9x8x1xf32, #tpu.memory_space<vmem>>, vector<1x8x1xf32>
      %250 = vector.shape_cast %249 : vector<1x8x1xf32> to vector<8x1xf32>
      %251 = vector.broadcast %250 : vector<8x1xf32> to vector<8x16xf32>
      %252 = vector.broadcast %248 : vector<1x16xf32> to vector<8x16xf32>
      %253 = arith.mulf %251, %252 : vector<8x16xf32>
      %254 = arith.addf %245, %253 : vector<8x16xf32>
      %c0_147 = arith.constant 0 : index
      %255 = arith.index_cast %arg8 : i32 to index
      %c20 = arith.constant 20 : index
      %c0_148 = arith.constant 0 : index
      %256 = vector.load %arg1[%c0_147, %255, %c20, %c0_148] : memref<1x2x25x16xf32, #tpu.memory_space<vmem>>, vector<1x1x1x16xf32>
      %257 = vector.shape_cast %256 : vector<1x1x1x16xf32> to vector<1x16xf32>
      %c6_149 = arith.constant 6 : index
      %c0_150 = arith.constant 0 : index
      %c0_151 = arith.constant 0 : index
      %258 = vector.load %arg2[%c6_149, %c0_150, %c0_151] : memref<9x8x1xf32, #tpu.memory_space<vmem>>, vector<1x8x1xf32>
      %259 = vector.shape_cast %258 : vector<1x8x1xf32> to vector<8x1xf32>
      %260 = vector.broadcast %259 : vector<8x1xf32> to vector<8x16xf32>
      %261 = vector.broadcast %257 : vector<1x16xf32> to vector<8x16xf32>
      %262 = arith.mulf %260, %261 : vector<8x16xf32>
      %263 = arith.addf %254, %262 : vector<8x16xf32>
      %c0_152 = arith.constant 0 : index
      %264 = arith.index_cast %arg8 : i32 to index
      %c21 = arith.constant 21 : index
      %c0_153 = arith.constant 0 : index
      %265 = vector.load %arg1[%c0_152, %264, %c21, %c0_153] : memref<1x2x25x16xf32, #tpu.memory_space<vmem>>, vector<1x1x1x16xf32>
      %266 = vector.shape_cast %265 : vector<1x1x1x16xf32> to vector<1x16xf32>
      %c7_154 = arith.constant 7 : index
      %c0_155 = arith.constant 0 : index
      %c0_156 = arith.constant 0 : index
      %267 = vector.load %arg2[%c7_154, %c0_155, %c0_156] : memref<9x8x1xf32, #tpu.memory_space<vmem>>, vector<1x8x1xf32>
      %268 = vector.shape_cast %267 : vector<1x8x1xf32> to vector<8x1xf32>
      %269 = vector.broadcast %268 : vector<8x1xf32> to vector<8x16xf32>
      %270 = vector.broadcast %266 : vector<1x16xf32> to vector<8x16xf32>
      %271 = arith.mulf %269, %270 : vector<8x16xf32>
      %272 = arith.addf %263, %271 : vector<8x16xf32>
      %c0_157 = arith.constant 0 : index
      %273 = arith.index_cast %arg8 : i32 to index
      %c22 = arith.constant 22 : index
      %c0_158 = arith.constant 0 : index
      %274 = vector.load %arg1[%c0_157, %273, %c22, %c0_158] : memref<1x2x25x16xf32, #tpu.memory_space<vmem>>, vector<1x1x1x16xf32>
      %275 = vector.shape_cast %274 : vector<1x1x1x16xf32> to vector<1x16xf32>
      %c8_159 = arith.constant 8 : index
      %c0_160 = arith.constant 0 : index
      %c0_161 = arith.constant 0 : index
      %276 = vector.load %arg2[%c8_159, %c0_160, %c0_161] : memref<9x8x1xf32, #tpu.memory_space<vmem>>, vector<1x8x1xf32>
      %277 = vector.shape_cast %276 : vector<1x8x1xf32> to vector<8x1xf32>
      %278 = vector.broadcast %277 : vector<8x1xf32> to vector<8x16xf32>
      %279 = vector.broadcast %275 : vector<1x16xf32> to vector<8x16xf32>
      %280 = arith.mulf %278, %279 : vector<8x16xf32>
      %281 = arith.addf %272, %280 : vector<8x16xf32>
      %c0_162 = arith.constant 0 : index
      %c0_163 = arith.constant 0 : index
      %282 = vector.load %arg3[%c0_162, %c0_163] : memref<8x1xf32, #tpu.memory_space<vmem>>, vector<8x1xf32>
      %283 = vector.broadcast %282 : vector<8x1xf32> to vector<8x16xf32>
      %284 = arith.addf %281, %283 : vector<8x16xf32>
      %cst_164 = arith.constant 0.000000e+00 : f32
      %285 = vector.broadcast %cst_164 : f32 to vector<8x16xf32>
      %286 = arith.maximumf %284, %285 : vector<8x16xf32>
      %c16_165 = arith.constant 16 : index
      %c128_166 = arith.constant 128 : index
      %287 = vector.load %arg7[%c16_165, %c128_166] : memref<32x144xf32, #tpu.memory_space<vmem>>, vector<8x16xf32>
      tpu.vector_store %arg7[%c16_165, %c128_166], %286 {strides = array<i32>} : memref<32x144xf32, #tpu.memory_space<vmem>>, vector<8x16xf32>,
      %cst_167 = arith.constant 0.000000e+00 : f32
      %288 = vector.broadcast %cst_167 : f32 to vector<8x16xf32>
      %c0_168 = arith.constant 0 : index
      %289 = arith.index_cast %arg8 : i32 to index
      %c12_169 = arith.constant 12 : index
      %c0_170 = arith.constant 0 : index
      %290 = vector.load %arg1[%c0_168, %289, %c12_169, %c0_170] : memref<1x2x25x16xf32, #tpu.memory_space<vmem>>, vector<1x1x1x16xf32>
      %291 = vector.shape_cast %290 : vector<1x1x1x16xf32> to vector<1x16xf32>
      %c0_171 = arith.constant 0 : index
      %c0_172 = arith.constant 0 : index
      %c0_173 = arith.constant 0 : index
      %292 = vector.load %arg2[%c0_171, %c0_172, %c0_173] : memref<9x8x1xf32, #tpu.memory_space<vmem>>, vector<1x8x1xf32>
      %293 = vector.shape_cast %292 : vector<1x8x1xf32> to vector<8x1xf32>
      %294 = vector.broadcast %293 : vector<8x1xf32> to vector<8x16xf32>
      %295 = vector.broadcast %291 : vector<1x16xf32> to vector<8x16xf32>
      %296 = arith.mulf %294, %295 : vector<8x16xf32>
      %297 = arith.addf %288, %296 : vector<8x16xf32>
      %c0_174 = arith.constant 0 : index
      %298 = arith.index_cast %arg8 : i32 to index
      %c13_175 = arith.constant 13 : index
      %c0_176 = arith.constant 0 : index
      %299 = vector.load %arg1[%c0_174, %298, %c13_175, %c0_176] : memref<1x2x25x16xf32, #tpu.memory_space<vmem>>, vector<1x1x1x16xf32>
      %300 = vector.shape_cast %299 : vector<1x1x1x16xf32> to vector<1x16xf32>
      %c1_177 = arith.constant 1 : index
      %c0_178 = arith.constant 0 : index
      %c0_179 = arith.constant 0 : index
      %301 = vector.load %arg2[%c1_177, %c0_178, %c0_179] : memref<9x8x1xf32, #tpu.memory_space<vmem>>, vector<1x8x1xf32>
      %302 = vector.shape_cast %301 : vector<1x8x1xf32> to vector<8x1xf32>
      %303 = vector.broadcast %302 : vector<8x1xf32> to vector<8x16xf32>
      %304 = vector.broadcast %300 : vector<1x16xf32> to vector<8x16xf32>
      %305 = arith.mulf %303, %304 : vector<8x16xf32>
      %306 = arith.addf %297, %305 : vector<8x16xf32>
      %c0_180 = arith.constant 0 : index
      %307 = arith.index_cast %arg8 : i32 to index
      %c14_181 = arith.constant 14 : index
      %c0_182 = arith.constant 0 : index
      %308 = vector.load %arg1[%c0_180, %307, %c14_181, %c0_182] : memref<1x2x25x16xf32, #tpu.memory_space<vmem>>, vector<1x1x1x16xf32>
      %309 = vector.shape_cast %308 : vector<1x1x1x16xf32> to vector<1x16xf32>
      %c2_183 = arith.constant 2 : index
      %c0_184 = arith.constant 0 : index
      %c0_185 = arith.constant 0 : index
      %310 = vector.load %arg2[%c2_183, %c0_184, %c0_185] : memref<9x8x1xf32, #tpu.memory_space<vmem>>, vector<1x8x1xf32>
      %311 = vector.shape_cast %310 : vector<1x8x1xf32> to vector<8x1xf32>
      %312 = vector.broadcast %311 : vector<8x1xf32> to vector<8x16xf32>
      %313 = vector.broadcast %309 : vector<1x16xf32> to vector<8x16xf32>
      %314 = arith.mulf %312, %313 : vector<8x16xf32>
      %315 = arith.addf %306, %314 : vector<8x16xf32>
      %c0_186 = arith.constant 0 : index
      %316 = arith.index_cast %arg8 : i32 to index
      %c17_187 = arith.constant 17 : index
      %c0_188 = arith.constant 0 : index
      %317 = vector.load %arg1[%c0_186, %316, %c17_187, %c0_188] : memref<1x2x25x16xf32, #tpu.memory_space<vmem>>, vector<1x1x1x16xf32>
      %318 = vector.shape_cast %317 : vector<1x1x1x16xf32> to vector<1x16xf32>
      %c3_189 = arith.constant 3 : index
      %c0_190 = arith.constant 0 : index
      %c0_191 = arith.constant 0 : index
      %319 = vector.load %arg2[%c3_189, %c0_190, %c0_191] : memref<9x8x1xf32, #tpu.memory_space<vmem>>, vector<1x8x1xf32>
      %320 = vector.shape_cast %319 : vector<1x8x1xf32> to vector<8x1xf32>
      %321 = vector.broadcast %320 : vector<8x1xf32> to vector<8x16xf32>
      %322 = vector.broadcast %318 : vector<1x16xf32> to vector<8x16xf32>
      %323 = arith.mulf %321, %322 : vector<8x16xf32>
      %324 = arith.addf %315, %323 : vector<8x16xf32>
      %c0_192 = arith.constant 0 : index
      %325 = arith.index_cast %arg8 : i32 to index
      %c18 = arith.constant 18 : index
      %c0_193 = arith.constant 0 : index
      %326 = vector.load %arg1[%c0_192, %325, %c18, %c0_193] : memref<1x2x25x16xf32, #tpu.memory_space<vmem>>, vector<1x1x1x16xf32>
      %327 = vector.shape_cast %326 : vector<1x1x1x16xf32> to vector<1x16xf32>
      %c4_194 = arith.constant 4 : index
      %c0_195 = arith.constant 0 : index
      %c0_196 = arith.constant 0 : index
      %328 = vector.load %arg2[%c4_194, %c0_195, %c0_196] : memref<9x8x1xf32, #tpu.memory_space<vmem>>, vector<1x8x1xf32>
      %329 = vector.shape_cast %328 : vector<1x8x1xf32> to vector<8x1xf32>
      %330 = vector.broadcast %329 : vector<8x1xf32> to vector<8x16xf32>
      %331 = vector.broadcast %327 : vector<1x16xf32> to vector<8x16xf32>
      %332 = arith.mulf %330, %331 : vector<8x16xf32>
      %333 = arith.addf %324, %332 : vector<8x16xf32>
      %c0_197 = arith.constant 0 : index
      %334 = arith.index_cast %arg8 : i32 to index
      %c19 = arith.constant 19 : index
      %c0_198 = arith.constant 0 : index
      %335 = vector.load %arg1[%c0_197, %334, %c19, %c0_198] : memref<1x2x25x16xf32, #tpu.memory_space<vmem>>, vector<1x1x1x16xf32>
      %336 = vector.shape_cast %335 : vector<1x1x1x16xf32> to vector<1x16xf32>
      %c5_199 = arith.constant 5 : index
      %c0_200 = arith.constant 0 : index
      %c0_201 = arith.constant 0 : index
      %337 = vector.load %arg2[%c5_199, %c0_200, %c0_201] : memref<9x8x1xf32, #tpu.memory_space<vmem>>, vector<1x8x1xf32>
      %338 = vector.shape_cast %337 : vector<1x8x1xf32> to vector<8x1xf32>
      %339 = vector.broadcast %338 : vector<8x1xf32> to vector<8x16xf32>
      %340 = vector.broadcast %336 : vector<1x16xf32> to vector<8x16xf32>
      %341 = arith.mulf %339, %340 : vector<8x16xf32>
      %342 = arith.addf %333, %341 : vector<8x16xf32>
      %c0_202 = arith.constant 0 : index
      %343 = arith.index_cast %arg8 : i32 to index
      %c22_203 = arith.constant 22 : index
      %c0_204 = arith.constant 0 : index
      %344 = vector.load %arg1[%c0_202, %343, %c22_203, %c0_204] : memref<1x2x25x16xf32, #tpu.memory_space<vmem>>, vector<1x1x1x16xf32>
      %345 = vector.shape_cast %344 : vector<1x1x1x16xf32> to vector<1x16xf32>
      %c6_205 = arith.constant 6 : index
      %c0_206 = arith.constant 0 : index
      %c0_207 = arith.constant 0 : index
      %346 = vector.load %arg2[%c6_205, %c0_206, %c0_207] : memref<9x8x1xf32, #tpu.memory_space<vmem>>, vector<1x8x1xf32>
      %347 = vector.shape_cast %346 : vector<1x8x1xf32> to vector<8x1xf32>
      %348 = vector.broadcast %347 : vector<8x1xf32> to vector<8x16xf32>
      %349 = vector.broadcast %345 : vector<1x16xf32> to vector<8x16xf32>
      %350 = arith.mulf %348, %349 : vector<8x16xf32>
      %351 = arith.addf %342, %350 : vector<8x16xf32>
      %c0_208 = arith.constant 0 : index
      %352 = arith.index_cast %arg8 : i32 to index
      %c23 = arith.constant 23 : index
      %c0_209 = arith.constant 0 : index
      %353 = vector.load %arg1[%c0_208, %352, %c23, %c0_209] : memref<1x2x25x16xf32, #tpu.memory_space<vmem>>, vector<1x1x1x16xf32>
      %354 = vector.shape_cast %353 : vector<1x1x1x16xf32> to vector<1x16xf32>
      %c7_210 = arith.constant 7 : index
      %c0_211 = arith.constant 0 : index
      %c0_212 = arith.constant 0 : index
      %355 = vector.load %arg2[%c7_210, %c0_211, %c0_212] : memref<9x8x1xf32, #tpu.memory_space<vmem>>, vector<1x8x1xf32>
      %356 = vector.shape_cast %355 : vector<1x8x1xf32> to vector<8x1xf32>
      %357 = vector.broadcast %356 : vector<8x1xf32> to vector<8x16xf32>
      %358 = vector.broadcast %354 : vector<1x16xf32> to vector<8x16xf32>
      %359 = arith.mulf %357, %358 : vector<8x16xf32>
      %360 = arith.addf %351, %359 : vector<8x16xf32>
      %c0_213 = arith.constant 0 : index
      %361 = arith.index_cast %arg8 : i32 to index
      %c24 = arith.constant 24 : index
      %c0_214 = arith.constant 0 : index
      %362 = vector.load %arg1[%c0_213, %361, %c24, %c0_214] : memref<1x2x25x16xf32, #tpu.memory_space<vmem>>, vector<1x1x1x16xf32>
      %363 = vector.shape_cast %362 : vector<1x1x1x16xf32> to vector<1x16xf32>
      %c8_215 = arith.constant 8 : index
      %c0_216 = arith.constant 0 : index
      %c0_217 = arith.constant 0 : index
      %364 = vector.load %arg2[%c8_215, %c0_216, %c0_217] : memref<9x8x1xf32, #tpu.memory_space<vmem>>, vector<1x8x1xf32>
      %365 = vector.shape_cast %364 : vector<1x8x1xf32> to vector<8x1xf32>
      %366 = vector.broadcast %365 : vector<8x1xf32> to vector<8x16xf32>
      %367 = vector.broadcast %363 : vector<1x16xf32> to vector<8x16xf32>
      %368 = arith.mulf %366, %367 : vector<8x16xf32>
      %369 = arith.addf %360, %368 : vector<8x16xf32>
      %c0_218 = arith.constant 0 : index
      %c0_219 = arith.constant 0 : index
      %370 = vector.load %arg3[%c0_218, %c0_219] : memref<8x1xf32, #tpu.memory_space<vmem>>, vector<8x1xf32>
      %371 = vector.broadcast %370 : vector<8x1xf32> to vector<8x16xf32>
      %372 = arith.addf %369, %371 : vector<8x16xf32>
      %cst_220 = arith.constant 0.000000e+00 : f32
      %373 = vector.broadcast %cst_220 : f32 to vector<8x16xf32>
      %374 = arith.maximumf %372, %373 : vector<8x16xf32>
      %c24_221 = arith.constant 24 : index
      %c128_222 = arith.constant 128 : index
      %375 = vector.load %arg7[%c24_221, %c128_222] : memref<32x144xf32, #tpu.memory_space<vmem>>, vector<8x16xf32>
      tpu.vector_store %arg7[%c24_221, %c128_222], %374 {strides = array<i32>} : memref<32x144xf32, #tpu.memory_space<vmem>>, vector<8x16xf32>,
      %cst_223 = arith.constant 0.000000e+00 : f32
      %376 = vector.broadcast %cst_223 : f32 to vector<16x16xf32>
      %c24_224 = arith.constant 24 : index
      %c123 = arith.constant 123 : index
      %377 = vector.load %arg7[%c24_224, %c123] : memref<32x144xf32, #tpu.memory_space<vmem>>, vector<8x16xf32>
      %378 = vector.broadcast %22 : vector<1x16xf32> to vector<8x16xf32>
      %379 = arith.mulf %377, %378 : vector<8x16xf32>
      %c0_225 = arith.constant 0 : index
      %c0_226 = arith.constant 0 : index
      %c0_227 = arith.constant 0 : index
      %380 = vector.load %arg4[%c0_225, %c0_226, %c0_227] : memref<9x16x8xf32, #tpu.memory_space<vmem>>, vector<1x16x8xf32>
      %381 = vector.shape_cast %380 : vector<1x16x8xf32> to vector<16x8xf32>
      %cst_228 = arith.constant dense<0.000000e+00> : vector<16x16xf32>
      %382 = tpu.matmul %381, %379, %cst_228 {dimension_numbers = #tpu.dot_dimension_numbers<[1], [0], [0], [1], [0, 0, 1, 1], [], []>, precision = #tpu.contract_precision<fp32>} : vector<16x8xf32>, vector<8x16xf32>, vector<16x16xf32> -> vector<16x16xf32>
      %383 = arith.addf %376, %382 : vector<16x16xf32>
      %c16_229 = arith.constant 16 : index
      %c124 = arith.constant 124 : index
      %384 = vector.load %arg7[%c16_229, %c124] : memref<32x144xf32, #tpu.memory_space<vmem>>, vector<8x16xf32>
      %c1_230 = arith.constant 1 : index
      %c0_231 = arith.constant 0 : index
      %c0_232 = arith.constant 0 : index
      %385 = vector.load %arg4[%c1_230, %c0_231, %c0_232] : memref<9x16x8xf32, #tpu.memory_space<vmem>>, vector<1x16x8xf32>
      %386 = vector.shape_cast %385 : vector<1x16x8xf32> to vector<16x8xf32>
      %cst_233 = arith.constant dense<0.000000e+00> : vector<16x16xf32>
      %387 = tpu.matmul %386, %384, %cst_233 {dimension_numbers = #tpu.dot_dimension_numbers<[1], [0], [0], [1], [0, 0, 1, 1], [], []>, precision = #tpu.contract_precision<fp32>} : vector<16x8xf32>, vector<8x16xf32>, vector<16x16xf32> -> vector<16x16xf32>
      %388 = arith.addf %383, %387 : vector<16x16xf32>
      %c24_234 = arith.constant 24 : index
      %c124_235 = arith.constant 124 : index
      %389 = vector.load %arg7[%c24_234, %c124_235] : memref<32x144xf32, #tpu.memory_space<vmem>>, vector<8x16xf32>
      %c2_236 = arith.constant 2 : index
      %c0_237 = arith.constant 0 : index
      %c0_238 = arith.constant 0 : index
      %390 = vector.load %arg4[%c2_236, %c0_237, %c0_238] : memref<9x16x8xf32, #tpu.memory_space<vmem>>, vector<1x16x8xf32>
      %391 = vector.shape_cast %390 : vector<1x16x8xf32> to vector<16x8xf32>
      %cst_239 = arith.constant dense<0.000000e+00> : vector<16x16xf32>
      %392 = tpu.matmul %391, %389, %cst_239 {dimension_numbers = #tpu.dot_dimension_numbers<[1], [0], [0], [1], [0, 0, 1, 1], [], []>, precision = #tpu.contract_precision<fp32>} : vector<16x8xf32>, vector<8x16xf32>, vector<16x16xf32> -> vector<16x16xf32>
      %393 = arith.addf %388, %392 : vector<16x16xf32>
      %c8_240 = arith.constant 8 : index
      %c127 = arith.constant 127 : index
      %394 = vector.load %arg7[%c8_240, %c127] : memref<32x144xf32, #tpu.memory_space<vmem>>, vector<8x16xf32>
      %395 = vector.broadcast %22 : vector<1x16xf32> to vector<8x16xf32>
      %396 = arith.mulf %394, %395 : vector<8x16xf32>
      %c3_241 = arith.constant 3 : index
      %c0_242 = arith.constant 0 : index
      %c0_243 = arith.constant 0 : index
      %397 = vector.load %arg4[%c3_241, %c0_242, %c0_243] : memref<9x16x8xf32, #tpu.memory_space<vmem>>, vector<1x16x8xf32>
      %398 = vector.shape_cast %397 : vector<1x16x8xf32> to vector<16x8xf32>
      %cst_244 = arith.constant dense<0.000000e+00> : vector<16x16xf32>
      %399 = tpu.matmul %398, %396, %cst_244 {dimension_numbers = #tpu.dot_dimension_numbers<[1], [0], [0], [1], [0, 0, 1, 1], [], []>, precision = #tpu.contract_precision<fp32>} : vector<16x8xf32>, vector<8x16xf32>, vector<16x16xf32> -> vector<16x16xf32>
      %400 = arith.addf %393, %399 : vector<16x16xf32>
      %c0_245 = arith.constant 0 : index
      %c128_246 = arith.constant 128 : index
      %401 = vector.load %arg7[%c0_245, %c128_246] : memref<32x144xf32, #tpu.memory_space<vmem>>, vector<8x16xf32>
      %c4_247 = arith.constant 4 : index
      %c0_248 = arith.constant 0 : index
      %c0_249 = arith.constant 0 : index
      %402 = vector.load %arg4[%c4_247, %c0_248, %c0_249] : memref<9x16x8xf32, #tpu.memory_space<vmem>>, vector<1x16x8xf32>
      %403 = vector.shape_cast %402 : vector<1x16x8xf32> to vector<16x8xf32>
      %cst_250 = arith.constant dense<0.000000e+00> : vector<16x16xf32>
      %404 = tpu.matmul %403, %401, %cst_250 {dimension_numbers = #tpu.dot_dimension_numbers<[1], [0], [0], [1], [0, 0, 1, 1], [], []>, precision = #tpu.contract_precision<fp32>} : vector<16x8xf32>, vector<8x16xf32>, vector<16x16xf32> -> vector<16x16xf32>
      %405 = arith.addf %400, %404 : vector<16x16xf32>
      %c8_251 = arith.constant 8 : index
      %c128_252 = arith.constant 128 : index
      %406 = vector.load %arg7[%c8_251, %c128_252] : memref<32x144xf32, #tpu.memory_space<vmem>>, vector<8x16xf32>
      %c5_253 = arith.constant 5 : index
      %c0_254 = arith.constant 0 : index
      %c0_255 = arith.constant 0 : index
      %407 = vector.load %arg4[%c5_253, %c0_254, %c0_255] : memref<9x16x8xf32, #tpu.memory_space<vmem>>, vector<1x16x8xf32>
      %408 = vector.shape_cast %407 : vector<1x16x8xf32> to vector<16x8xf32>
      %cst_256 = arith.constant dense<0.000000e+00> : vector<16x16xf32>
      %409 = tpu.matmul %408, %406, %cst_256 {dimension_numbers = #tpu.dot_dimension_numbers<[1], [0], [0], [1], [0, 0, 1, 1], [], []>, precision = #tpu.contract_precision<fp32>} : vector<16x8xf32>, vector<8x16xf32>, vector<16x16xf32> -> vector<16x16xf32>
      %410 = arith.addf %405, %409 : vector<16x16xf32>
      %c24_257 = arith.constant 24 : index
      %c127_258 = arith.constant 127 : index
      %411 = vector.load %arg7[%c24_257, %c127_258] : memref<32x144xf32, #tpu.memory_space<vmem>>, vector<8x16xf32>
      %412 = vector.broadcast %22 : vector<1x16xf32> to vector<8x16xf32>
      %413 = arith.mulf %411, %412 : vector<8x16xf32>
      %c6_259 = arith.constant 6 : index
      %c0_260 = arith.constant 0 : index
      %c0_261 = arith.constant 0 : index
      %414 = vector.load %arg4[%c6_259, %c0_260, %c0_261] : memref<9x16x8xf32, #tpu.memory_space<vmem>>, vector<1x16x8xf32>
      %415 = vector.shape_cast %414 : vector<1x16x8xf32> to vector<16x8xf32>
      %cst_262 = arith.constant dense<0.000000e+00> : vector<16x16xf32>
      %416 = tpu.matmul %415, %413, %cst_262 {dimension_numbers = #tpu.dot_dimension_numbers<[1], [0], [0], [1], [0, 0, 1, 1], [], []>, precision = #tpu.contract_precision<fp32>} : vector<16x8xf32>, vector<8x16xf32>, vector<16x16xf32> -> vector<16x16xf32>
      %417 = arith.addf %410, %416 : vector<16x16xf32>
      %c16_263 = arith.constant 16 : index
      %c128_264 = arith.constant 128 : index
      %418 = vector.load %arg7[%c16_263, %c128_264] : memref<32x144xf32, #tpu.memory_space<vmem>>, vector<8x16xf32>
      %c7_265 = arith.constant 7 : index
      %c0_266 = arith.constant 0 : index
      %c0_267 = arith.constant 0 : index
      %419 = vector.load %arg4[%c7_265, %c0_266, %c0_267] : memref<9x16x8xf32, #tpu.memory_space<vmem>>, vector<1x16x8xf32>
      %420 = vector.shape_cast %419 : vector<1x16x8xf32> to vector<16x8xf32>
      %cst_268 = arith.constant dense<0.000000e+00> : vector<16x16xf32>
      %421 = tpu.matmul %420, %418, %cst_268 {dimension_numbers = #tpu.dot_dimension_numbers<[1], [0], [0], [1], [0, 0, 1, 1], [], []>, precision = #tpu.contract_precision<fp32>} : vector<16x8xf32>, vector<8x16xf32>, vector<16x16xf32> -> vector<16x16xf32>
      %422 = arith.addf %417, %421 : vector<16x16xf32>
      %c24_269 = arith.constant 24 : index
      %c128_270 = arith.constant 128 : index
      %423 = vector.load %arg7[%c24_269, %c128_270] : memref<32x144xf32, #tpu.memory_space<vmem>>, vector<8x16xf32>
      %c8_271 = arith.constant 8 : index
      %c0_272 = arith.constant 0 : index
      %c0_273 = arith.constant 0 : index
      %424 = vector.load %arg4[%c8_271, %c0_272, %c0_273] : memref<9x16x8xf32, #tpu.memory_space<vmem>>, vector<1x16x8xf32>
      %425 = vector.shape_cast %424 : vector<1x16x8xf32> to vector<16x8xf32>
      %cst_274 = arith.constant dense<0.000000e+00> : vector<16x16xf32>
      %426 = tpu.matmul %425, %423, %cst_274 {dimension_numbers = #tpu.dot_dimension_numbers<[1], [0], [0], [1], [0, 0, 1, 1], [], []>, precision = #tpu.contract_precision<fp32>} : vector<16x8xf32>, vector<8x16xf32>, vector<16x16xf32> -> vector<16x16xf32>
      %427 = arith.addf %422, %426 : vector<16x16xf32>
      %c0_275 = arith.constant 0 : index
      %c0_276 = arith.constant 0 : index
      %428 = vector.load %arg5[%c0_275, %c0_276] : memref<16x1xf32, #tpu.memory_space<vmem>>, vector<16x1xf32>
      %429 = vector.broadcast %428 : vector<16x1xf32> to vector<16x16xf32>
      %430 = arith.addf %427, %429 : vector<16x16xf32>
      %cst_277 = arith.constant 0.000000e+00 : f32
      %431 = vector.broadcast %cst_277 : f32 to vector<16x16xf32>
      %432 = arith.maximumf %430, %431 : vector<16x16xf32>
      %c0_278 = arith.constant 0 : index
      %433 = arith.index_cast %arg8 : i32 to index
      %c0_279 = arith.constant 0 : index
      %c0_280 = arith.constant 0 : index
      %434 = vector.load %arg6[%c0_278, %433, %c0_279, %c0_280] : memref<1x2x16x16xf32, #tpu.memory_space<vmem>>, vector<1x1x16x16xf32>
      %435 = vector.shape_cast %434 : vector<1x1x16x16xf32> to vector<16x16xf32>
      %436 = vector.shape_cast %432 : vector<16x16xf32> to vector<1x1x16x16xf32>
      tpu.vector_store %arg6[%c0_278, %433, %c0_279, %c0_280], %436 {strides = array<i32>} : memref<1x2x16x16xf32, #tpu.memory_space<vmem>>, vector<1x1x16x16xf32>,
    }
    %c2_i32_7 = arith.constant 2 : i32
    return
  }
  func.func @transform_0(%arg0: i32) -> (i32, i32, i32, i32) {
    %c0_i32 = arith.constant 0 : i32
    %c0_i32_0 = arith.constant 0 : i32
    %c0_i32_1 = arith.constant 0 : i32
    %c0_i32_2 = arith.constant 0 : i32
    return %arg0, %c0_i32, %c0_i32_0, %c0_i32_1 : i32, i32, i32, i32
  }
  func.func @transform_1(%arg0: i32) -> (i32, i32, i32) {
    %c0_i32 = arith.constant 0 : i32
    %c0_i32_0 = arith.constant 0 : i32
    %c0_i32_1 = arith.constant 0 : i32
    %c0_i32_2 = arith.constant 0 : i32
    return %c0_i32, %c0_i32_0, %c0_i32_1 : i32, i32, i32
  }
  func.func @transform_2(%arg0: i32) -> (i32, i32) {
    %c0_i32 = arith.constant 0 : i32
    %c0_i32_0 = arith.constant 0 : i32
    %c0_i32_1 = arith.constant 0 : i32
    return %c0_i32, %c0_i32_0 : i32, i32
  }
  func.func @transform_3(%arg0: i32) -> (i32, i32, i32) {
    %c0_i32 = arith.constant 0 : i32
    %c0_i32_0 = arith.constant 0 : i32
    %c0_i32_1 = arith.constant 0 : i32
    %c0_i32_2 = arith.constant 0 : i32
    return %c0_i32, %c0_i32_0, %c0_i32_1 : i32, i32, i32
  }
  func.func @transform_4(%arg0: i32) -> (i32, i32) {
    %c0_i32 = arith.constant 0 : i32
    %c0_i32_0 = arith.constant 0 : i32
    %c0_i32_1 = arith.constant 0 : i32
    return %c0_i32, %c0_i32_0 : i32, i32
  }
  func.func @transform_5(%arg0: i32) -> (i32, i32, i32, i32) {
    %c0_i32 = arith.constant 0 : i32
    %c0_i32_0 = arith.constant 0 : i32
    %c0_i32_1 = arith.constant 0 : i32
    %c0_i32_2 = arith.constant 0 : i32
    return %arg0, %c0_i32, %c0_i32_0, %c0_i32_1 : i32, i32, i32, i32
  }
}

</mosaic_0001>

<llo_original>
// kernel: face_loc_encoder_forward.1
$region0: #{face_loc_encoder_forward.1}
  #allocation0 [shape = 'u32[]', space=smem, size = 0x4, offset = 0x4, fixed_abs, tag = 'smem constant byte address 0x4 - core index']
  #allocation1 [shape = 'u32[144,128]{1,0:T(1,128)}', space=vmem, size = 0x12000, scoped, tag = 'internal scratch']
  #allocation2 [shape = 'f32[32,144]{1,0:T(8,128)}', space=vmem, size = 0x8000, scoped, tag = 'scratch operand']
  %s0 = inlined_call_operand.vmem [shape: f32[1,2,25,16], index: 0, kind: input, shape index: {}]
  %s1 = inlined_call_operand.vmem [shape: f32[9,8,1], index: 1, kind: input, shape index: {}]
  %s2 = inlined_call_operand.vmem [shape: f32[8,1], index: 2, kind: input, shape index: {}]
  %s3 = inlined_call_operand.vmem [shape: f32[9,16,8], index: 3, kind: input, shape index: {}]
  %s4 = inlined_call_operand.vmem [shape: f32[16,1], index: 4, kind: input, shape index: {}]
  %s5 = inlined_call_operand.vmem [shape: f32[1,2,16,16], index: 5, kind: output, shape index: {}]
  %s6 = sld [smem:[#allocation0]]
  $region37: #{face_loc_encoder_forward.1} parent=0
    _
  %s8 = ssub.s32 1, %s6
  %s9 = scalar_select 0, %s8, %s6
  // Predicated region
  $region2: #{face_loc_encoder_forward.1} parent=0 // pred_check
    _
  $region3: #{face_loc_encoder_forward.1} parent=0 // pred_check_branch
    %11 = sbr.rel (0) target = $region5
  $region4: #{face_loc_encoder_forward.1} parent=0 // pred_region
    _
  $region5: #{face_loc_encoder_forward.1} parent=0 // pred_fallthru
    _
  // Predicated region
  $region6: #{face_loc_encoder_forward.1} parent=0 // pred_check
    _
  $region7: #{face_loc_encoder_forward.1} parent=0 // pred_check_branch
    %13 = sbr.rel (0) target = $region9
  $region8: #{face_loc_encoder_forward.1} parent=0 // pred_region
    _
  $region9: #{face_loc_encoder_forward.1} parent=0 // pred_fallthru
    _
  // Predicated region
  $region10: #{face_loc_encoder_forward.1} parent=0 // pred_check
    _
  $region11: #{face_loc_encoder_forward.1} parent=0 // pred_check_branch
    %15 = sbr.rel (0) target = $region13
  $region12: #{face_loc_encoder_forward.1} parent=0 // pred_region
    _
  $region13: #{face_loc_encoder_forward.1} parent=0 // pred_fallthru
    _
  // Predicated region
  $region14: #{face_loc_encoder_forward.1} parent=0 // pred_check
    _
  $region15: #{face_loc_encoder_forward.1} parent=0 // pred_check_branch
    %17 = sbr.rel (0) target = $region17
  $region16: #{face_loc_encoder_forward.1} parent=0 // pred_region
    _
  $region17: #{face_loc_encoder_forward.1} parent=0 // pred_fallthru
    _
  // Predicated region
  $region18: #{face_loc_encoder_forward.1} parent=0 // pred_check
    _
  $region19: #{face_loc_encoder_forward.1} parent=0 // pred_check_branch
    %19 = sbr.rel (0) target = $region21
  $region20: #{face_loc_encoder_forward.1} parent=0 // pred_region
    _
  $region21: #{face_loc_encoder_forward.1} parent=0 // pred_fallthru
    _
  %20 = vst [vmem:[#allocation2] sm:$0xff] 0.0
  %21 = vst [vmem:[#allocation2 + $0x10] sm:$0xff] 0.0
  %22 = vst [vmem:[#allocation2 + $0x20] sm:$0xff] 0.0
  %23 = vst [vmem:[#allocation2 + $0x30] sm:$0xff] 0.0
  %v24 = vlaneseq
  %v25 = vand.u32 %v24, 127
  %vm26 = vcmp.lt.s32.totalorder %v25, 0
  %v27 = vsub.s32 0, %v25
  %v28 = vsel %vm26, %v27, %v25
  %v29 = vshrl.u32 %v28, 2
  %v30 = vand.u32 %v28, 3
  %v31 = vsub.s32 0, %v30
  %v32 = vsel %vm26, %v31, %v30
  %vm33 = vcmp.ne.s32.totalorder %v32, 0
  %vm34 = vcmp.lt.s32.totalorder %v32, 0
  %vm35 = vmand %vm34, %vm33
  %v36 = vadd.s32 %v32, 4
  %v37 = vsel %vm35, %v36, %v32
  %vm38 = vcmp.ne.s32.totalorder %v37, 0
  %v39 = vsel %vm38, 1, 0
  %v40 = vcvt.s32.f32 %v39
  loop: start=0, step=1, limit=2
  $region22: #{face_loc_encoder_forward.1} parent=0 // loop_pre_header
    _
  $region23: #{face_loc_encoder_forward.1} parent=0 // loop_header
    %s42 = sphi 0, %s46
    %p43 = scmp.ge.s32.totalorder %s42, 2
  $region24: #{face_loc_encoder_forward.1} parent=0 // loop_header_branch
    %45 = sbr.rel (%p43) target = $region28
  $region25: #{face_loc_encoder_forward.1} parent=0 // loop_body
    %s47 = smul.u32 %s42, 32
    %s48 = scalar_lea.vmem %s0, %s47
    %v49 = vld [vmem:[%s48] sm:$0x1]
    %v50 = vld [vmem:[%s1] sm:$0xff]
    %52 = vset.pattern.permute.xlu0 0
    %53 = vperm.xlu0 %52, %v50
    %v54 = vpop.permute.xlu0 %53
    %v56 = vlaneseq
    %v57 = vshrl.u32 %v56, 7
    %v58 = vsub.s32 0, %v57
    %v59 = vrot.slane %v49, %v58
    %v60 = vmul.f32 %v54, %v59
    %v61 = vadd.f32 %v60, 0.0
    %v62 = vld [vmem:[%s48 + $0x1] sm:$0x1]
    %s63 = scalar_lea.vmem %s1, 8
    %v64 = vld [vmem:[%s63] sm:$0xff]
    %66 = vset.pattern.permute.xlu0 0
    %67 = vperm.xlu0 %66, %v64
    %v68 = vpop.permute.xlu0 %67
    %v70 = vlaneseq
    %v71 = vshrl.u32 %v70, 7
    %v72 = vsub.s32 0, %v71
    %v73 = vrot.slane %v62, %v72
    %v74 = vmul.f32 %v68, %v73
    %v75 = vadd.f32 %v61, %v74
    %v76 = vld [vmem:[%s48 + $0x2] sm:$0x1]
    %s77 = scalar_lea.vmem %s1, 16
    %v78 = vld [vmem:[%s77] sm:$0xff]
    %80 = vset.pattern.permute.xlu0 0
    %81 = vperm.xlu0 %80, %v78
    %v82 = vpop.permute.xlu0 %81
    %v84 = vlaneseq
    %v85 = vshrl.u32 %v84, 7
    %v86 = vsub.s32 0, %v85
    %v87 = vrot.slane %v76, %v86
    %v88 = vmul.f32 %v82, %v87
    %v89 = vadd.f32 %v75, %v88
    %v90 = vld [vmem:[%s48 + $0x5] sm:$0x1]
    %s91 = scalar_lea.vmem %s1, 24
    %v92 = vld [vmem:[%s91] sm:$0xff]
    %94 = vset.pattern.permute.xlu0 0
    %95 = vperm.xlu0 %94, %v92
    %v96 = vpop.permute.xlu0 %95
    %v98 = vlaneseq
    %v99 = vshrl.u32 %v98, 7
    %v100 = vsub.s32 0, %v99
    %v101 = vrot.slane %v90, %v100
    %v102 = vmul.f32 %v96, %v101
    %v103 = vadd.f32 %v89, %v102
    %v104 = vld [vmem:[%s48 + $0x6] sm:$0x1]
    %s105 = scalar_lea.vmem %s1, 32
    %v106 = vld [vmem:[%s105] sm:$0xff]
    %108 = vset.pattern.permute.xlu0 0
    %109 = vperm.xlu0 %108, %v106
    %v110 = vpop.permute.xlu0 %109
    %v112 = vlaneseq
    %v113 = vshrl.u32 %v112, 7
    %v114 = vsub.s32 0, %v113
    %v115 = vrot.slane %v104, %v114
    %v116 = vmul.f32 %v110, %v115
    %v117 = vadd.f32 %v103, %v116
    %v118 = vld [vmem:[%s48 + $0x7] sm:$0x1]
    %s119 = scalar_lea.vmem %s1, 40
    %v120 = vld [vmem:[%s119] sm:$0xff]
    %122 = vset.pattern.permute.xlu0 0
    %123 = vperm.xlu0 %122, %v120
    %v124 = vpop.permute.xlu0 %123
    %v126 = vlaneseq
    %v127 = vshrl.u32 %v126, 7
    %v128 = vsub.s32 0, %v127
    %v129 = vrot.slane %v118, %v128
    %v130 = vmul.f32 %v124, %v129
    %v131 = vadd.f32 %v117, %v130
    %v132 = vld [vmem:[%s48 + $0xa] sm:$0x1]
    %s133 = scalar_lea.vmem %s1, 48
    %v134 = vld [vmem:[%s133] sm:$0xff]
    %136 = vset.pattern.permute.xlu0 0
    %137 = vperm.xlu0 %136, %v134
    %v138 = vpop.permute.xlu0 %137
    %v140 = vlaneseq
    %v141 = vshrl.u32 %v140, 7
    %v142 = vsub.s32 0, %v141
    %v143 = vrot.slane %v132, %v142
    %v144 = vmul.f32 %v138, %v143
    %v145 = vadd.f32 %v131, %v144
    %v146 = vld [vmem:[%s48 + $0xb] sm:$0x1]
    %s147 = scalar_lea.vmem %s1, 56
    %v148 = vld [vmem:[%s147] sm:$0xff]
    %150 = vset.pattern.permute.xlu0 0
    %151 = vperm.xlu0 %150, %v148
    %v152 = vpop.permute.xlu0 %151
    %v154 = vlaneseq
    %v155 = vshrl.u32 %v154, 7
    %v156 = vsub.s32 0, %v155
    %v157 = vrot.slane %v146, %v156
    %v158 = vmul.f32 %v152, %v157
    %v159 = vadd.f32 %v145, %v158
    %v160 = vld [vmem:[%s48 + $0xc] sm:$0x1]
    %s161 = scalar_lea.vmem %s1, 64
    %v162 = vld [vmem:[%s161] sm:$0xff]
    %164 = vset.pattern.permute.xlu0 0
    %165 = vperm.xlu0 %164, %v162
    %v166 = vpop.permute.xlu0 %165
    %v168 = vlaneseq
    %v169 = vshrl.u32 %v168, 7
    %v170 = vsub.s32 0, %v169
    %v171 = vrot.slane %v160, %v170
    %v172 = vmul.f32 %v166, %v171
    %v173 = vadd.f32 %v159, %v172
    %v174 = vld [vmem:[%s2] sm:$0xff]
    %176 = vset.pattern.permute.xlu0 0
    %177 = vperm.xlu0 %176, %v174
    %v178 = vpop.permute.xlu0 %177
    %v180 = vadd.f32 %v173, %v178
    %v181 = vmax.f32 %v180, 0.0
    %vm182 = vcmask 130048
    %183 = vst.msk [vmem:[#allocation2 + $0x8] sm:$0xff] %vm182, %v181
    %v184 = vld [vmem:[%s48 + $0x2] sm:$0x1]
    %v185 = vld [vmem:[%s1] sm:$0xff]
    %187 = vset.pattern.permute.xlu0 0
    %188 = vperm.xlu0 %187, %v185
    %v189 = vpop.permute.xlu0 %188
    %v191 = vlaneseq
    %v192 = vshrl.u32 %v191, 7
    %v193 = vsub.s32 0, %v192
    %v194 = vrot.slane %v184, %v193
    %v195 = vmul.f32 %v189, %v194
    %v196 = vadd.f32 %v195, 0.0
    %v197 = vld [vmem:[%s48 + $0x3] sm:$0x1]
    %v198 = vld [vmem:[%s63] sm:$0xff]
    %200 = vset.pattern.permute.xlu0 0
    %201 = vperm.xlu0 %200, %v198
    %v202 = vpop.permute.xlu0 %201
    %v204 = vlaneseq
    %v205 = vshrl.u32 %v204, 7
    %v206 = vsub.s32 0, %v205
    %v207 = vrot.slane %v197, %v206
    %v208 = vmul.f32 %v202, %v207
    %v209 = vadd.f32 %v196, %v208
    %v210 = vld [vmem:[%s48 + $0x4] sm:$0x1]
    %v211 = vld [vmem:[%s77] sm:$0xff]
    %213 = vset.pattern.permute.xlu0 0
    %214 = vperm.xlu0 %213, %v211
    %v215 = vpop.permute.xlu0 %214
    %v217 = vlaneseq
    %v218 = vshrl.u32 %v217, 7
    %v219 = vsub.s32 0, %v218
    %v220 = vrot.slane %v210, %v219
    %v221 = vmul.f32 %v215, %v220
    %v222 = vadd.f32 %v209, %v221
    %v223 = vld [vmem:[%s48 + $0x7] sm:$0x1]
    %v224 = vld [vmem:[%s91] sm:$0xff]
    %226 = vset.pattern.permute.xlu0 0
    %227 = vperm.xlu0 %226, %v224
    %v228 = vpop.permute.xlu0 %227
    %v230 = vlaneseq
    %v231 = vshrl.u32 %v230, 7
    %v232 = vsub.s32 0, %v231
    %v233 = vrot.slane %v223, %v232
    %v234 = vmul.f32 %v228, %v233
    %v235 = vadd.f32 %v222, %v234
    %v236 = vld [vmem:[%s48 + $0x8] sm:$0x1]
    %v237 = vld [vmem:[%s105] sm:$0xff]
    %239 = vset.pattern.permute.xlu0 0
    %240 = vperm.xlu0 %239, %v237
    %v241 = vpop.permute.xlu0 %240
    %v243 = vlaneseq
    %v244 = vshrl.u32 %v243, 7
    %v245 = vsub.s32 0, %v244
    %v246 = vrot.slane %v236, %v245
    %v247 = vmul.f32 %v241, %v246
    %v248 = vadd.f32 %v235, %v247
    %v249 = vld [vmem:[%s48 + $0x9] sm:$0x1]
    %v250 = vld [vmem:[%s119] sm:$0xff]
    %252 = vset.pattern.permute.xlu0 0
    %253 = vperm.xlu0 %252, %v250
    %v254 = vpop.permute.xlu0 %253
    %v256 = vlaneseq
    %v257 = vshrl.u32 %v256, 7
    %v258 = vsub.s32 0, %v257
    %v259 = vrot.slane %v249, %v258
    %v260 = vmul.f32 %v254, %v259
    %v261 = vadd.f32 %v248, %v260
    %v262 = vld [vmem:[%s48 + $0xc] sm:$0x1]
    %v263 = vld [vmem:[%s133] sm:$0xff]
    %265 = vset.pattern.permute.xlu0 0
    %266 = vperm.xlu0 %265, %v263
    %v267 = vpop.permute.xlu0 %266
    %v269 = vlaneseq
    %v270 = vshrl.u32 %v269, 7
    %v271 = vsub.s32 0, %v270
    %v272 = vrot.slane %v262, %v271
    %v273 = vmul.f32 %v267, %v272
    %v274 = vadd.f32 %v261, %v273
    %v275 = vld [vmem:[%s48 + $0xd] sm:$0x1]
    %v276 = vld [vmem:[%s147] sm:$0xff]
    %278 = vset.pattern.permute.xlu0 0
    %279 = vperm.xlu0 %278, %v276
    %v280 = vpop.permute.xlu0 %279
    %v282 = vlaneseq
    %v283 = vshrl.u32 %v282, 7
    %v284 = vsub.s32 0, %v283
    %v285 = vrot.slane %v275, %v284
    %v286 = vmul.f32 %v280, %v285
    %v287 = vadd.f32 %v274, %v286
    %v288 = vld [vmem:[%s48 + $0xe] sm:$0x1]
    %v289 = vld [vmem:[%s161] sm:$0xff]
    %291 = vset.pattern.permute.xlu0 0
    %292 = vperm.xlu0 %291, %v289
    %v293 = vpop.permute.xlu0 %292
    %v295 = vlaneseq
    %v296 = vshrl.u32 %v295, 7
    %v297 = vsub.s32 0, %v296
    %v298 = vrot.slane %v288, %v297
    %v299 = vmul.f32 %v293, %v298
    %v300 = vadd.f32 %v287, %v299
    %v301 = vld [vmem:[%s2] sm:$0xff]
    %303 = vset.pattern.permute.xlu0 0
    %304 = vperm.xlu0 %303, %v301
    %v305 = vpop.permute.xlu0 %304
    %v307 = vadd.f32 %v300, %v305
    %v308 = vmax.f32 %v307, 0.0
    %309 = vst.msk [vmem:[#allocation2 + $0x18] sm:$0xff] %vm182, %v308
    %v310 = vld [vmem:[%s48 + $0xa] sm:$0x1]
    %v311 = vld [vmem:[%s1] sm:$0xff]
    %313 = vset.pattern.permute.xlu0 0
    %314 = vperm.xlu0 %313, %v311
    %v315 = vpop.permute.xlu0 %314
    %v317 = vlaneseq
    %v318 = vshrl.u32 %v317, 7
    %v319 = vsub.s32 0, %v318
    %v320 = vrot.slane %v310, %v319
    %v321 = vmul.f32 %v315, %v320
    %v322 = vadd.f32 %v321, 0.0
    %v323 = vld [vmem:[%s48 + $0xb] sm:$0x1]
    %v324 = vld [vmem:[%s63] sm:$0xff]
    %326 = vset.pattern.permute.xlu0 0
    %327 = vperm.xlu0 %326, %v324
    %v328 = vpop.permute.xlu0 %327
    %v330 = vlaneseq
    %v331 = vshrl.u32 %v330, 7
    %v332 = vsub.s32 0, %v331
    %v333 = vrot.slane %v323, %v332
    %v334 = vmul.f32 %v328, %v333
    %v335 = vadd.f32 %v322, %v334
    %v336 = vld [vmem:[%s48 + $0xc] sm:$0x1]
    %v337 = vld [vmem:[%s77] sm:$0xff]
    %339 = vset.pattern.permute.xlu0 0
    %340 = vperm.xlu0 %339, %v337
    %v341 = vpop.permute.xlu0 %340
    %v343 = vlaneseq
    %v344 = vshrl.u32 %v343, 7
    %v345 = vsub.s32 0, %v344
    %v346 = vrot.slane %v336, %v345
    %v347 = vmul.f32 %v341, %v346
    %v348 = vadd.f32 %v335, %v347
    %v349 = vld [vmem:[%s48 + $0xf] sm:$0x1]
    %v350 = vld [vmem:[%s91] sm:$0xff]
    %352 = vset.pattern.permute.xlu0 0
    %353 = vperm.xlu0 %352, %v350
    %v354 = vpop.permute.xlu0 %353
    %v356 = vlaneseq
    %v357 = vshrl.u32 %v356, 7
    %v358 = vsub.s32 0, %v357
    %v359 = vrot.slane %v349, %v358
    %v360 = vmul.f32 %v354, %v359
    %v361 = vadd.f32 %v348, %v360
    %v362 = vld [vmem:[%s48 + $0x10] sm:$0x1]
    %v363 = vld [vmem:[%s105] sm:$0xff]
    %365 = vset.pattern.permute.xlu0 0
    %366 = vperm.xlu0 %365, %v363
    %v367 = vpop.permute.xlu0 %366
    %v369 = vlaneseq
    %v370 = vshrl.u32 %v369, 7
    %v371 = vsub.s32 0, %v370
    %v372 = vrot.slane %v362, %v371
    %v373 = vmul.f32 %v367, %v372
    %v374 = vadd.f32 %v361, %v373
    %v375 = vld [vmem:[%s48 + $0x11] sm:$0x1]
    %v376 = vld [vmem:[%s119] sm:$0xff]
    %378 = vset.pattern.permute.xlu0 0
    %379 = vperm.xlu0 %378, %v376
    %v380 = vpop.permute.xlu0 %379
    %v382 = vlaneseq
    %v383 = vshrl.u32 %v382, 7
    %v384 = vsub.s32 0, %v383
    %v385 = vrot.slane %v375, %v384
    %v386 = vmul.f32 %v380, %v385
    %v387 = vadd.f32 %v374, %v386
    %v388 = vld [vmem:[%s48 + $0x14] sm:$0x1]
    %v389 = vld [vmem:[%s133] sm:$0xff]
    %391 = vset.pattern.permute.xlu0 0
    %392 = vperm.xlu0 %391, %v389
    %v393 = vpop.permute.xlu0 %392
    %v395 = vlaneseq
    %v396 = vshrl.u32 %v395, 7
    %v397 = vsub.s32 0, %v396
    %v398 = vrot.slane %v388, %v397
    %v399 = vmul.f32 %v393, %v398
    %v400 = vadd.f32 %v387, %v399
    %v401 = vld [vmem:[%s48 + $0x15] sm:$0x1]
    %v402 = vld [vmem:[%s147] sm:$0xff]
    %404 = vset.pattern.permute.xlu0 0
    %405 = vperm.xlu0 %404, %v402
    %v406 = vpop.permute.xlu0 %405
    %v408 = vlaneseq
    %v409 = vshrl.u32 %v408, 7
    %v410 = vsub.s32 0, %v409
    %v411 = vrot.slane %v401, %v410
    %v412 = vmul.f32 %v406, %v411
    %v413 = vadd.f32 %v400, %v412
    %v414 = vld [vmem:[%s48 + $0x16] sm:$0x1]
    %v415 = vld [vmem:[%s161] sm:$0xff]
    %417 = vset.pattern.permute.xlu0 0
    %418 = vperm.xlu0 %417, %v415
    %v419 = vpop.permute.xlu0 %418
    %v421 = vlaneseq
    %v422 = vshrl.u32 %v421, 7
    %v423 = vsub.s32 0, %v422
    %v424 = vrot.slane %v414, %v423
    %v425 = vmul.f32 %v419, %v424
    %v426 = vadd.f32 %v413, %v425
    %v427 = vld [vmem:[%s2] sm:$0xff]
    %429 = vset.pattern.permute.xlu0 0
    %430 = vperm.xlu0 %429, %v427
    %v431 = vpop.permute.xlu0 %430
    %v433 = vadd.f32 %v426, %v431
    %v434 = vmax.f32 %v433, 0.0
    %435 = vst.msk [vmem:[#allocation2 + $0x28] sm:$0xff] %vm182, %v434
    %v436 = vld [vmem:[%s48 + $0xc] sm:$0x1]
    %v437 = vld [vmem:[%s1] sm:$0xff]
    %439 = vset.pattern.permute.xlu0 0
    %440 = vperm.xlu0 %439, %v437
    %v441 = vpop.permute.xlu0 %440
    %v443 = vlaneseq
    %v444 = vshrl.u32 %v443, 7
    %v445 = vsub.s32 0, %v444
    %v446 = vrot.slane %v436, %v445
    %v447 = vmul.f32 %v441, %v446
    %v448 = vadd.f32 %v447, 0.0
    %v449 = vld [vmem:[%s48 + $0xd] sm:$0x1]
    %v450 = vld [vmem:[%s63] sm:$0xff]
    %452 = vset.pattern.permute.xlu0 0
    %453 = vperm.xlu0 %452, %v450
    %v454 = vpop.permute.xlu0 %453
    %v456 = vlaneseq
    %v457 = vshrl.u32 %v456, 7
    %v458 = vsub.s32 0, %v457
    %v459 = vrot.slane %v449, %v458
    %v460 = vmul.f32 %v454, %v459
    %v461 = vadd.f32 %v448, %v460
    %v462 = vld [vmem:[%s48 + $0xe] sm:$0x1]
    %v463 = vld [vmem:[%s77] sm:$0xff]
    %465 = vset.pattern.permute.xlu0 0
    %466 = vperm.xlu0 %465, %v463
    %v467 = vpop.permute.xlu0 %466
    %v469 = vlaneseq
    %v470 = vshrl.u32 %v469, 7
    %v471 = vsub.s32 0, %v470
    %v472 = vrot.slane %v462, %v471
    %v473 = vmul.f32 %v467, %v472
    %v474 = vadd.f32 %v461, %v473
    %v475 = vld [vmem:[%s48 + $0x11] sm:$0x1]
    %v476 = vld [vmem:[%s91] sm:$0xff]
    %478 = vset.pattern.permute.xlu0 0
    %479 = vperm.xlu0 %478, %v476
    %v480 = vpop.permute.xlu0 %479
    %v482 = vlaneseq
    %v483 = vshrl.u32 %v482, 7
    %v484 = vsub.s32 0, %v483
    %v485 = vrot.slane %v475, %v484
    %v486 = vmul.f32 %v480, %v485
    %v487 = vadd.f32 %v474, %v486
    %v488 = vld [vmem:[%s48 + $0x12] sm:$0x1]
    %v489 = vld [vmem:[%s105] sm:$0xff]
    %491 = vset.pattern.permute.xlu0 0
    %492 = vperm.xlu0 %491, %v489
    %v493 = vpop.permute.xlu0 %492
    %v495 = vlaneseq
    %v496 = vshrl.u32 %v495, 7
    %v497 = vsub.s32 0, %v496
    %v498 = vrot.slane %v488, %v497
    %v499 = vmul.f32 %v493, %v498
    %v500 = vadd.f32 %v487, %v499
    %v501 = vld [vmem:[%s48 + $0x13] sm:$0x1]
    %v502 = vld [vmem:[%s119] sm:$0xff]
    %504 = vset.pattern.permute.xlu0 0
    %505 = vperm.xlu0 %504, %v502
    %v506 = vpop.permute.xlu0 %505
    %v508 = vlaneseq
    %v509 = vshrl.u32 %v508, 7
    %v510 = vsub.s32 0, %v509
    %v511 = vrot.slane %v501, %v510
    %v512 = vmul.f32 %v506, %v511
    %v513 = vadd.f32 %v500, %v512
    %v514 = vld [vmem:[%s48 + $0x16] sm:$0x1]
    %v515 = vld [vmem:[%s133] sm:$0xff]
    %517 = vset.pattern.permute.xlu0 0
    %518 = vperm.xlu0 %517, %v515
    %v519 = vpop.permute.xlu0 %518
    %v521 = vlaneseq
    %v522 = vshrl.u32 %v521, 7
    %v523 = vsub.s32 0, %v522
    %v524 = vrot.slane %v514, %v523
    %v525 = vmul.f32 %v519, %v524
    %v526 = vadd.f32 %v513, %v525
    %v527 = vld [vmem:[%s48 + $0x17] sm:$0x1]
    %v528 = vld [vmem:[%s147] sm:$0xff]
    %530 = vset.pattern.permute.xlu0 0
    %531 = vperm.xlu0 %530, %v528
    %v532 = vpop.permute.xlu0 %531
    %v534 = vlaneseq
    %v535 = vshrl.u32 %v534, 7
    %v536 = vsub.s32 0, %v535
    %v537 = vrot.slane %v527, %v536
    %v538 = vmul.f32 %v532, %v537
    %v539 = vadd.f32 %v526, %v538
    %v540 = vld [vmem:[%s48 + $0x18] sm:$0x1]
    %v541 = vld [vmem:[%s161] sm:$0xff]
    %543 = vset.pattern.permute.xlu0 0
    %544 = vperm.xlu0 %543, %v541
    %v545 = vpop.permute.xlu0 %544
    %v547 = vlaneseq
    %v548 = vshrl.u32 %v547, 7
    %v549 = vsub.s32 0, %v548
    %v550 = vrot.slane %v540, %v549
    %v551 = vmul.f32 %v545, %v550
    %v552 = vadd.f32 %v539, %v551
    %v553 = vld [vmem:[%s2] sm:$0xff]
    %555 = vset.pattern.permute.xlu0 0
    %556 = vperm.xlu0 %555, %v553
    %v557 = vpop.permute.xlu0 %556
    %v559 = vadd.f32 %v552, %v557
    %v560 = vmax.f32 %v559, 0.0
    %561 = vst.msk [vmem:[#allocation2 + $0x38] sm:$0xff] %vm182, %v560
    %v562 = vld [vmem:[#allocation2 + $0x30] sm:$0xff]
    %v563 = vld [vmem:[#allocation2 + $0x38] sm:$0xff]
    %565 = vrot.lane.b32.xlu0 %v40, 123
    %v566 = vpop.permute.xlu0 %565
    %v568 = vmul.f32 %v562, %v566
    %v569 = vmul.f32 %v563, %v566
    %v570 = vld [vmem:[%s3] sm:$0xff]
    %v571 = vld [vmem:[%s3 + $0x8] sm:$0xff]
    %v572 = vld [vmem:[#allocation2 + $0x20] sm:$0xff]
    %v573 = vld [vmem:[#allocation2 + $0x28] sm:$0xff]
    %s574 = scalar_lea.vmem %s3, 16
    %v575 = vld [vmem:[%s574] sm:$0xff]
    %v576 = vld [vmem:[%s574 + $0x8] sm:$0xff]
    %579 = vrot.lane.b32.xlu0 %v572, 4
    %v580 = vpop.permute.xlu0 %579
    %581 = vrot.lane.b32.xlu0 %v573, 4
    %v582 = vpop.permute.xlu0 %581
    %vm583 = vcmask 31744
    %v584 = vsel %vm583, %v580, %v582
    %vm586 = vcmask 64512
    %v588 = vsel %vm586, %v575, 0
    %v591 = vsel %vm586, %v576, 0
    %593 = vmatprep.subr.mxu0 0.0
    %594 = vmatpush1.msra.mxu0 0.0
    %595 = vmatprep.subr.mxu0 0.0
    %596 = vmatpush1.msra.mxu0 0.0
    %597 = vmatprep.subr.mxu0 0.0
    %598 = vmatpush1.msra.mxu0 0.0
    %599 = vmatprep.subr.mxu0 0.0
    %600 = vmatpush1.msra.mxu0 0.0
    %601 = vmatprep.subr.mxu0 0.0
    %602 = vmatpush1.msra.mxu0 0.0
    %603 = vmatprep.subr.mxu0 0.0
    %604 = vmatpush1.msra.mxu0 0.0
    %605 = vmatprep.subr.mxu0 0.0
    %606 = vmatpush1.msra.mxu0 0.0
    %607 = vmatprep.subr.mxu0 0.0
    %608 = vmatpush1.msra.mxu0 0.0
    %609 = vmatprep.subr.mxu0 0.0
    %610 = vmatpush1.msra.mxu0 0.0
    %611 = vmatprep.subr.mxu0 0.0
    %612 = vmatpush1.msra.mxu0 0.0
    %613 = vmatprep.subr.mxu0 0.0
    %614 = vmatpush1.msra.mxu0 0.0
    %615 = vmatprep.subr.mxu0 0.0
    %616 = vmatpush1.msra.mxu0 0.0
    %617 = vmatprep.subr.mxu0 0.0
    %618 = vmatpush1.msra.mxu0 0.0
    %619 = vmatprep.subr.mxu0 0.0
    %620 = vmatpush1.msra.mxu0 0.0
    %621 = vmatprep.subr.mxu0 0.0
    %622 = vmatpush1.msra.mxu0 0.0
    %623 = vmatprep.subr.mxu0 0.0
    %v624 = vand.u32 %v584, 4294901760
    %625 = vmatpush1.msra.mxu0 %v624
    %626 = vmatprep.subr.mxu0 0.0
    %627 = vmatpush2.msra.mxu0 0.0
    %628 = vmatprep.subr.mxu0 0.0
    %629 = vmatpush2.msra.mxu0 0.0
    %630 = vmatprep.subr.mxu0 0.0
    %631 = vmatpush2.msra.mxu0 0.0
    %632 = vmatprep.subr.mxu0 0.0
    %633 = vmatpush2.msra.mxu0 0.0
    %634 = vmatprep.subr.mxu0 0.0
    %635 = vmatpush2.msra.mxu0 0.0
    %636 = vmatprep.subr.mxu0 0.0
    %637 = vmatpush2.msra.mxu0 0.0
    %638 = vmatprep.subr.mxu0 0.0
    %639 = vmatpush2.msra.mxu0 0.0
    %640 = vmatprep.subr.mxu0 0.0
    %641 = vmatpush2.msra.mxu0 0.0
    %642 = vmatprep.subr.mxu0 0.0
    %643 = vmatpush2.msra.mxu0 0.0
    %644 = vmatprep.subr.mxu0 0.0
    %645 = vmatpush2.msra.mxu0 0.0
    %646 = vmatprep.subr.mxu0 0.0
    %647 = vmatpush2.msra.mxu0 0.0
    %648 = vmatprep.subr.mxu0 0.0
    %649 = vmatpush2.msra.mxu0 0.0
    %650 = vmatprep.subr.mxu0 0.0
    %651 = vmatpush2.msra.mxu0 0.0
    %652 = vmatprep.subr.mxu0 0.0
    %653 = vmatpush2.msra.mxu0 0.0
    %654 = vmatprep.subr.mxu0 0.0
    %655 = vmatpush2.msra.mxu0 0.0
    %656 = vmatprep.subr.mxu0 0.0
    %657 = vmatpush2.msra.mxu0 0.0
    %658 = vmatprep.mubr.f32.mxu0 0.0
    %v659 = vand.u32 %v588, 4294901760
    %v660 = vsub.f32 %v588, %v659
    %v661 = vand.u32 %v660, 4294901760
    %v662 = vsub.f32 %v660, %v661
    %v663 = vand.u32 %v662, 4294901760
    %664 = vmatmul.mubr.f32.gmra.mxu0 %v663
    %v665 = vpop.f32.mrf.mxu0
    %v666 = vadd.f32 0.0, %v665
    %v667 = vpop.f32.mrf.mxu0
    %668 = vmatprep.mubr.f32.mxu0 0.0
    %v669 = vand.u32 %v591, 4294901760
    %v670 = vsub.f32 %v591, %v669
    %v671 = vand.u32 %v670, 4294901760
    %v672 = vsub.f32 %v670, %v671
    %v673 = vand.u32 %v672, 4294901760
    %674 = vmatmul.mubr.f32.gmra.mxu0 %v673
    %v675 = vpop.f32.mrf.mxu0
    %v676 = vadd.f32 0.0, %v675
    %v677 = vpop.f32.mrf.mxu0
    %678 = vdwg.mxu0
    %679 = vmatprep.subr.mxu0 0.0
    %680 = vmatpush1.msra.mxu0 0.0
    %681 = vmatprep.subr.mxu0 0.0
    %682 = vmatpush1.msra.mxu0 0.0
    %683 = vmatprep.subr.mxu0 0.0
    %684 = vmatpush1.msra.mxu0 0.0
    %685 = vmatprep.subr.mxu0 0.0
    %686 = vmatpush1.msra.mxu0 0.0
    %687 = vmatprep.subr.mxu0 0.0
    %688 = vmatpush1.msra.mxu0 0.0
    %689 = vmatprep.subr.mxu0 0.0
    %690 = vmatpush1.msra.mxu0 0.0
    %691 = vmatprep.subr.mxu0 0.0
    %692 = vmatpush1.msra.mxu0 0.0
    %693 = vmatprep.subr.mxu0 0.0
    %694 = vmatpush1.msra.mxu0 0.0
    %695 = vmatprep.subr.mxu0 0.0
    %696 = vmatpush1.msra.mxu0 0.0
    %697 = vmatprep.subr.mxu0 0.0
    %698 = vmatpush1.msra.mxu0 0.0
    %699 = vmatprep.subr.mxu0 0.0
    %700 = vmatpush1.msra.mxu0 0.0
    %701 = vmatprep.subr.mxu0 0.0
    %702 = vmatpush1.msra.mxu0 0.0
    %703 = vmatprep.subr.mxu0 0.0
    %704 = vmatpush1.msra.mxu0 0.0
    %705 = vmatprep.subr.mxu0 0.0
    %706 = vmatpush1.msra.mxu0 0.0
    %707 = vmatprep.subr.mxu0 0.0
    %708 = vmatpush1.msra.mxu0 0.0
    %709 = vmatprep.subr.mxu0 0.0
    %v710 = vand.u32 %v584, 4294901760
    %v711 = vsub.f32 %v584, %v710
    %v712 = vand.u32 %v711, 4294901760
    %v713 = vsub.f32 %v711, %v712
    %v714 = vand.u32 %v713, 4294901760
    %715 = vmatpush1.msra.mxu0 %v714
    %716 = vmatprep.subr.mxu0 0.0
    %717 = vmatpush2.msra.mxu0 0.0
    %718 = vmatprep.subr.mxu0 0.0
    %719 = vmatpush2.msra.mxu0 0.0
    %720 = vmatprep.subr.mxu0 0.0
    %721 = vmatpush2.msra.mxu0 0.0
    %722 = vmatprep.subr.mxu0 0.0
    %723 = vmatpush2.msra.mxu0 0.0
    %724 = vmatprep.subr.mxu0 0.0
    %725 = vmatpush2.msra.mxu0 0.0
    %726 = vmatprep.subr.mxu0 0.0
    %727 = vmatpush2.msra.mxu0 0.0
    %728 = vmatprep.subr.mxu0 0.0
    %729 = vmatpush2.msra.mxu0 0.0
    %730 = vmatprep.subr.mxu0 0.0
    %731 = vmatpush2.msra.mxu0 0.0
    %732 = vmatprep.subr.mxu0 0.0
    %733 = vmatpush2.msra.mxu0 0.0
    %734 = vmatprep.subr.mxu0 0.0
    %735 = vmatpush2.msra.mxu0 0.0
    %736 = vmatprep.subr.mxu0 0.0
    %737 = vmatpush2.msra.mxu0 0.0
    %738 = vmatprep.subr.mxu0 0.0
    %739 = vmatpush2.msra.mxu0 0.0
    %740 = vmatprep.subr.mxu0 0.0
    %741 = vmatpush2.msra.mxu0 0.0
    %742 = vmatprep.subr.mxu0 0.0
    %743 = vmatpush2.msra.mxu0 0.0
    %744 = vmatprep.subr.mxu0 0.0
    %745 = vmatpush2.msra.mxu0 0.0
    %746 = vmatprep.subr.mxu0 0.0
    %747 = vmatpush2.msra.mxu0 0.0
    %748 = vmatprep.mubr.f32.mxu0 0.0
    %v749 = vand.u32 %v588, 4294901760
    %750 = vmatmul.mubr.f32.gmra.mxu0 %v749
    %v751 = vpop.f32.mrf.mxu0
    %v752 = vadd.f32 %v666, %v751
    %v753 = vpop.f32.mrf.mxu0
    %754 = vmatprep.mubr.f32.mxu0 0.0
    %v755 = vand.u32 %v591, 4294901760
    %756 = vmatmul.mubr.f32.gmra.mxu0 %v755
    %v757 = vpop.f32.mrf.mxu0
    %v758 = vadd.f32 %v676, %v757
    %v759 = vpop.f32.mrf.mxu0
    %760 = vdwg.mxu0
    %761 = vmatprep.subr.mxu0 0.0
    %762 = vmatpush1.msra.mxu0 0.0
    %763 = vmatprep.subr.mxu0 0.0
    %764 = vmatpush1.msra.mxu0 0.0
    %765 = vmatprep.subr.mxu0 0.0
    %766 = vmatpush1.msra.mxu0 0.0
    %767 = vmatprep.subr.mxu0 0.0
    %768 = vmatpush1.msra.mxu0 0.0
    %769 = vmatprep.subr.mxu0 0.0
    %770 = vmatpush1.msra.mxu0 0.0
    %771 = vmatprep.subr.mxu0 0.0
    %772 = vmatpush1.msra.mxu0 0.0
    %773 = vmatprep.subr.mxu0 0.0
    %774 = vmatpush1.msra.mxu0 0.0
    %775 = vmatprep.subr.mxu0 0.0
    %776 = vmatpush1.msra.mxu0 0.0
    %777 = vmatprep.subr.mxu0 0.0
    %778 = vmatpush1.msra.mxu0 0.0
    %779 = vmatprep.subr.mxu0 0.0
    %780 = vmatpush1.msra.mxu0 0.0
    %781 = vmatprep.subr.mxu0 0.0
    %782 = vmatpush1.msra.mxu0 0.0
    %783 = vmatprep.subr.mxu0 0.0
    %784 = vmatpush1.msra.mxu0 0.0
    %785 = vmatprep.subr.mxu0 0.0
    %786 = vmatpush1.msra.mxu0 0.0
    %787 = vmatprep.subr.mxu0 0.0
    %788 = vmatpush1.msra.mxu0 0.0
    %789 = vmatprep.subr.mxu0 0.0
    %790 = vmatpush1.msra.mxu0 0.0
    %791 = vmatprep.subr.mxu0 0.0
    %v792 = vand.u32 %v584, 4294901760
    %v793 = vsub.f32 %v584, %v792
    %794 = vmatpush1.msra.mxu0 %v793
    %795 = vmatprep.subr.mxu0 0.0
    %796 = vmatpush2.msra.mxu0 0.0
    %797 = vmatprep.subr.mxu0 0.0
    %798 = vmatpush2.msra.mxu0 0.0
    %799 = vmatprep.subr.mxu0 0.0
    %800 = vmatpush2.msra.mxu0 0.0
    %801 = vmatprep.subr.mxu0 0.0
    %802 = vmatpush2.msra.mxu0 0.0
    %803 = vmatprep.subr.mxu0 0.0
    %804 = vmatpush2.msra.mxu0 0.0
    %805 = vmatprep.subr.mxu0 0.0
    %806 = vmatpush2.msra.mxu0 0.0
    %807 = vmatprep.subr.mxu0 0.0
    %808 = vmatpush2.msra.mxu0 0.0
    %809 = vmatprep.subr.mxu0 0.0
    %810 = vmatpush2.msra.mxu0 0.0
    %811 = vmatprep.subr.mxu0 0.0
    %812 = vmatpush2.msra.mxu0 0.0
    %813 = vmatprep.subr.mxu0 0.0
    %814 = vmatpush2.msra.mxu0 0.0
    %815 = vmatprep.subr.mxu0 0.0
    %816 = vmatpush2.msra.mxu0 0.0
    %817 = vmatprep.subr.mxu0 0.0
    %818 = vmatpush2.msra.mxu0 0.0
    %819 = vmatprep.subr.mxu0 0.0
    %820 = vmatpush2.msra.mxu0 0.0
    %821 = vmatprep.subr.mxu0 0.0
    %822 = vmatpush2.msra.mxu0 0.0
    %823 = vmatprep.subr.mxu0 0.0
    %824 = vmatpush2.msra.mxu0 0.0
    %825 = vmatprep.subr.mxu0 0.0
    %826 = vmatpush2.msra.mxu0 0.0
    %827 = vmatprep.mubr.f32.mxu0 0.0
    %v828 = vand.u32 %v588, 4294901760
    %v829 = vsub.f32 %v588, %v828
    %830 = vmatmul.mubr.f32.gmra.mxu0 %v829
    %v831 = vpop.f32.mrf.mxu0
    %v832 = vadd.f32 %v752, %v831
    %v833 = vpop.f32.mrf.mxu0
    %834 = vmatprep.mubr.f32.mxu0 0.0
    %v835 = vand.u32 %v591, 4294901760
    %v836 = vsub.f32 %v591, %v835
    %837 = vmatmul.mubr.f32.gmra.mxu0 %v836
    %v838 = vpop.f32.mrf.mxu0
    %v839 = vadd.f32 %v758, %v838
    %v840 = vpop.f32.mrf.mxu0
    %841 = vdwg.mxu0
    %842 = vmatprep.subr.mxu0 0.0
    %843 = vmatpush1.msra.mxu0 0.0
    %844 = vmatprep.subr.mxu0 0.0
    %845 = vmatpush1.msra.mxu0 0.0
    %846 = vmatprep.subr.mxu0 0.0
    %847 = vmatpush1.msra.mxu0 0.0
    %848 = vmatprep.subr.mxu0 0.0
    %849 = vmatpush1.msra.mxu0 0.0
    %850 = vmatprep.subr.mxu0 0.0
    %851 = vmatpush1.msra.mxu0 0.0
    %852 = vmatprep.subr.mxu0 0.0
    %853 = vmatpush1.msra.mxu0 0.0
    %854 = vmatprep.subr.mxu0 0.0
    %855 = vmatpush1.msra.mxu0 0.0
    %856 = vmatprep.subr.mxu0 0.0
    %857 = vmatpush1.msra.mxu0 0.0
    %858 = vmatprep.subr.mxu0 0.0
    %859 = vmatpush1.msra.mxu0 0.0
    %860 = vmatprep.subr.mxu0 0.0
    %861 = vmatpush1.msra.mxu0 0.0
    %862 = vmatprep.subr.mxu0 0.0
    %863 = vmatpush1.msra.mxu0 0.0
    %864 = vmatprep.subr.mxu0 0.0
    %865 = vmatpush1.msra.mxu0 0.0
    %866 = vmatprep.subr.mxu0 0.0
    %867 = vmatpush1.msra.mxu0 0.0
    %868 = vmatprep.subr.mxu0 0.0
    %869 = vmatpush1.msra.mxu0 0.0
    %870 = vmatprep.subr.mxu0 0.0
    %871 = vmatpush1.msra.mxu0 0.0
    %872 = vmatprep.subr.mxu0 0.0
    %v873 = vand.u32 %v584, 4294901760
    %874 = vmatpush1.msra.mxu0 %v873
    %875 = vmatprep.subr.mxu0 0.0
    %876 = vmatpush2.msra.mxu0 0.0
    %877 = vmatprep.subr.mxu0 0.0
    %878 = vmatpush2.msra.mxu0 0.0
    %879 = vmatprep.subr.mxu0 0.0
    %880 = vmatpush2.msra.mxu0 0.0
    %881 = vmatprep.subr.mxu0 0.0
    %882 = vmatpush2.msra.mxu0 0.0
    %883 = vmatprep.subr.mxu0 0.0
    %884 = vmatpush2.msra.mxu0 0.0
    %885 = vmatprep.subr.mxu0 0.0
    %886 = vmatpush2.msra.mxu0 0.0
    %887 = vmatprep.subr.mxu0 0.0
    %888 = vmatpush2.msra.mxu0 0.0
    %889 = vmatprep.subr.mxu0 0.0
    %890 = vmatpush2.msra.mxu0 0.0
    %891 = vmatprep.subr.mxu0 0.0
    %892 = vmatpush2.msra.mxu0 0.0
    %893 = vmatprep.subr.mxu0 0.0
    %894 = vmatpush2.msra.mxu0 0.0
    %895 = vmatprep.subr.mxu0 0.0
    %896 = vmatpush2.msra.mxu0 0.0
    %897 = vmatprep.subr.mxu0 0.0
    %898 = vmatpush2.msra.mxu0 0.0
    %899 = vmatprep.subr.mxu0 0.0
    %900 = vmatpush2.msra.mxu0 0.0
    %901 = vmatprep.subr.mxu0 0.0
    %902 = vmatpush2.msra.mxu0 0.0
    %903 = vmatprep.subr.mxu0 0.0
    %904 = vmatpush2.msra.mxu0 0.0
    %905 = vmatprep.subr.mxu0 0.0
    %906 = vmatpush2.msra.mxu0 0.0
    %907 = vmatprep.mubr.f32.mxu0 0.0
    %v908 = vand.u32 %v588, 4294901760
    %v909 = vsub.f32 %v588, %v908
    %v910 = vand.u32 %v909, 4294901760
    %911 = vmatmul.mubr.f32.gmra.mxu0 %v910
    %v912 = vpop.f32.mrf.mxu0
    %v913 = vadd.f32 %v832, %v912
    %v914 = vpop.f32.mrf.mxu0
    %915 = vmatprep.mubr.f32.mxu0 0.0
    %v916 = vand.u32 %v591, 4294901760
    %v917 = vsub.f32 %v591, %v916
    %v918 = vand.u32 %v917, 4294901760
    %919 = vmatmul.mubr.f32.gmra.mxu0 %v918
    %v920 = vpop.f32.mrf.mxu0
    %v921 = vadd.f32 %v839, %v920
    %v922 = vpop.f32.mrf.mxu0
    %923 = vdwg.mxu0
    %924 = vmatprep.subr.mxu0 0.0
    %925 = vmatpush1.msra.mxu0 0.0
    %926 = vmatprep.subr.mxu0 0.0
    %927 = vmatpush1.msra.mxu0 0.0
    %928 = vmatprep.subr.mxu0 0.0
    %929 = vmatpush1.msra.mxu0 0.0
    %930 = vmatprep.subr.mxu0 0.0
    %931 = vmatpush1.msra.mxu0 0.0
    %932 = vmatprep.subr.mxu0 0.0
    %933 = vmatpush1.msra.mxu0 0.0
    %934 = vmatprep.subr.mxu0 0.0
    %935 = vmatpush1.msra.mxu0 0.0
    %936 = vmatprep.subr.mxu0 0.0
    %937 = vmatpush1.msra.mxu0 0.0
    %938 = vmatprep.subr.mxu0 0.0
    %939 = vmatpush1.msra.mxu0 0.0
    %940 = vmatprep.subr.mxu0 0.0
    %941 = vmatpush1.msra.mxu0 0.0
    %942 = vmatprep.subr.mxu0 0.0
    %943 = vmatpush1.msra.mxu0 0.0
    %944 = vmatprep.subr.mxu0 0.0
    %945 = vmatpush1.msra.mxu0 0.0
    %946 = vmatprep.subr.mxu0 0.0
    %947 = vmatpush1.msra.mxu0 0.0
    %948 = vmatprep.subr.mxu0 0.0
    %949 = vmatpush1.msra.mxu0 0.0
    %950 = vmatprep.subr.mxu0 0.0
    %951 = vmatpush1.msra.mxu0 0.0
    %952 = vmatprep.subr.mxu0 0.0
    %953 = vmatpush1.msra.mxu0 0.0
    %954 = vmatprep.subr.mxu0 0.0
    %v955 = vand.u32 %v584, 4294901760
    %v956 = vsub.f32 %v584, %v955
    %v957 = vand.u32 %v956, 4294901760
    %958 = vmatpush1.msra.mxu0 %v957
    %959 = vmatprep.subr.mxu0 0.0
    %960 = vmatpush2.msra.mxu0 0.0
    %961 = vmatprep.subr.mxu0 0.0
    %962 = vmatpush2.msra.mxu0 0.0
    %963 = vmatprep.subr.mxu0 0.0
    %964 = vmatpush2.msra.mxu0 0.0
    %965 = vmatprep.subr.mxu0 0.0
    %966 = vmatpush2.msra.mxu0 0.0
    %967 = vmatprep.subr.mxu0 0.0
    %968 = vmatpush2.msra.mxu0 0.0
    %969 = vmatprep.subr.mxu0 0.0
    %970 = vmatpush2.msra.mxu0 0.0
    %971 = vmatprep.subr.mxu0 0.0
    %972 = vmatpush2.msra.mxu0 0.0
    %973 = vmatprep.subr.mxu0 0.0
    %974 = vmatpush2.msra.mxu0 0.0
    %975 = vmatprep.subr.mxu0 0.0
    %976 = vmatpush2.msra.mxu0 0.0
    %977 = vmatprep.subr.mxu0 0.0
    %978 = vmatpush2.msra.mxu0 0.0
    %979 = vmatprep.subr.mxu0 0.0
    %980 = vmatpush2.msra.mxu0 0.0
    %981 = vmatprep.subr.mxu0 0.0
    %982 = vmatpush2.msra.mxu0 0.0
    %983 = vmatprep.subr.mxu0 0.0
    %984 = vmatpush2.msra.mxu0 0.0
    %985 = vmatprep.subr.mxu0 0.0
    %986 = vmatpush2.msra.mxu0 0.0
    %987 = vmatprep.subr.mxu0 0.0
    %988 = vmatpush2.msra.mxu0 0.0
    %989 = vmatprep.subr.mxu0 0.0
    %990 = vmatpush2.msra.mxu0 0.0
    %991 = vmatprep.mubr.f32.mxu0 0.0
    %v992 = vand.u32 %v588, 4294901760
    %993 = vmatmul.mubr.f32.gmra.mxu0 %v992
    %v994 = vpop.f32.mrf.mxu0
    %v995 = vadd.f32 %v913, %v994
    %v996 = vpop.f32.mrf.mxu0
    %997 = vmatprep.mubr.f32.mxu0 0.0
    %v998 = vand.u32 %v591, 4294901760
    %999 = vmatmul.mubr.f32.gmra.mxu0 %v998
    %v1000 = vpop.f32.mrf.mxu0
    %v1001 = vadd.f32 %v921, %v1000
    %v1002 = vpop.f32.mrf.mxu0
    %1003 = vdwg.mxu0
    %1004 = vmatprep.subr.mxu0 0.0
    %1005 = vmatpush1.msra.mxu0 0.0
    %1006 = vmatprep.subr.mxu0 0.0
    %1007 = vmatpush1.msra.mxu0 0.0
    %1008 = vmatprep.subr.mxu0 0.0
    %1009 = vmatpush1.msra.mxu0 0.0
    %1010 = vmatprep.subr.mxu0 0.0
    %1011 = vmatpush1.msra.mxu0 0.0
    %1012 = vmatprep.subr.mxu0 0.0
    %1013 = vmatpush1.msra.mxu0 0.0
    %1014 = vmatprep.subr.mxu0 0.0
    %1015 = vmatpush1.msra.mxu0 0.0
    %1016 = vmatprep.subr.mxu0 0.0
    %1017 = vmatpush1.msra.mxu0 0.0
    %1018 = vmatprep.subr.mxu0 0.0
    %1019 = vmatpush1.msra.mxu0 0.0
    %1020 = vmatprep.subr.mxu0 0.0
    %1021 = vmatpush1.msra.mxu0 0.0
    %1022 = vmatprep.subr.mxu0 0.0
    %1023 = vmatpush1.msra.mxu0 0.0
    %1024 = vmatprep.subr.mxu0 0.0
    %1025 = vmatpush1.msra.mxu0 0.0
    %1026 = vmatprep.subr.mxu0 0.0
    %1027 = vmatpush1.msra.mxu0 0.0
    %1028 = vmatprep.subr.mxu0 0.0
    %1029 = vmatpush1.msra.mxu0 0.0
    %1030 = vmatprep.subr.mxu0 0.0
    %1031 = vmatpush1.msra.mxu0 0.0
    %1032 = vmatprep.subr.mxu0 0.0
    %1033 = vmatpush1.msra.mxu0 0.0
    %1034 = vmatprep.subr.mxu0 0.0
    %v1035 = vand.u32 %v584, 4294901760
    %1036 = vmatpush1.msra.mxu0 %v1035
    %1037 = vmatprep.subr.mxu0 0.0
    %1038 = vmatpush2.msra.mxu0 0.0
    %1039 = vmatprep.subr.mxu0 0.0
    %1040 = vmatpush2.msra.mxu0 0.0
    %1041 = vmatprep.subr.mxu0 0.0
    %1042 = vmatpush2.msra.mxu0 0.0
    %1043 = vmatprep.subr.mxu0 0.0
    %1044 = vmatpush2.msra.mxu0 0.0
    %1045 = vmatprep.subr.mxu0 0.0
    %1046 = vmatpush2.msra.mxu0 0.0
    %1047 = vmatprep.subr.mxu0 0.0
    %1048 = vmatpush2.msra.mxu0 0.0
    %1049 = vmatprep.subr.mxu0 0.0
    %1050 = vmatpush2.msra.mxu0 0.0
    %1051 = vmatprep.subr.mxu0 0.0
    %1052 = vmatpush2.msra.mxu0 0.0
    %1053 = vmatprep.subr.mxu0 0.0
    %1054 = vmatpush2.msra.mxu0 0.0
    %1055 = vmatprep.subr.mxu0 0.0
    %1056 = vmatpush2.msra.mxu0 0.0
    %1057 = vmatprep.subr.mxu0 0.0
    %1058 = vmatpush2.msra.mxu0 0.0
    %1059 = vmatprep.subr.mxu0 0.0
    %1060 = vmatpush2.msra.mxu0 0.0
    %1061 = vmatprep.subr.mxu0 0.0
    %1062 = vmatpush2.msra.mxu0 0.0
    %1063 = vmatprep.subr.mxu0 0.0
    %1064 = vmatpush2.msra.mxu0 0.0
    %1065 = vmatprep.subr.mxu0 0.0
    %1066 = vmatpush2.msra.mxu0 0.0
    %1067 = vmatprep.subr.mxu0 0.0
    %1068 = vmatpush2.msra.mxu0 0.0
    %1069 = vmatprep.mubr.f32.mxu0 0.0
    %v1070 = vand.u32 %v588, 4294901760
    %1071 = vmatmul.mubr.f32.gmra.mxu0 %v1070
    %v1072 = vpop.f32.mrf.mxu0
    %v1073 = vadd.f32 %v995, %v1072
    %v1074 = vpop.f32.mrf.mxu0
    %1075 = vmatprep.mubr.f32.mxu0 0.0
    %v1076 = vand.u32 %v591, 4294901760
    %1077 = vmatmul.mubr.f32.gmra.mxu0 %v1076
    %v1078 = vpop.f32.mrf.mxu0
    %v1079 = vadd.f32 %v1001, %v1078
    %v1080 = vpop.f32.mrf.mxu0
    %1081 = vdwg.mxu0
    %1084 = vrot.lane.b32.xlu0 %v568, 5
    %v1085 = vpop.permute.xlu0 %1084
    %1086 = vrot.lane.b32.xlu0 %v569, 5
    %v1087 = vpop.permute.xlu0 %1086
    %vm1088 = vcmask 39936
    %v1089 = vsel %vm1088, %v1085, %v1087
    %v1092 = vsel %vm586, %v570, 0
    %v1095 = vsel %vm586, %v571, 0
    %1097 = vmatprep.subr.mxu0 0.0
    %1098 = vmatpush1.msra.mxu0 0.0
    %1099 = vmatprep.subr.mxu0 0.0
    %1100 = vmatpush1.msra.mxu0 0.0
    %1101 = vmatprep.subr.mxu0 0.0
    %1102 = vmatpush1.msra.mxu0 0.0
    %1103 = vmatprep.subr.mxu0 0.0
    %1104 = vmatpush1.msra.mxu0 0.0
    %1105 = vmatprep.subr.mxu0 0.0
    %1106 = vmatpush1.msra.mxu0 0.0
    %1107 = vmatprep.subr.mxu0 0.0
    %1108 = vmatpush1.msra.mxu0 0.0
    %1109 = vmatprep.subr.mxu0 0.0
    %1110 = vmatpush1.msra.mxu0 0.0
    %1111 = vmatprep.subr.mxu0 0.0
    %1112 = vmatpush1.msra.mxu0 0.0
    %1113 = vmatprep.subr.mxu0 0.0
    %1114 = vmatpush1.msra.mxu0 0.0
    %1115 = vmatprep.subr.mxu0 0.0
    %1116 = vmatpush1.msra.mxu0 0.0
    %1117 = vmatprep.subr.mxu0 0.0
    %1118 = vmatpush1.msra.mxu0 0.0
    %1119 = vmatprep.subr.mxu0 0.0
    %1120 = vmatpush1.msra.mxu0 0.0
    %1121 = vmatprep.subr.mxu0 0.0
    %1122 = vmatpush1.msra.mxu0 0.0
    %1123 = vmatprep.subr.mxu0 0.0
    %1124 = vmatpush1.msra.mxu0 0.0
    %1125 = vmatprep.subr.mxu0 0.0
    %1126 = vmatpush1.msra.mxu0 0.0
    %1127 = vmatprep.subr.mxu0 0.0
    %v1128 = vand.u32 %v1089, 4294901760
    %1129 = vmatpush1.msra.mxu0 %v1128
    %1130 = vmatprep.subr.mxu0 0.0
    %1131 = vmatpush2.msra.mxu0 0.0
    %1132 = vmatprep.subr.mxu0 0.0
    %1133 = vmatpush2.msra.mxu0 0.0
    %1134 = vmatprep.subr.mxu0 0.0
    %1135 = vmatpush2.msra.mxu0 0.0
    %1136 = vmatprep.subr.mxu0 0.0
    %1137 = vmatpush2.msra.mxu0 0.0
    %1138 = vmatprep.subr.mxu0 0.0
    %1139 = vmatpush2.msra.mxu0 0.0
    %1140 = vmatprep.subr.mxu0 0.0
    %1141 = vmatpush2.msra.mxu0 0.0
    %1142 = vmatprep.subr.mxu0 0.0
    %1143 = vmatpush2.msra.mxu0 0.0
    %1144 = vmatprep.subr.mxu0 0.0
    %1145 = vmatpush2.msra.mxu0 0.0
    %1146 = vmatprep.subr.mxu0 0.0
    %1147 = vmatpush2.msra.mxu0 0.0
    %1148 = vmatprep.subr.mxu0 0.0
    %1149 = vmatpush2.msra.mxu0 0.0
    %1150 = vmatprep.subr.mxu0 0.0
    %1151 = vmatpush2.msra.mxu0 0.0
    %1152 = vmatprep.subr.mxu0 0.0
    %1153 = vmatpush2.msra.mxu0 0.0
    %1154 = vmatprep.subr.mxu0 0.0
    %1155 = vmatpush2.msra.mxu0 0.0
    %1156 = vmatprep.subr.mxu0 0.0
    %1157 = vmatpush2.msra.mxu0 0.0
    %1158 = vmatprep.subr.mxu0 0.0
    %1159 = vmatpush2.msra.mxu0 0.0
    %1160 = vmatprep.subr.mxu0 0.0
    %1161 = vmatpush2.msra.mxu0 0.0
    %1162 = vmatprep.mubr.f32.mxu0 0.0
    %v1163 = vand.u32 %v1092, 4294901760
    %v1164 = vsub.f32 %v1092, %v1163
    %v1165 = vand.u32 %v1164, 4294901760
    %v1166 = vsub.f32 %v1164, %v1165
    %v1167 = vand.u32 %v1166, 4294901760
    %1168 = vmatmul.mubr.f32.gmra.mxu0 %v1167
    %v1169 = vpop.f32.mrf.mxu0
    %v1170 = vadd.f32 %v1073, %v1169
    %v1171 = vpop.f32.mrf.mxu0
    %1172 = vmatprep.mubr.f32.mxu0 0.0
    %v1173 = vand.u32 %v1095, 4294901760
    %v1174 = vsub.f32 %v1095, %v1173
    %v1175 = vand.u32 %v1174, 4294901760
    %v1176 = vsub.f32 %v1174, %v1175
    %v1177 = vand.u32 %v1176, 4294901760
    %1178 = vmatmul.mubr.f32.gmra.mxu0 %v1177
    %v1179 = vpop.f32.mrf.mxu0
    %v1180 = vadd.f32 %v1079, %v1179
    %v1181 = vpop.f32.mrf.mxu0
    %1182 = vdwg.mxu0
    %1183 = vmatprep.subr.mxu0 0.0
    %1184 = vmatpush1.msra.mxu0 0.0
    %1185 = vmatprep.subr.mxu0 0.0
    %1186 = vmatpush1.msra.mxu0 0.0
    %1187 = vmatprep.subr.mxu0 0.0
    %1188 = vmatpush1.msra.mxu0 0.0
    %1189 = vmatprep.subr.mxu0 0.0
    %1190 = vmatpush1.msra.mxu0 0.0
    %1191 = vmatprep.subr.mxu0 0.0
    %1192 = vmatpush1.msra.mxu0 0.0
    %1193 = vmatprep.subr.mxu0 0.0
    %1194 = vmatpush1.msra.mxu0 0.0
    %1195 = vmatprep.subr.mxu0 0.0
    %1196 = vmatpush1.msra.mxu0 0.0
    %1197 = vmatprep.subr.mxu0 0.0
    %1198 = vmatpush1.msra.mxu0 0.0
    %1199 = vmatprep.subr.mxu0 0.0
    %1200 = vmatpush1.msra.mxu0 0.0
    %1201 = vmatprep.subr.mxu0 0.0
    %1202 = vmatpush1.msra.mxu0 0.0
    %1203 = vmatprep.subr.mxu0 0.0
    %1204 = vmatpush1.msra.mxu0 0.0
    %1205 = vmatprep.subr.mxu0 0.0
    %1206 = vmatpush1.msra.mxu0 0.0
    %1207 = vmatprep.subr.mxu0 0.0
    %1208 = vmatpush1.msra.mxu0 0.0
    %1209 = vmatprep.subr.mxu0 0.0
    %1210 = vmatpush1.msra.mxu0 0.0
    %1211 = vmatprep.subr.mxu0 0.0
    %1212 = vmatpush1.msra.mxu0 0.0
    %1213 = vmatprep.subr.mxu0 0.0
    %v1214 = vand.u32 %v1089, 4294901760
    %v1215 = vsub.f32 %v1089, %v1214
    %v1216 = vand.u32 %v1215, 4294901760
    %v1217 = vsub.f32 %v1215, %v1216
    %v1218 = vand.u32 %v1217, 4294901760
    %1219 = vmatpush1.msra.mxu0 %v1218
    %1220 = vmatprep.subr.mxu0 0.0
    %1221 = vmatpush2.msra.mxu0 0.0
    %1222 = vmatprep.subr.mxu0 0.0
    %1223 = vmatpush2.msra.mxu0 0.0
    %1224 = vmatprep.subr.mxu0 0.0
    %1225 = vmatpush2.msra.mxu0 0.0
    %1226 = vmatprep.subr.mxu0 0.0
    %1227 = vmatpush2.msra.mxu0 0.0
    %1228 = vmatprep.subr.mxu0 0.0
    %1229 = vmatpush2.msra.mxu0 0.0
    %1230 = vmatprep.subr.mxu0 0.0
    %1231 = vmatpush2.msra.mxu0 0.0
    %1232 = vmatprep.subr.mxu0 0.0
    %1233 = vmatpush2.msra.mxu0 0.0
    %1234 = vmatprep.subr.mxu0 0.0
    %1235 = vmatpush2.msra.mxu0 0.0
    %1236 = vmatprep.subr.mxu0 0.0
    %1237 = vmatpush2.msra.mxu0 0.0
    %1238 = vmatprep.subr.mxu0 0.0
    %1239 = vmatpush2.msra.mxu0 0.0
    %1240 = vmatprep.subr.mxu0 0.0
    %1241 = vmatpush2.msra.mxu0 0.0
    %1242 = vmatprep.subr.mxu0 0.0
    %1243 = vmatpush2.msra.mxu0 0.0
    %1244 = vmatprep.subr.mxu0 0.0
    %1245 = vmatpush2.msra.mxu0 0.0
    %1246 = vmatprep.subr.mxu0 0.0
    %1247 = vmatpush2.msra.mxu0 0.0
    %1248 = vmatprep.subr.mxu0 0.0
    %1249 = vmatpush2.msra.mxu0 0.0
    %1250 = vmatprep.subr.mxu0 0.0
    %1251 = vmatpush2.msra.mxu0 0.0
    %1252 = vmatprep.mubr.f32.mxu0 0.0
    %v1253 = vand.u32 %v1092, 4294901760
    %1254 = vmatmul.mubr.f32.gmra.mxu0 %v1253
    %v1255 = vpop.f32.mrf.mxu0
    %v1256 = vadd.f32 %v1170, %v1255
    %v1257 = vpop.f32.mrf.mxu0
    %1258 = vmatprep.mubr.f32.mxu0 0.0
    %v1259 = vand.u32 %v1095, 4294901760
    %1260 = vmatmul.mubr.f32.gmra.mxu0 %v1259
    %v1261 = vpop.f32.mrf.mxu0
    %v1262 = vadd.f32 %v1180, %v1261
    %v1263 = vpop.f32.mrf.mxu0
    %1264 = vdwg.mxu0
    %1265 = vmatprep.subr.mxu0 0.0
    %1266 = vmatpush1.msra.mxu0 0.0
    %1267 = vmatprep.subr.mxu0 0.0
    %1268 = vmatpush1.msra.mxu0 0.0
    %1269 = vmatprep.subr.mxu0 0.0
    %1270 = vmatpush1.msra.mxu0 0.0
    %1271 = vmatprep.subr.mxu0 0.0
    %1272 = vmatpush1.msra.mxu0 0.0
    %1273 = vmatprep.subr.mxu0 0.0
    %1274 = vmatpush1.msra.mxu0 0.0
    %1275 = vmatprep.subr.mxu0 0.0
    %1276 = vmatpush1.msra.mxu0 0.0
    %1277 = vmatprep.subr.mxu0 0.0
    %1278 = vmatpush1.msra.mxu0 0.0
    %1279 = vmatprep.subr.mxu0 0.0
    %1280 = vmatpush1.msra.mxu0 0.0
    %1281 = vmatprep.subr.mxu0 0.0
    %1282 = vmatpush1.msra.mxu0 0.0
    %1283 = vmatprep.subr.mxu0 0.0
    %1284 = vmatpush1.msra.mxu0 0.0
    %1285 = vmatprep.subr.mxu0 0.0
    %1286 = vmatpush1.msra.mxu0 0.0
    %1287 = vmatprep.subr.mxu0 0.0
    %1288 = vmatpush1.msra.mxu0 0.0
    %1289 = vmatprep.subr.mxu0 0.0
    %1290 = vmatpush1.msra.mxu0 0.0
    %1291 = vmatprep.subr.mxu0 0.0
    %1292 = vmatpush1.msra.mxu0 0.0
    %1293 = vmatprep.subr.mxu0 0.0
    %1294 = vmatpush1.msra.mxu0 0.0
    %1295 = vmatprep.subr.mxu0 0.0
    %v1296 = vand.u32 %v1089, 4294901760
    %v1297 = vsub.f32 %v1089, %v1296
    %1298 = vmatpush1.msra.mxu0 %v1297
    %1299 = vmatprep.subr.mxu0 0.0
    %1300 = vmatpush2.msra.mxu0 0.0
    %1301 = vmatprep.subr.mxu0 0.0
    %1302 = vmatpush2.msra.mxu0 0.0
    %1303 = vmatprep.subr.mxu0 0.0
    %1304 = vmatpush2.msra.mxu0 0.0
    %1305 = vmatprep.subr.mxu0 0.0
    %1306 = vmatpush2.msra.mxu0 0.0
    %1307 = vmatprep.subr.mxu0 0.0
    %1308 = vmatpush2.msra.mxu0 0.0
    %1309 = vmatprep.subr.mxu0 0.0
    %1310 = vmatpush2.msra.mxu0 0.0
    %1311 = vmatprep.subr.mxu0 0.0
    %1312 = vmatpush2.msra.mxu0 0.0
    %1313 = vmatprep.subr.mxu0 0.0
    %1314 = vmatpush2.msra.mxu0 0.0
    %1315 = vmatprep.subr.mxu0 0.0
    %1316 = vmatpush2.msra.mxu0 0.0
    %1317 = vmatprep.subr.mxu0 0.0
    %1318 = vmatpush2.msra.mxu0 0.0
    %1319 = vmatprep.subr.mxu0 0.0
    %1320 = vmatpush2.msra.mxu0 0.0
    %1321 = vmatprep.subr.mxu0 0.0
    %1322 = vmatpush2.msra.mxu0 0.0
    %1323 = vmatprep.subr.mxu0 0.0
    %1324 = vmatpush2.msra.mxu0 0.0
    %1325 = vmatprep.subr.mxu0 0.0
    %1326 = vmatpush2.msra.mxu0 0.0
    %1327 = vmatprep.subr.mxu0 0.0
    %1328 = vmatpush2.msra.mxu0 0.0
    %1329 = vmatprep.subr.mxu0 0.0
    %1330 = vmatpush2.msra.mxu0 0.0
    %1331 = vmatprep.mubr.f32.mxu0 0.0
    %v1332 = vand.u32 %v1092, 4294901760
    %v1333 = vsub.f32 %v1092, %v1332
    %1334 = vmatmul.mubr.f32.gmra.mxu0 %v1333
    %v1335 = vpop.f32.mrf.mxu0
    %v1336 = vadd.f32 %v1256, %v1335
    %v1337 = vpop.f32.mrf.mxu0
    %1338 = vmatprep.mubr.f32.mxu0 0.0
    %v1339 = vand.u32 %v1095, 4294901760
    %v1340 = vsub.f32 %v1095, %v1339
    %1341 = vmatmul.mubr.f32.gmra.mxu0 %v1340
    %v1342 = vpop.f32.mrf.mxu0
    %v1343 = vadd.f32 %v1262, %v1342
    %v1344 = vpop.f32.mrf.mxu0
    %1345 = vdwg.mxu0
    %1346 = vmatprep.subr.mxu0 0.0
    %1347 = vmatpush1.msra.mxu0 0.0
    %1348 = vmatprep.subr.mxu0 0.0
    %1349 = vmatpush1.msra.mxu0 0.0
    %1350 = vmatprep.subr.mxu0 0.0
    %1351 = vmatpush1.msra.mxu0 0.0
    %1352 = vmatprep.subr.mxu0 0.0
    %1353 = vmatpush1.msra.mxu0 0.0
    %1354 = vmatprep.subr.mxu0 0.0
    %1355 = vmatpush1.msra.mxu0 0.0
    %1356 = vmatprep.subr.mxu0 0.0
    %1357 = vmatpush1.msra.mxu0 0.0
    %1358 = vmatprep.subr.mxu0 0.0
    %1359 = vmatpush1.msra.mxu0 0.0
    %1360 = vmatprep.subr.mxu0 0.0
    %1361 = vmatpush1.msra.mxu0 0.0
    %1362 = vmatprep.subr.mxu0 0.0
    %1363 = vmatpush1.msra.mxu0 0.0
    %1364 = vmatprep.subr.mxu0 0.0
    %1365 = vmatpush1.msra.mxu0 0.0
    %1366 = vmatprep.subr.mxu0 0.0
    %1367 = vmatpush1.msra.mxu0 0.0
    %1368 = vmatprep.subr.mxu0 0.0
    %1369 = vmatpush1.msra.mxu0 0.0
    %1370 = vmatprep.subr.mxu0 0.0
    %1371 = vmatpush1.msra.mxu0 0.0
    %1372 = vmatprep.subr.mxu0 0.0
    %1373 = vmatpush1.msra.mxu0 0.0
    %1374 = vmatprep.subr.mxu0 0.0
    %1375 = vmatpush1.msra.mxu0 0.0
    %1376 = vmatprep.subr.mxu0 0.0
    %v1377 = vand.u32 %v1089, 4294901760
    %1378 = vmatpush1.msra.mxu0 %v1377
    %1379 = vmatprep.subr.mxu0 0.0
    %1380 = vmatpush2.msra.mxu0 0.0
    %1381 = vmatprep.subr.mxu0 0.0
    %1382 = vmatpush2.msra.mxu0 0.0
    %1383 = vmatprep.subr.mxu0 0.0
    %1384 = vmatpush2.msra.mxu0 0.0
    %1385 = vmatprep.subr.mxu0 0.0
    %1386 = vmatpush2.msra.mxu0 0.0
    %1387 = vmatprep.subr.mxu0 0.0
    %1388 = vmatpush2.msra.mxu0 0.0
    %1389 = vmatprep.subr.mxu0 0.0
    %1390 = vmatpush2.msra.mxu0 0.0
    %1391 = vmatprep.subr.mxu0 0.0
    %1392 = vmatpush2.msra.mxu0 0.0
    %1393 = vmatprep.subr.mxu0 0.0
    %1394 = vmatpush2.msra.mxu0 0.0
    %1395 = vmatprep.subr.mxu0 0.0
    %1396 = vmatpush2.msra.mxu0 0.0
    %1397 = vmatprep.subr.mxu0 0.0
    %1398 = vmatpush2.msra.mxu0 0.0
    %1399 = vmatprep.subr.mxu0 0.0
    %1400 = vmatpush2.msra.mxu0 0.0
    %1401 = vmatprep.subr.mxu0 0.0
    %1402 = vmatpush2.msra.mxu0 0.0
    %1403 = vmatprep.subr.mxu0 0.0
    %1404 = vmatpush2.msra.mxu0 0.0
    %1405 = vmatprep.subr.mxu0 0.0
    %1406 = vmatpush2.msra.mxu0 0.0
    %1407 = vmatprep.subr.mxu0 0.0
    %1408 = vmatpush2.msra.mxu0 0.0
    %1409 = vmatprep.subr.mxu0 0.0
    %1410 = vmatpush2.msra.mxu0 0.0
    %1411 = vmatprep.mubr.f32.mxu0 0.0
    %v1412 = vand.u32 %v1092, 4294901760
    %v1413 = vsub.f32 %v1092, %v1412
    %v1414 = vand.u32 %v1413, 4294901760
    %1415 = vmatmul.mubr.f32.gmra.mxu0 %v1414
    %v1416 = vpop.f32.mrf.mxu0
    %v1417 = vadd.f32 %v1336, %v1416
    %v1418 = vpop.f32.mrf.mxu0
    %1419 = vmatprep.mubr.f32.mxu0 0.0
    %v1420 = vand.u32 %v1095, 4294901760
    %v1421 = vsub.f32 %v1095, %v1420
    %v1422 = vand.u32 %v1421, 4294901760
    %1423 = vmatmul.mubr.f32.gmra.mxu0 %v1422
    %v1424 = vpop.f32.mrf.mxu0
    %v1425 = vadd.f32 %v1343, %v1424
    %v1426 = vpop.f32.mrf.mxu0
    %1427 = vdwg.mxu0
    %1428 = vmatprep.subr.mxu0 0.0
    %1429 = vmatpush1.msra.mxu0 0.0
    %1430 = vmatprep.subr.mxu0 0.0
    %1431 = vmatpush1.msra.mxu0 0.0
    %1432 = vmatprep.subr.mxu0 0.0
    %1433 = vmatpush1.msra.mxu0 0.0
    %1434 = vmatprep.subr.mxu0 0.0
    %1435 = vmatpush1.msra.mxu0 0.0
    %1436 = vmatprep.subr.mxu0 0.0
    %1437 = vmatpush1.msra.mxu0 0.0
    %1438 = vmatprep.subr.mxu0 0.0
    %1439 = vmatpush1.msra.mxu0 0.0
    %1440 = vmatprep.subr.mxu0 0.0
    %1441 = vmatpush1.msra.mxu0 0.0
    %1442 = vmatprep.subr.mxu0 0.0
    %1443 = vmatpush1.msra.mxu0 0.0
    %1444 = vmatprep.subr.mxu0 0.0
    %1445 = vmatpush1.msra.mxu0 0.0
    %1446 = vmatprep.subr.mxu0 0.0
    %1447 = vmatpush1.msra.mxu0 0.0
    %1448 = vmatprep.subr.mxu0 0.0
    %1449 = vmatpush1.msra.mxu0 0.0
    %1450 = vmatprep.subr.mxu0 0.0
    %1451 = vmatpush1.msra.mxu0 0.0
    %1452 = vmatprep.subr.mxu0 0.0
    %1453 = vmatpush1.msra.mxu0 0.0
    %1454 = vmatprep.subr.mxu0 0.0
    %1455 = vmatpush1.msra.mxu0 0.0
    %1456 = vmatprep.subr.mxu0 0.0
    %1457 = vmatpush1.msra.mxu0 0.0
    %1458 = vmatprep.subr.mxu0 0.0
    %v1459 = vand.u32 %v1089, 4294901760
    %v1460 = vsub.f32 %v1089, %v1459
    %v1461 = vand.u32 %v1460, 4294901760
    %1462 = vmatpush1.msra.mxu0 %v1461
    %1463 = vmatprep.subr.mxu0 0.0
    %1464 = vmatpush2.msra.mxu0 0.0
    %1465 = vmatprep.subr.mxu0 0.0
    %1466 = vmatpush2.msra.mxu0 0.0
    %1467 = vmatprep.subr.mxu0 0.0
    %1468 = vmatpush2.msra.mxu0 0.0
    %1469 = vmatprep.subr.mxu0 0.0
    %1470 = vmatpush2.msra.mxu0 0.0
    %1471 = vmatprep.subr.mxu0 0.0
    %1472 = vmatpush2.msra.mxu0 0.0
    %1473 = vmatprep.subr.mxu0 0.0
    %1474 = vmatpush2.msra.mxu0 0.0
    %1475 = vmatprep.subr.mxu0 0.0
    %1476 = vmatpush2.msra.mxu0 0.0
    %1477 = vmatprep.subr.mxu0 0.0
    %1478 = vmatpush2.msra.mxu0 0.0
    %1479 = vmatprep.subr.mxu0 0.0
    %1480 = vmatpush2.msra.mxu0 0.0
    %1481 = vmatprep.subr.mxu0 0.0
    %1482 = vmatpush2.msra.mxu0 0.0
    %1483 = vmatprep.subr.mxu0 0.0
    %1484 = vmatpush2.msra.mxu0 0.0
    %1485 = vmatprep.subr.mxu0 0.0
    %1486 = vmatpush2.msra.mxu0 0.0
    %1487 = vmatprep.subr.mxu0 0.0
    %1488 = vmatpush2.msra.mxu0 0.0
    %1489 = vmatprep.subr.mxu0 0.0
    %1490 = vmatpush2.msra.mxu0 0.0
    %1491 = vmatprep.subr.mxu0 0.0
    %1492 = vmatpush2.msra.mxu0 0.0
    %1493 = vmatprep.subr.mxu0 0.0
    %1494 = vmatpush2.msra.mxu0 0.0
    %1495 = vmatprep.mubr.f32.mxu0 0.0
    %v1496 = vand.u32 %v1092, 4294901760
    %1497 = vmatmul.mubr.f32.gmra.mxu0 %v1496
    %v1498 = vpop.f32.mrf.mxu0
    %v1499 = vadd.f32 %v1417, %v1498
    %v1500 = vpop.f32.mrf.mxu0
    %1501 = vmatprep.mubr.f32.mxu0 0.0
    %v1502 = vand.u32 %v1095, 4294901760
    %1503 = vmatmul.mubr.f32.gmra.mxu0 %v1502
    %v1504 = vpop.f32.mrf.mxu0
    %v1505 = vadd.f32 %v1425, %v1504
    %v1506 = vpop.f32.mrf.mxu0
    %1507 = vdwg.mxu0
    %1508 = vmatprep.subr.mxu0 0.0
    %1509 = vmatpush1.msra.mxu0 0.0
    %1510 = vmatprep.subr.mxu0 0.0
    %1511 = vmatpush1.msra.mxu0 0.0
    %1512 = vmatprep.subr.mxu0 0.0
    %1513 = vmatpush1.msra.mxu0 0.0
    %1514 = vmatprep.subr.mxu0 0.0
    %1515 = vmatpush1.msra.mxu0 0.0
    %1516 = vmatprep.subr.mxu0 0.0
    %1517 = vmatpush1.msra.mxu0 0.0
    %1518 = vmatprep.subr.mxu0 0.0
    %1519 = vmatpush1.msra.mxu0 0.0
    %1520 = vmatprep.subr.mxu0 0.0
    %1521 = vmatpush1.msra.mxu0 0.0
    %1522 = vmatprep.subr.mxu0 0.0
    %1523 = vmatpush1.msra.mxu0 0.0
    %1524 = vmatprep.subr.mxu0 0.0
    %1525 = vmatpush1.msra.mxu0 0.0
    %1526 = vmatprep.subr.mxu0 0.0
    %1527 = vmatpush1.msra.mxu0 0.0
    %1528 = vmatprep.subr.mxu0 0.0
    %1529 = vmatpush1.msra.mxu0 0.0
    %1530 = vmatprep.subr.mxu0 0.0
    %1531 = vmatpush1.msra.mxu0 0.0
    %1532 = vmatprep.subr.mxu0 0.0
    %1533 = vmatpush1.msra.mxu0 0.0
    %1534 = vmatprep.subr.mxu0 0.0
    %1535 = vmatpush1.msra.mxu0 0.0
    %1536 = vmatprep.subr.mxu0 0.0
    %1537 = vmatpush1.msra.mxu0 0.0
    %1538 = vmatprep.subr.mxu0 0.0
    %v1539 = vand.u32 %v1089, 4294901760
    %1540 = vmatpush1.msra.mxu0 %v1539
    %1541 = vmatprep.subr.mxu0 0.0
    %1542 = vmatpush2.msra.mxu0 0.0
    %1543 = vmatprep.subr.mxu0 0.0
    %1544 = vmatpush2.msra.mxu0 0.0
    %1545 = vmatprep.subr.mxu0 0.0
    %1546 = vmatpush2.msra.mxu0 0.0
    %1547 = vmatprep.subr.mxu0 0.0
    %1548 = vmatpush2.msra.mxu0 0.0
    %1549 = vmatprep.subr.mxu0 0.0
    %1550 = vmatpush2.msra.mxu0 0.0
    %1551 = vmatprep.subr.mxu0 0.0
    %1552 = vmatpush2.msra.mxu0 0.0
    %1553 = vmatprep.subr.mxu0 0.0
    %1554 = vmatpush2.msra.mxu0 0.0
    %1555 = vmatprep.subr.mxu0 0.0
    %1556 = vmatpush2.msra.mxu0 0.0
    %1557 = vmatprep.subr.mxu0 0.0
    %1558 = vmatpush2.msra.mxu0 0.0
    %1559 = vmatprep.subr.mxu0 0.0
    %1560 = vmatpush2.msra.mxu0 0.0
    %1561 = vmatprep.subr.mxu0 0.0
    %1562 = vmatpush2.msra.mxu0 0.0
    %1563 = vmatprep.subr.mxu0 0.0
    %1564 = vmatpush2.msra.mxu0 0.0
    %1565 = vmatprep.subr.mxu0 0.0
    %1566 = vmatpush2.msra.mxu0 0.0
    %1567 = vmatprep.subr.mxu0 0.0
    %1568 = vmatpush2.msra.mxu0 0.0
    %1569 = vmatprep.subr.mxu0 0.0
    %1570 = vmatpush2.msra.mxu0 0.0
    %1571 = vmatprep.subr.mxu0 0.0
    %1572 = vmatpush2.msra.mxu0 0.0
    %1573 = vmatprep.mubr.f32.mxu0 0.0
    %v1574 = vand.u32 %v1092, 4294901760
    %1575 = vmatmul.mubr.f32.gmra.mxu0 %v1574
    %v1576 = vpop.f32.mrf.mxu0
    %v1577 = vadd.f32 %v1499, %v1576
    %v1578 = vpop.f32.mrf.mxu0
    %1579 = vmatprep.mubr.f32.mxu0 0.0
    %v1580 = vand.u32 %v1095, 4294901760
    %1581 = vmatmul.mubr.f32.gmra.mxu0 %v1580
    %v1582 = vpop.f32.mrf.mxu0
    %v1583 = vadd.f32 %v1505, %v1582
    %v1584 = vpop.f32.mrf.mxu0
    %1585 = vdwg.mxu0
    %s1586 = scalar_lea.vmem %s3, 32
    %v1587 = vld [vmem:[%s1586] sm:$0xff]
    %v1588 = vld [vmem:[%s1586 + $0x8] sm:$0xff]
    %1591 = vrot.lane.b32.xlu0 %v562, 4
    %v1592 = vpop.permute.xlu0 %1591
    %1593 = vrot.lane.b32.xlu0 %v563, 4
    %v1594 = vpop.permute.xlu0 %1593
    %v1595 = vsel %vm583, %v1592, %v1594
    %v1598 = vsel %vm586, %v1587, 0
    %v1601 = vsel %vm586, %v1588, 0
    %1603 = vmatprep.subr.mxu0 0.0
    %1604 = vmatpush1.msra.mxu0 0.0
    %1605 = vmatprep.subr.mxu0 0.0
    %1606 = vmatpush1.msra.mxu0 0.0
    %1607 = vmatprep.subr.mxu0 0.0
    %1608 = vmatpush1.msra.mxu0 0.0
    %1609 = vmatprep.subr.mxu0 0.0
    %1610 = vmatpush1.msra.mxu0 0.0
    %1611 = vmatprep.subr.mxu0 0.0
    %1612 = vmatpush1.msra.mxu0 0.0
    %1613 = vmatprep.subr.mxu0 0.0
    %1614 = vmatpush1.msra.mxu0 0.0
    %1615 = vmatprep.subr.mxu0 0.0
    %1616 = vmatpush1.msra.mxu0 0.0
    %1617 = vmatprep.subr.mxu0 0.0
    %1618 = vmatpush1.msra.mxu0 0.0
    %1619 = vmatprep.subr.mxu0 0.0
    %1620 = vmatpush1.msra.mxu0 0.0
    %1621 = vmatprep.subr.mxu0 0.0
    %1622 = vmatpush1.msra.mxu0 0.0
    %1623 = vmatprep.subr.mxu0 0.0
    %1624 = vmatpush1.msra.mxu0 0.0
    %1625 = vmatprep.subr.mxu0 0.0
    %1626 = vmatpush1.msra.mxu0 0.0
    %1627 = vmatprep.subr.mxu0 0.0
    %1628 = vmatpush1.msra.mxu0 0.0
    %1629 = vmatprep.subr.mxu0 0.0
    %1630 = vmatpush1.msra.mxu0 0.0
    %1631 = vmatprep.subr.mxu0 0.0
    %1632 = vmatpush1.msra.mxu0 0.0
    %1633 = vmatprep.subr.mxu0 0.0
    %v1634 = vand.u32 %v1595, 4294901760
    %1635 = vmatpush1.msra.mxu0 %v1634
    %1636 = vmatprep.subr.mxu0 0.0
    %1637 = vmatpush2.msra.mxu0 0.0
    %1638 = vmatprep.subr.mxu0 0.0
    %1639 = vmatpush2.msra.mxu0 0.0
    %1640 = vmatprep.subr.mxu0 0.0
    %1641 = vmatpush2.msra.mxu0 0.0
    %1642 = vmatprep.subr.mxu0 0.0
    %1643 = vmatpush2.msra.mxu0 0.0
    %1644 = vmatprep.subr.mxu0 0.0
    %1645 = vmatpush2.msra.mxu0 0.0
    %1646 = vmatprep.subr.mxu0 0.0
    %1647 = vmatpush2.msra.mxu0 0.0
    %1648 = vmatprep.subr.mxu0 0.0
    %1649 = vmatpush2.msra.mxu0 0.0
    %1650 = vmatprep.subr.mxu0 0.0
    %1651 = vmatpush2.msra.mxu0 0.0
    %1652 = vmatprep.subr.mxu0 0.0
    %1653 = vmatpush2.msra.mxu0 0.0
    %1654 = vmatprep.subr.mxu0 0.0
    %1655 = vmatpush2.msra.mxu0 0.0
    %1656 = vmatprep.subr.mxu0 0.0
    %1657 = vmatpush2.msra.mxu0 0.0
    %1658 = vmatprep.subr.mxu0 0.0
    %1659 = vmatpush2.msra.mxu0 0.0
    %1660 = vmatprep.subr.mxu0 0.0
    %1661 = vmatpush2.msra.mxu0 0.0
    %1662 = vmatprep.subr.mxu0 0.0
    %1663 = vmatpush2.msra.mxu0 0.0
    %1664 = vmatprep.subr.mxu0 0.0
    %1665 = vmatpush2.msra.mxu0 0.0
    %1666 = vmatprep.subr.mxu0 0.0
    %1667 = vmatpush2.msra.mxu0 0.0
    %1668 = vmatprep.mubr.f32.mxu0 0.0
    %v1669 = vand.u32 %v1598, 4294901760
    %v1670 = vsub.f32 %v1598, %v1669
    %v1671 = vand.u32 %v1670, 4294901760
    %v1672 = vsub.f32 %v1670, %v1671
    %v1673 = vand.u32 %v1672, 4294901760
    %1674 = vmatmul.mubr.f32.gmra.mxu0 %v1673
    %v1675 = vpop.f32.mrf.mxu0
    %v1676 = vadd.f32 0.0, %v1675
    %v1677 = vpop.f32.mrf.mxu0
    %1678 = vmatprep.mubr.f32.mxu0 0.0
    %v1679 = vand.u32 %v1601, 4294901760
    %v1680 = vsub.f32 %v1601, %v1679
    %v1681 = vand.u32 %v1680, 4294901760
    %v1682 = vsub.f32 %v1680, %v1681
    %v1683 = vand.u32 %v1682, 4294901760
    %1684 = vmatmul.mubr.f32.gmra.mxu0 %v1683
    %v1685 = vpop.f32.mrf.mxu0
    %v1686 = vadd.f32 0.0, %v1685
    %v1687 = vpop.f32.mrf.mxu0
    %1688 = vdwg.mxu0
    %1689 = vmatprep.subr.mxu0 0.0
    %1690 = vmatpush1.msra.mxu0 0.0
    %1691 = vmatprep.subr.mxu0 0.0
    %1692 = vmatpush1.msra.mxu0 0.0
    %1693 = vmatprep.subr.mxu0 0.0
    %1694 = vmatpush1.msra.mxu0 0.0
    %1695 = vmatprep.subr.mxu0 0.0
    %1696 = vmatpush1.msra.mxu0 0.0
    %1697 = vmatprep.subr.mxu0 0.0
    %1698 = vmatpush1.msra.mxu0 0.0
    %1699 = vmatprep.subr.mxu0 0.0
    %1700 = vmatpush1.msra.mxu0 0.0
    %1701 = vmatprep.subr.mxu0 0.0
    %1702 = vmatpush1.msra.mxu0 0.0
    %1703 = vmatprep.subr.mxu0 0.0
    %1704 = vmatpush1.msra.mxu0 0.0
    %1705 = vmatprep.subr.mxu0 0.0
    %1706 = vmatpush1.msra.mxu0 0.0
    %1707 = vmatprep.subr.mxu0 0.0
    %1708 = vmatpush1.msra.mxu0 0.0
    %1709 = vmatprep.subr.mxu0 0.0
    %1710 = vmatpush1.msra.mxu0 0.0
    %1711 = vmatprep.subr.mxu0 0.0
    %1712 = vmatpush1.msra.mxu0 0.0
    %1713 = vmatprep.subr.mxu0 0.0
    %1714 = vmatpush1.msra.mxu0 0.0
    %1715 = vmatprep.subr.mxu0 0.0
    %1716 = vmatpush1.msra.mxu0 0.0
    %1717 = vmatprep.subr.mxu0 0.0
    %1718 = vmatpush1.msra.mxu0 0.0
    %1719 = vmatprep.subr.mxu0 0.0
    %v1720 = vand.u32 %v1595, 4294901760
    %v1721 = vsub.f32 %v1595, %v1720
    %v1722 = vand.u32 %v1721, 4294901760
    %v1723 = vsub.f32 %v1721, %v1722
    %v1724 = vand.u32 %v1723, 4294901760
    %1725 = vmatpush1.msra.mxu0 %v1724
    %1726 = vmatprep.subr.mxu0 0.0
    %1727 = vmatpush2.msra.mxu0 0.0
    %1728 = vmatprep.subr.mxu0 0.0
    %1729 = vmatpush2.msra.mxu0 0.0
    %1730 = vmatprep.subr.mxu0 0.0
    %1731 = vmatpush2.msra.mxu0 0.0
    %1732 = vmatprep.subr.mxu0 0.0
    %1733 = vmatpush2.msra.mxu0 0.0
    %1734 = vmatprep.subr.mxu0 0.0
    %1735 = vmatpush2.msra.mxu0 0.0
    %1736 = vmatprep.subr.mxu0 0.0
    %1737 = vmatpush2.msra.mxu0 0.0
    %1738 = vmatprep.subr.mxu0 0.0
    %1739 = vmatpush2.msra.mxu0 0.0
    %1740 = vmatprep.subr.mxu0 0.0
    %1741 = vmatpush2.msra.mxu0 0.0
    %1742 = vmatprep.subr.mxu0 0.0
    %1743 = vmatpush2.msra.mxu0 0.0
    %1744 = vmatprep.subr.mxu0 0.0
    %1745 = vmatpush2.msra.mxu0 0.0
    %1746 = vmatprep.subr.mxu0 0.0
    %1747 = vmatpush2.msra.mxu0 0.0
    %1748 = vmatprep.subr.mxu0 0.0
    %1749 = vmatpush2.msra.mxu0 0.0
    %1750 = vmatprep.subr.mxu0 0.0
    %1751 = vmatpush2.msra.mxu0 0.0
    %1752 = vmatprep.subr.mxu0 0.0
    %1753 = vmatpush2.msra.mxu0 0.0
    %1754 = vmatprep.subr.mxu0 0.0
    %1755 = vmatpush2.msra.mxu0 0.0
    %1756 = vmatprep.subr.mxu0 0.0
    %1757 = vmatpush2.msra.mxu0 0.0
    %1758 = vmatprep.mubr.f32.mxu0 0.0
    %v1759 = vand.u32 %v1598, 4294901760
    %1760 = vmatmul.mubr.f32.gmra.mxu0 %v1759
    %v1761 = vpop.f32.mrf.mxu0
    %v1762 = vadd.f32 %v1676, %v1761
    %v1763 = vpop.f32.mrf.mxu0
    %1764 = vmatprep.mubr.f32.mxu0 0.0
    %v1765 = vand.u32 %v1601, 4294901760
    %1766 = vmatmul.mubr.f32.gmra.mxu0 %v1765
    %v1767 = vpop.f32.mrf.mxu0
    %v1768 = vadd.f32 %v1686, %v1767
    %v1769 = vpop.f32.mrf.mxu0
    %1770 = vdwg.mxu0
    %1771 = vmatprep.subr.mxu0 0.0
    %1772 = vmatpush1.msra.mxu0 0.0
    %1773 = vmatprep.subr.mxu0 0.0
    %1774 = vmatpush1.msra.mxu0 0.0
    %1775 = vmatprep.subr.mxu0 0.0
    %1776 = vmatpush1.msra.mxu0 0.0
    %1777 = vmatprep.subr.mxu0 0.0
    %1778 = vmatpush1.msra.mxu0 0.0
    %1779 = vmatprep.subr.mxu0 0.0
    %1780 = vmatpush1.msra.mxu0 0.0
    %1781 = vmatprep.subr.mxu0 0.0
    %1782 = vmatpush1.msra.mxu0 0.0
    %1783 = vmatprep.subr.mxu0 0.0
    %1784 = vmatpush1.msra.mxu0 0.0
    %1785 = vmatprep.subr.mxu0 0.0
    %1786 = vmatpush1.msra.mxu0 0.0
    %1787 = vmatprep.subr.mxu0 0.0
    %1788 = vmatpush1.msra.mxu0 0.0
    %1789 = vmatprep.subr.mxu0 0.0
    %1790 = vmatpush1.msra.mxu0 0.0
    %1791 = vmatprep.subr.mxu0 0.0
    %1792 = vmatpush1.msra.mxu0 0.0
    %1793 = vmatprep.subr.mxu0 0.0
    %1794 = vmatpush1.msra.mxu0 0.0
    %1795 = vmatprep.subr.mxu0 0.0
    %1796 = vmatpush1.msra.mxu0 0.0
    %1797 = vmatprep.subr.mxu0 0.0
    %1798 = vmatpush1.msra.mxu0 0.0
    %1799 = vmatprep.subr.mxu0 0.0
    %1800 = vmatpush1.msra.mxu0 0.0
    %1801 = vmatprep.subr.mxu0 0.0
    %v1802 = vand.u32 %v1595, 4294901760
    %v1803 = vsub.f32 %v1595, %v1802
    %1804 = vmatpush1.msra.mxu0 %v1803
    %1805 = vmatprep.subr.mxu0 0.0
    %1806 = vmatpush2.msra.mxu0 0.0
    %1807 = vmatprep.subr.mxu0 0.0
    %1808 = vmatpush2.msra.mxu0 0.0
    %1809 = vmatprep.subr.mxu0 0.0
    %1810 = vmatpush2.msra.mxu0 0.0
    %1811 = vmatprep.subr.mxu0 0.0
    %1812 = vmatpush2.msra.mxu0 0.0
    %1813 = vmatprep.subr.mxu0 0.0
    %1814 = vmatpush2.msra.mxu0 0.0
    %1815 = vmatprep.subr.mxu0 0.0
    %1816 = vmatpush2.msra.mxu0 0.0
    %1817 = vmatprep.subr.mxu0 0.0
    %1818 = vmatpush2.msra.mxu0 0.0
    %1819 = vmatprep.subr.mxu0 0.0
    %1820 = vmatpush2.msra.mxu0 0.0
    %1821 = vmatprep.subr.mxu0 0.0
    %1822 = vmatpush2.msra.mxu0 0.0
    %1823 = vmatprep.subr.mxu0 0.0
    %1824 = vmatpush2.msra.mxu0 0.0
    %1825 = vmatprep.subr.mxu0 0.0
    %1826 = vmatpush2.msra.mxu0 0.0
    %1827 = vmatprep.subr.mxu0 0.0
    %1828 = vmatpush2.msra.mxu0 0.0
    %1829 = vmatprep.subr.mxu0 0.0
    %1830 = vmatpush2.msra.mxu0 0.0
    %1831 = vmatprep.subr.mxu0 0.0
    %1832 = vmatpush2.msra.mxu0 0.0
    %1833 = vmatprep.subr.mxu0 0.0
    %1834 = vmatpush2.msra.mxu0 0.0
    %1835 = vmatprep.subr.mxu0 0.0
    %1836 = vmatpush2.msra.mxu0 0.0
    %1837 = vmatprep.mubr.f32.mxu0 0.0
    %v1838 = vand.u32 %v1598, 4294901760
    %v1839 = vsub.f32 %v1598, %v1838
    %1840 = vmatmul.mubr.f32.gmra.mxu0 %v1839
    %v1841 = vpop.f32.mrf.mxu0
    %v1842 = vadd.f32 %v1762, %v1841
    %v1843 = vpop.f32.mrf.mxu0
    %1844 = vmatprep.mubr.f32.mxu0 0.0
    %v1845 = vand.u32 %v1601, 4294901760
    %v1846 = vsub.f32 %v1601, %v1845
    %1847 = vmatmul.mubr.f32.gmra.mxu0 %v1846
    %v1848 = vpop.f32.mrf.mxu0
    %v1849 = vadd.f32 %v1768, %v1848
    %v1850 = vpop.f32.mrf.mxu0
    %1851 = vdwg.mxu0
    %1852 = vmatprep.subr.mxu0 0.0
    %1853 = vmatpush1.msra.mxu0 0.0
    %1854 = vmatprep.subr.mxu0 0.0
    %1855 = vmatpush1.msra.mxu0 0.0
    %1856 = vmatprep.subr.mxu0 0.0
    %1857 = vmatpush1.msra.mxu0 0.0
    %1858 = vmatprep.subr.mxu0 0.0
    %1859 = vmatpush1.msra.mxu0 0.0
    %1860 = vmatprep.subr.mxu0 0.0
    %1861 = vmatpush1.msra.mxu0 0.0
    %1862 = vmatprep.subr.mxu0 0.0
    %1863 = vmatpush1.msra.mxu0 0.0
    %1864 = vmatprep.subr.mxu0 0.0
    %1865 = vmatpush1.msra.mxu0 0.0
    %1866 = vmatprep.subr.mxu0 0.0
    %1867 = vmatpush1.msra.mxu0 0.0
    %1868 = vmatprep.subr.mxu0 0.0
    %1869 = vmatpush1.msra.mxu0 0.0
    %1870 = vmatprep.subr.mxu0 0.0
    %1871 = vmatpush1.msra.mxu0 0.0
    %1872 = vmatprep.subr.mxu0 0.0
    %1873 = vmatpush1.msra.mxu0 0.0
    %1874 = vmatprep.subr.mxu0 0.0
    %1875 = vmatpush1.msra.mxu0 0.0
    %1876 = vmatprep.subr.mxu0 0.0
    %1877 = vmatpush1.msra.mxu0 0.0
    %1878 = vmatprep.subr.mxu0 0.0
    %1879 = vmatpush1.msra.mxu0 0.0
    %1880 = vmatprep.subr.mxu0 0.0
    %1881 = vmatpush1.msra.mxu0 0.0
    %1882 = vmatprep.subr.mxu0 0.0
    %v1883 = vand.u32 %v1595, 4294901760
    %1884 = vmatpush1.msra.mxu0 %v1883
    %1885 = vmatprep.subr.mxu0 0.0
    %1886 = vmatpush2.msra.mxu0 0.0
    %1887 = vmatprep.subr.mxu0 0.0
    %1888 = vmatpush2.msra.mxu0 0.0
    %1889 = vmatprep.subr.mxu0 0.0
    %1890 = vmatpush2.msra.mxu0 0.0
    %1891 = vmatprep.subr.mxu0 0.0
    %1892 = vmatpush2.msra.mxu0 0.0
    %1893 = vmatprep.subr.mxu0 0.0
    %1894 = vmatpush2.msra.mxu0 0.0
    %1895 = vmatprep.subr.mxu0 0.0
    %1896 = vmatpush2.msra.mxu0 0.0
    %1897 = vmatprep.subr.mxu0 0.0
    %1898 = vmatpush2.msra.mxu0 0.0
    %1899 = vmatprep.subr.mxu0 0.0
    %1900 = vmatpush2.msra.mxu0 0.0
    %1901 = vmatprep.subr.mxu0 0.0
    %1902 = vmatpush2.msra.mxu0 0.0
    %1903 = vmatprep.subr.mxu0 0.0
    %1904 = vmatpush2.msra.mxu0 0.0
    %1905 = vmatprep.subr.mxu0 0.0
    %1906 = vmatpush2.msra.mxu0 0.0
    %1907 = vmatprep.subr.mxu0 0.0
    %1908 = vmatpush2.msra.mxu0 0.0
    %1909 = vmatprep.subr.mxu0 0.0
    %1910 = vmatpush2.msra.mxu0 0.0
    %1911 = vmatprep.subr.mxu0 0.0
    %1912 = vmatpush2.msra.mxu0 0.0
    %1913 = vmatprep.subr.mxu0 0.0
    %1914 = vmatpush2.msra.mxu0 0.0
    %1915 = vmatprep.subr.mxu0 0.0
    %1916 = vmatpush2.msra.mxu0 0.0
    %1917 = vmatprep.mubr.f32.mxu0 0.0
    %v1918 = vand.u32 %v1598, 4294901760
    %v1919 = vsub.f32 %v1598, %v1918
    %v1920 = vand.u32 %v1919, 4294901760
    %1921 = vmatmul.mubr.f32.gmra.mxu0 %v1920
    %v1922 = vpop.f32.mrf.mxu0
    %v1923 = vadd.f32 %v1842, %v1922
    %v1924 = vpop.f32.mrf.mxu0
    %1925 = vmatprep.mubr.f32.mxu0 0.0
    %v1926 = vand.u32 %v1601, 4294901760
    %v1927 = vsub.f32 %v1601, %v1926
    %v1928 = vand.u32 %v1927, 4294901760
    %1929 = vmatmul.mubr.f32.gmra.mxu0 %v1928
    %v1930 = vpop.f32.mrf.mxu0
    %v1931 = vadd.f32 %v1849, %v1930
    %v1932 = vpop.f32.mrf.mxu0
    %1933 = vdwg.mxu0
    %1934 = vmatprep.subr.mxu0 0.0
    %1935 = vmatpush1.msra.mxu0 0.0
    %1936 = vmatprep.subr.mxu0 0.0
    %1937 = vmatpush1.msra.mxu0 0.0
    %1938 = vmatprep.subr.mxu0 0.0
    %1939 = vmatpush1.msra.mxu0 0.0
    %1940 = vmatprep.subr.mxu0 0.0
    %1941 = vmatpush1.msra.mxu0 0.0
    %1942 = vmatprep.subr.mxu0 0.0
    %1943 = vmatpush1.msra.mxu0 0.0
    %1944 = vmatprep.subr.mxu0 0.0
    %1945 = vmatpush1.msra.mxu0 0.0
    %1946 = vmatprep.subr.mxu0 0.0
    %1947 = vmatpush1.msra.mxu0 0.0
    %1948 = vmatprep.subr.mxu0 0.0
    %1949 = vmatpush1.msra.mxu0 0.0
    %1950 = vmatprep.subr.mxu0 0.0
    %1951 = vmatpush1.msra.mxu0 0.0
    %1952 = vmatprep.subr.mxu0 0.0
    %1953 = vmatpush1.msra.mxu0 0.0
    %1954 = vmatprep.subr.mxu0 0.0
    %1955 = vmatpush1.msra.mxu0 0.0
    %1956 = vmatprep.subr.mxu0 0.0
    %1957 = vmatpush1.msra.mxu0 0.0
    %1958 = vmatprep.subr.mxu0 0.0
    %1959 = vmatpush1.msra.mxu0 0.0
    %1960 = vmatprep.subr.mxu0 0.0
    %1961 = vmatpush1.msra.mxu0 0.0
    %1962 = vmatprep.subr.mxu0 0.0
    %1963 = vmatpush1.msra.mxu0 0.0
    %1964 = vmatprep.subr.mxu0 0.0
    %v1965 = vand.u32 %v1595, 4294901760
    %v1966 = vsub.f32 %v1595, %v1965
    %v1967 = vand.u32 %v1966, 4294901760
    %1968 = vmatpush1.msra.mxu0 %v1967
    %1969 = vmatprep.subr.mxu0 0.0
    %1970 = vmatpush2.msra.mxu0 0.0
    %1971 = vmatprep.subr.mxu0 0.0
    %1972 = vmatpush2.msra.mxu0 0.0
    %1973 = vmatprep.subr.mxu0 0.0
    %1974 = vmatpush2.msra.mxu0 0.0
    %1975 = vmatprep.subr.mxu0 0.0
    %1976 = vmatpush2.msra.mxu0 0.0
    %1977 = vmatprep.subr.mxu0 0.0
    %1978 = vmatpush2.msra.mxu0 0.0
    %1979 = vmatprep.subr.mxu0 0.0
    %1980 = vmatpush2.msra.mxu0 0.0
    %1981 = vmatprep.subr.mxu0 0.0
    %1982 = vmatpush2.msra.mxu0 0.0
    %1983 = vmatprep.subr.mxu0 0.0
    %1984 = vmatpush2.msra.mxu0 0.0
    %1985 = vmatprep.subr.mxu0 0.0
    %1986 = vmatpush2.msra.mxu0 0.0
    %1987 = vmatprep.subr.mxu0 0.0
    %1988 = vmatpush2.msra.mxu0 0.0
    %1989 = vmatprep.subr.mxu0 0.0
    %1990 = vmatpush2.msra.mxu0 0.0
    %1991 = vmatprep.subr.mxu0 0.0
    %1992 = vmatpush2.msra.mxu0 0.0
    %1993 = vmatprep.subr.mxu0 0.0
    %1994 = vmatpush2.msra.mxu0 0.0
    %1995 = vmatprep.subr.mxu0 0.0
    %1996 = vmatpush2.msra.mxu0 0.0
    %1997 = vmatprep.subr.mxu0 0.0
    %1998 = vmatpush2.msra.mxu0 0.0
    %1999 = vmatprep.subr.mxu0 0.0
    %2000 = vmatpush2.msra.mxu0 0.0
    %2001 = vmatprep.mubr.f32.mxu0 0.0
    %v2002 = vand.u32 %v1598, 4294901760
    %2003 = vmatmul.mubr.f32.gmra.mxu0 %v2002
    %v2004 = vpop.f32.mrf.mxu0
    %v2005 = vadd.f32 %v1923, %v2004
    %v2006 = vpop.f32.mrf.mxu0
    %2007 = vmatprep.mubr.f32.mxu0 0.0
    %v2008 = vand.u32 %v1601, 4294901760
    %2009 = vmatmul.mubr.f32.gmra.mxu0 %v2008
    %v2010 = vpop.f32.mrf.mxu0
    %v2011 = vadd.f32 %v1931, %v2010
    %v2012 = vpop.f32.mrf.mxu0
    %2013 = vdwg.mxu0
    %2014 = vmatprep.subr.mxu0 0.0
    %2015 = vmatpush1.msra.mxu0 0.0
    %2016 = vmatprep.subr.mxu0 0.0
    %2017 = vmatpush1.msra.mxu0 0.0
    %2018 = vmatprep.subr.mxu0 0.0
    %2019 = vmatpush1.msra.mxu0 0.0
    %2020 = vmatprep.subr.mxu0 0.0
    %2021 = vmatpush1.msra.mxu0 0.0
    %2022 = vmatprep.subr.mxu0 0.0
    %2023 = vmatpush1.msra.mxu0 0.0
    %2024 = vmatprep.subr.mxu0 0.0
    %2025 = vmatpush1.msra.mxu0 0.0
    %2026 = vmatprep.subr.mxu0 0.0
    %2027 = vmatpush1.msra.mxu0 0.0
    %2028 = vmatprep.subr.mxu0 0.0
    %2029 = vmatpush1.msra.mxu0 0.0
    %2030 = vmatprep.subr.mxu0 0.0
    %2031 = vmatpush1.msra.mxu0 0.0
    %2032 = vmatprep.subr.mxu0 0.0
    %2033 = vmatpush1.msra.mxu0 0.0
    %2034 = vmatprep.subr.mxu0 0.0
    %2035 = vmatpush1.msra.mxu0 0.0
    %2036 = vmatprep.subr.mxu0 0.0
    %2037 = vmatpush1.msra.mxu0 0.0
    %2038 = vmatprep.subr.mxu0 0.0
    %2039 = vmatpush1.msra.mxu0 0.0
    %2040 = vmatprep.subr.mxu0 0.0
    %2041 = vmatpush1.msra.mxu0 0.0
    %2042 = vmatprep.subr.mxu0 0.0
    %2043 = vmatpush1.msra.mxu0 0.0
    %2044 = vmatprep.subr.mxu0 0.0
    %v2045 = vand.u32 %v1595, 4294901760
    %2046 = vmatpush1.msra.mxu0 %v2045
    %2047 = vmatprep.subr.mxu0 0.0
    %2048 = vmatpush2.msra.mxu0 0.0
    %2049 = vmatprep.subr.mxu0 0.0
    %2050 = vmatpush2.msra.mxu0 0.0
    %2051 = vmatprep.subr.mxu0 0.0
    %2052 = vmatpush2.msra.mxu0 0.0
    %2053 = vmatprep.subr.mxu0 0.0
    %2054 = vmatpush2.msra.mxu0 0.0
    %2055 = vmatprep.subr.mxu0 0.0
    %2056 = vmatpush2.msra.mxu0 0.0
    %2057 = vmatprep.subr.mxu0 0.0
    %2058 = vmatpush2.msra.mxu0 0.0
    %2059 = vmatprep.subr.mxu0 0.0
    %2060 = vmatpush2.msra.mxu0 0.0
    %2061 = vmatprep.subr.mxu0 0.0
    %2062 = vmatpush2.msra.mxu0 0.0
    %2063 = vmatprep.subr.mxu0 0.0
    %2064 = vmatpush2.msra.mxu0 0.0
    %2065 = vmatprep.subr.mxu0 0.0
    %2066 = vmatpush2.msra.mxu0 0.0
    %2067 = vmatprep.subr.mxu0 0.0
    %2068 = vmatpush2.msra.mxu0 0.0
    %2069 = vmatprep.subr.mxu0 0.0
    %2070 = vmatpush2.msra.mxu0 0.0
    %2071 = vmatprep.subr.mxu0 0.0
    %2072 = vmatpush2.msra.mxu0 0.0
    %2073 = vmatprep.subr.mxu0 0.0
    %2074 = vmatpush2.msra.mxu0 0.0
    %2075 = vmatprep.subr.mxu0 0.0
    %2076 = vmatpush2.msra.mxu0 0.0
    %2077 = vmatprep.subr.mxu0 0.0
    %2078 = vmatpush2.msra.mxu0 0.0
    %2079 = vmatprep.mubr.f32.mxu0 0.0
    %v2080 = vand.u32 %v1598, 4294901760
    %2081 = vmatmul.mubr.f32.gmra.mxu0 %v2080
    %v2082 = vpop.f32.mrf.mxu0
    %v2083 = vadd.f32 %v2005, %v2082
    %v2084 = vpop.f32.mrf.mxu0
    %2085 = vmatprep.mubr.f32.mxu0 0.0
    %v2086 = vand.u32 %v1601, 4294901760
    %2087 = vmatmul.mubr.f32.gmra.mxu0 %v2086
    %v2088 = vpop.f32.mrf.mxu0
    %v2089 = vadd.f32 %v2011, %v2088
    %v2090 = vpop.f32.mrf.mxu0
    %2091 = vdwg.mxu0
    %v2092 = vadd.f32 %v1577, %v2083
    %v2093 = vadd.f32 %v1583, %v2089
    %v2094 = vld [vmem:[#allocation2 + $0x10] sm:$0xff]
    %v2095 = vld [vmem:[#allocation2 + $0x18] sm:$0xff]
    %2096 = vrot.lane.b32.xlu0 %v40, 127
    %v2097 = vpop.permute.xlu0 %2096
    %v2099 = vmul.f32 %v2094, %v2097
    %v2100 = vmul.f32 %v2095, %v2097
    %s2101 = scalar_lea.vmem %s3, 48
    %v2102 = vld [vmem:[%s2101] sm:$0xff]
    %v2103 = vld [vmem:[%s2101 + $0x8] sm:$0xff]
    %2106 = vrot.lane.b32.xlu0 %v2099, 1
    %v2107 = vpop.permute.xlu0 %2106
    %2108 = vrot.lane.b32.xlu0 %v2100, 1
    %v2109 = vpop.permute.xlu0 %2108
    %vm2110 = vcmask 7168
    %v2111 = vsel %vm2110, %v2107, %v2109
    %v2114 = vsel %vm586, %v2102, 0
    %v2117 = vsel %vm586, %v2103, 0
    %2119 = vmatprep.subr.mxu0 0.0
    %2120 = vmatpush1.msra.mxu0 0.0
    %2121 = vmatprep.subr.mxu0 0.0
    %2122 = vmatpush1.msra.mxu0 0.0
    %2123 = vmatprep.subr.mxu0 0.0
    %2124 = vmatpush1.msra.mxu0 0.0
    %2125 = vmatprep.subr.mxu0 0.0
    %2126 = vmatpush1.msra.mxu0 0.0
    %2127 = vmatprep.subr.mxu0 0.0
    %2128 = vmatpush1.msra.mxu0 0.0
    %2129 = vmatprep.subr.mxu0 0.0
    %2130 = vmatpush1.msra.mxu0 0.0
    %2131 = vmatprep.subr.mxu0 0.0
    %2132 = vmatpush1.msra.mxu0 0.0
    %2133 = vmatprep.subr.mxu0 0.0
    %2134 = vmatpush1.msra.mxu0 0.0
    %2135 = vmatprep.subr.mxu0 0.0
    %2136 = vmatpush1.msra.mxu0 0.0
    %2137 = vmatprep.subr.mxu0 0.0
    %2138 = vmatpush1.msra.mxu0 0.0
    %2139 = vmatprep.subr.mxu0 0.0
    %2140 = vmatpush1.msra.mxu0 0.0
    %2141 = vmatprep.subr.mxu0 0.0
    %2142 = vmatpush1.msra.mxu0 0.0
    %2143 = vmatprep.subr.mxu0 0.0
    %2144 = vmatpush1.msra.mxu0 0.0
    %2145 = vmatprep.subr.mxu0 0.0
    %2146 = vmatpush1.msra.mxu0 0.0
    %2147 = vmatprep.subr.mxu0 0.0
    %2148 = vmatpush1.msra.mxu0 0.0
    %2149 = vmatprep.subr.mxu0 0.0
    %v2150 = vand.u32 %v2111, 4294901760
    %2151 = vmatpush1.msra.mxu0 %v2150
    %2152 = vmatprep.subr.mxu0 0.0
    %2153 = vmatpush2.msra.mxu0 0.0
    %2154 = vmatprep.subr.mxu0 0.0
    %2155 = vmatpush2.msra.mxu0 0.0
    %2156 = vmatprep.subr.mxu0 0.0
    %2157 = vmatpush2.msra.mxu0 0.0
    %2158 = vmatprep.subr.mxu0 0.0
    %2159 = vmatpush2.msra.mxu0 0.0
    %2160 = vmatprep.subr.mxu0 0.0
    %2161 = vmatpush2.msra.mxu0 0.0
    %2162 = vmatprep.subr.mxu0 0.0
    %2163 = vmatpush2.msra.mxu0 0.0
    %2164 = vmatprep.subr.mxu0 0.0
    %2165 = vmatpush2.msra.mxu0 0.0
    %2166 = vmatprep.subr.mxu0 0.0
    %2167 = vmatpush2.msra.mxu0 0.0
    %2168 = vmatprep.subr.mxu0 0.0
    %2169 = vmatpush2.msra.mxu0 0.0
    %2170 = vmatprep.subr.mxu0 0.0
    %2171 = vmatpush2.msra.mxu0 0.0
    %2172 = vmatprep.subr.mxu0 0.0
    %2173 = vmatpush2.msra.mxu0 0.0
    %2174 = vmatprep.subr.mxu0 0.0
    %2175 = vmatpush2.msra.mxu0 0.0
    %2176 = vmatprep.subr.mxu0 0.0
    %2177 = vmatpush2.msra.mxu0 0.0
    %2178 = vmatprep.subr.mxu0 0.0
    %2179 = vmatpush2.msra.mxu0 0.0
    %2180 = vmatprep.subr.mxu0 0.0
    %2181 = vmatpush2.msra.mxu0 0.0
    %2182 = vmatprep.subr.mxu0 0.0
    %2183 = vmatpush2.msra.mxu0 0.0
    %2184 = vmatprep.mubr.f32.mxu0 0.0
    %v2185 = vand.u32 %v2114, 4294901760
    %v2186 = vsub.f32 %v2114, %v2185
    %v2187 = vand.u32 %v2186, 4294901760
    %v2188 = vsub.f32 %v2186, %v2187
    %v2189 = vand.u32 %v2188, 4294901760
    %2190 = vmatmul.mubr.f32.gmra.mxu0 %v2189
    %v2191 = vpop.f32.mrf.mxu0
    %v2192 = vadd.f32 0.0, %v2191
    %v2193 = vpop.f32.mrf.mxu0
    %2194 = vmatprep.mubr.f32.mxu0 0.0
    %v2195 = vand.u32 %v2117, 4294901760
    %v2196 = vsub.f32 %v2117, %v2195
    %v2197 = vand.u32 %v2196, 4294901760
    %v2198 = vsub.f32 %v2196, %v2197
    %v2199 = vand.u32 %v2198, 4294901760
    %2200 = vmatmul.mubr.f32.gmra.mxu0 %v2199
    %v2201 = vpop.f32.mrf.mxu0
    %v2202 = vadd.f32 0.0, %v2201
    %v2203 = vpop.f32.mrf.mxu0
    %2204 = vdwg.mxu0
    %2205 = vmatprep.subr.mxu0 0.0
    %2206 = vmatpush1.msra.mxu0 0.0
    %2207 = vmatprep.subr.mxu0 0.0
    %2208 = vmatpush1.msra.mxu0 0.0
    %2209 = vmatprep.subr.mxu0 0.0
    %2210 = vmatpush1.msra.mxu0 0.0
    %2211 = vmatprep.subr.mxu0 0.0
    %2212 = vmatpush1.msra.mxu0 0.0
    %2213 = vmatprep.subr.mxu0 0.0
    %2214 = vmatpush1.msra.mxu0 0.0
    %2215 = vmatprep.subr.mxu0 0.0
    %2216 = vmatpush1.msra.mxu0 0.0
    %2217 = vmatprep.subr.mxu0 0.0
    %2218 = vmatpush1.msra.mxu0 0.0
    %2219 = vmatprep.subr.mxu0 0.0
    %2220 = vmatpush1.msra.mxu0 0.0
    %2221 = vmatprep.subr.mxu0 0.0
    %2222 = vmatpush1.msra.mxu0 0.0
    %2223 = vmatprep.subr.mxu0 0.0
    %2224 = vmatpush1.msra.mxu0 0.0
    %2225 = vmatprep.subr.mxu0 0.0
    %2226 = vmatpush1.msra.mxu0 0.0
    %2227 = vmatprep.subr.mxu0 0.0
    %2228 = vmatpush1.msra.mxu0 0.0
    %2229 = vmatprep.subr.mxu0 0.0
    %2230 = vmatpush1.msra.mxu0 0.0
    %2231 = vmatprep.subr.mxu0 0.0
    %2232 = vmatpush1.msra.mxu0 0.0
    %2233 = vmatprep.subr.mxu0 0.0
    %2234 = vmatpush1.msra.mxu0 0.0
    %2235 = vmatprep.subr.mxu0 0.0
    %v2236 = vand.u32 %v2111, 4294901760
    %v2237 = vsub.f32 %v2111, %v2236
    %v2238 = vand.u32 %v2237, 4294901760
    %v2239 = vsub.f32 %v2237, %v2238
    %v2240 = vand.u32 %v2239, 4294901760
    %2241 = vmatpush1.msra.mxu0 %v2240
    %2242 = vmatprep.subr.mxu0 0.0
    %2243 = vmatpush2.msra.mxu0 0.0
    %2244 = vmatprep.subr.mxu0 0.0
    %2245 = vmatpush2.msra.mxu0 0.0
    %2246 = vmatprep.subr.mxu0 0.0
    %2247 = vmatpush2.msra.mxu0 0.0
    %2248 = vmatprep.subr.mxu0 0.0
    %2249 = vmatpush2.msra.mxu0 0.0
    %2250 = vmatprep.subr.mxu0 0.0
    %2251 = vmatpush2.msra.mxu0 0.0
    %2252 = vmatprep.subr.mxu0 0.0
    %2253 = vmatpush2.msra.mxu0 0.0
    %2254 = vmatprep.subr.mxu0 0.0
    %2255 = vmatpush2.msra.mxu0 0.0
    %2256 = vmatprep.subr.mxu0 0.0
    %2257 = vmatpush2.msra.mxu0 0.0
    %2258 = vmatprep.subr.mxu0 0.0
    %2259 = vmatpush2.msra.mxu0 0.0
    %2260 = vmatprep.subr.mxu0 0.0
    %2261 = vmatpush2.msra.mxu0 0.0
    %2262 = vmatprep.subr.mxu0 0.0
    %2263 = vmatpush2.msra.mxu0 0.0
    %2264 = vmatprep.subr.mxu0 0.0
    %2265 = vmatpush2.msra.mxu0 0.0
    %2266 = vmatprep.subr.mxu0 0.0
    %2267 = vmatpush2.msra.mxu0 0.0
    %2268 = vmatprep.subr.mxu0 0.0
    %2269 = vmatpush2.msra.mxu0 0.0
    %2270 = vmatprep.subr.mxu0 0.0
    %2271 = vmatpush2.msra.mxu0 0.0
    %2272 = vmatprep.subr.mxu0 0.0
    %2273 = vmatpush2.msra.mxu0 0.0
    %2274 = vmatprep.mubr.f32.mxu0 0.0
    %v2275 = vand.u32 %v2114, 4294901760
    %2276 = vmatmul.mubr.f32.gmra.mxu0 %v2275
    %v2277 = vpop.f32.mrf.mxu0
    %v2278 = vadd.f32 %v2192, %v2277
    %v2279 = vpop.f32.mrf.mxu0
    %2280 = vmatprep.mubr.f32.mxu0 0.0
    %v2281 = vand.u32 %v2117, 4294901760
    %2282 = vmatmul.mubr.f32.gmra.mxu0 %v2281
    %v2283 = vpop.f32.mrf.mxu0
    %v2284 = vadd.f32 %v2202, %v2283
    %v2285 = vpop.f32.mrf.mxu0
    %2286 = vdwg.mxu0
    %2287 = vmatprep.subr.mxu0 0.0
    %2288 = vmatpush1.msra.mxu0 0.0
    %2289 = vmatprep.subr.mxu0 0.0
    %2290 = vmatpush1.msra.mxu0 0.0
    %2291 = vmatprep.subr.mxu0 0.0
    %2292 = vmatpush1.msra.mxu0 0.0
    %2293 = vmatprep.subr.mxu0 0.0
    %2294 = vmatpush1.msra.mxu0 0.0
    %2295 = vmatprep.subr.mxu0 0.0
    %2296 = vmatpush1.msra.mxu0 0.0
    %2297 = vmatprep.subr.mxu0 0.0
    %2298 = vmatpush1.msra.mxu0 0.0
    %2299 = vmatprep.subr.mxu0 0.0
    %2300 = vmatpush1.msra.mxu0 0.0
    %2301 = vmatprep.subr.mxu0 0.0
    %2302 = vmatpush1.msra.mxu0 0.0
    %2303 = vmatprep.subr.mxu0 0.0
    %2304 = vmatpush1.msra.mxu0 0.0
    %2305 = vmatprep.subr.mxu0 0.0
    %2306 = vmatpush1.msra.mxu0 0.0
    %2307 = vmatprep.subr.mxu0 0.0
    %2308 = vmatpush1.msra.mxu0 0.0
    %2309 = vmatprep.subr.mxu0 0.0
    %2310 = vmatpush1.msra.mxu0 0.0
    %2311 = vmatprep.subr.mxu0 0.0
    %2312 = vmatpush1.msra.mxu0 0.0
    %2313 = vmatprep.subr.mxu0 0.0
    %2314 = vmatpush1.msra.mxu0 0.0
    %2315 = vmatprep.subr.mxu0 0.0
    %2316 = vmatpush1.msra.mxu0 0.0
    %2317 = vmatprep.subr.mxu0 0.0
    %v2318 = vand.u32 %v2111, 4294901760
    %v2319 = vsub.f32 %v2111, %v2318
    %2320 = vmatpush1.msra.mxu0 %v2319
    %2321 = vmatprep.subr.mxu0 0.0
    %2322 = vmatpush2.msra.mxu0 0.0
    %2323 = vmatprep.subr.mxu0 0.0
    %2324 = vmatpush2.msra.mxu0 0.0
    %2325 = vmatprep.subr.mxu0 0.0
    %2326 = vmatpush2.msra.mxu0 0.0
    %2327 = vmatprep.subr.mxu0 0.0
    %2328 = vmatpush2.msra.mxu0 0.0
    %2329 = vmatprep.subr.mxu0 0.0
    %2330 = vmatpush2.msra.mxu0 0.0
    %2331 = vmatprep.subr.mxu0 0.0
    %2332 = vmatpush2.msra.mxu0 0.0
    %2333 = vmatprep.subr.mxu0 0.0
    %2334 = vmatpush2.msra.mxu0 0.0
    %2335 = vmatprep.subr.mxu0 0.0
    %2336 = vmatpush2.msra.mxu0 0.0
    %2337 = vmatprep.subr.mxu0 0.0
    %2338 = vmatpush2.msra.mxu0 0.0
    %2339 = vmatprep.subr.mxu0 0.0
    %2340 = vmatpush2.msra.mxu0 0.0
    %2341 = vmatprep.subr.mxu0 0.0
    %2342 = vmatpush2.msra.mxu0 0.0
    %2343 = vmatprep.subr.mxu0 0.0
    %2344 = vmatpush2.msra.mxu0 0.0
    %2345 = vmatprep.subr.mxu0 0.0
    %2346 = vmatpush2.msra.mxu0 0.0
    %2347 = vmatprep.subr.mxu0 0.0
    %2348 = vmatpush2.msra.mxu0 0.0
    %2349 = vmatprep.subr.mxu0 0.0
    %2350 = vmatpush2.msra.mxu0 0.0
    %2351 = vmatprep.subr.mxu0 0.0
    %2352 = vmatpush2.msra.mxu0 0.0
    %2353 = vmatprep.mubr.f32.mxu0 0.0
    %v2354 = vand.u32 %v2114, 4294901760
    %v2355 = vsub.f32 %v2114, %v2354
    %2356 = vmatmul.mubr.f32.gmra.mxu0 %v2355
    %v2357 = vpop.f32.mrf.mxu0
    %v2358 = vadd.f32 %v2278, %v2357
    %v2359 = vpop.f32.mrf.mxu0
    %2360 = vmatprep.mubr.f32.mxu0 0.0
    %v2361 = vand.u32 %v2117, 4294901760
    %v2362 = vsub.f32 %v2117, %v2361
    %2363 = vmatmul.mubr.f32.gmra.mxu0 %v2362
    %v2364 = vpop.f32.mrf.mxu0
    %v2365 = vadd.f32 %v2284, %v2364
    %v2366 = vpop.f32.mrf.mxu0
    %2367 = vdwg.mxu0
    %2368 = vmatprep.subr.mxu0 0.0
    %2369 = vmatpush1.msra.mxu0 0.0
    %2370 = vmatprep.subr.mxu0 0.0
    %2371 = vmatpush1.msra.mxu0 0.0
    %2372 = vmatprep.subr.mxu0 0.0
    %2373 = vmatpush1.msra.mxu0 0.0
    %2374 = vmatprep.subr.mxu0 0.0
    %2375 = vmatpush1.msra.mxu0 0.0
    %2376 = vmatprep.subr.mxu0 0.0
    %2377 = vmatpush1.msra.mxu0 0.0
    %2378 = vmatprep.subr.mxu0 0.0
    %2379 = vmatpush1.msra.mxu0 0.0
    %2380 = vmatprep.subr.mxu0 0.0
    %2381 = vmatpush1.msra.mxu0 0.0
    %2382 = vmatprep.subr.mxu0 0.0
    %2383 = vmatpush1.msra.mxu0 0.0
    %2384 = vmatprep.subr.mxu0 0.0
    %2385 = vmatpush1.msra.mxu0 0.0
    %2386 = vmatprep.subr.mxu0 0.0
    %2387 = vmatpush1.msra.mxu0 0.0
    %2388 = vmatprep.subr.mxu0 0.0
    %2389 = vmatpush1.msra.mxu0 0.0
    %2390 = vmatprep.subr.mxu0 0.0
    %2391 = vmatpush1.msra.mxu0 0.0
    %2392 = vmatprep.subr.mxu0 0.0
    %2393 = vmatpush1.msra.mxu0 0.0
    %2394 = vmatprep.subr.mxu0 0.0
    %2395 = vmatpush1.msra.mxu0 0.0
    %2396 = vmatprep.subr.mxu0 0.0
    %2397 = vmatpush1.msra.mxu0 0.0
    %2398 = vmatprep.subr.mxu0 0.0
    %v2399 = vand.u32 %v2111, 4294901760
    %2400 = vmatpush1.msra.mxu0 %v2399
    %2401 = vmatprep.subr.mxu0 0.0
    %2402 = vmatpush2.msra.mxu0 0.0
    %2403 = vmatprep.subr.mxu0 0.0
    %2404 = vmatpush2.msra.mxu0 0.0
    %2405 = vmatprep.subr.mxu0 0.0
    %2406 = vmatpush2.msra.mxu0 0.0
    %2407 = vmatprep.subr.mxu0 0.0
    %2408 = vmatpush2.msra.mxu0 0.0
    %2409 = vmatprep.subr.mxu0 0.0
    %2410 = vmatpush2.msra.mxu0 0.0
    %2411 = vmatprep.subr.mxu0 0.0
    %2412 = vmatpush2.msra.mxu0 0.0
    %2413 = vmatprep.subr.mxu0 0.0
    %2414 = vmatpush2.msra.mxu0 0.0
    %2415 = vmatprep.subr.mxu0 0.0
    %2416 = vmatpush2.msra.mxu0 0.0
    %2417 = vmatprep.subr.mxu0 0.0
    %2418 = vmatpush2.msra.mxu0 0.0
    %2419 = vmatprep.subr.mxu0 0.0
    %2420 = vmatpush2.msra.mxu0 0.0
    %2421 = vmatprep.subr.mxu0 0.0
    %2422 = vmatpush2.msra.mxu0 0.0
    %2423 = vmatprep.subr.mxu0 0.0
    %2424 = vmatpush2.msra.mxu0 0.0
    %2425 = vmatprep.subr.mxu0 0.0
    %2426 = vmatpush2.msra.mxu0 0.0
    %2427 = vmatprep.subr.mxu0 0.0
    %2428 = vmatpush2.msra.mxu0 0.0
    %2429 = vmatprep.subr.mxu0 0.0
    %2430 = vmatpush2.msra.mxu0 0.0
    %2431 = vmatprep.subr.mxu0 0.0
    %2432 = vmatpush2.msra.mxu0 0.0
    %2433 = vmatprep.mubr.f32.mxu0 0.0
    %v2434 = vand.u32 %v2114, 4294901760
    %v2435 = vsub.f32 %v2114, %v2434
    %v2436 = vand.u32 %v2435, 4294901760
    %2437 = vmatmul.mubr.f32.gmra.mxu0 %v2436
    %v2438 = vpop.f32.mrf.mxu0
    %v2439 = vadd.f32 %v2358, %v2438
    %v2440 = vpop.f32.mrf.mxu0
    %2441 = vmatprep.mubr.f32.mxu0 0.0
    %v2442 = vand.u32 %v2117, 4294901760
    %v2443 = vsub.f32 %v2117, %v2442
    %v2444 = vand.u32 %v2443, 4294901760
    %2445 = vmatmul.mubr.f32.gmra.mxu0 %v2444
    %v2446 = vpop.f32.mrf.mxu0
    %v2447 = vadd.f32 %v2365, %v2446
    %v2448 = vpop.f32.mrf.mxu0
    %2449 = vdwg.mxu0
    %2450 = vmatprep.subr.mxu0 0.0
    %2451 = vmatpush1.msra.mxu0 0.0
    %2452 = vmatprep.subr.mxu0 0.0
    %2453 = vmatpush1.msra.mxu0 0.0
    %2454 = vmatprep.subr.mxu0 0.0
    %2455 = vmatpush1.msra.mxu0 0.0
    %2456 = vmatprep.subr.mxu0 0.0
    %2457 = vmatpush1.msra.mxu0 0.0
    %2458 = vmatprep.subr.mxu0 0.0
    %2459 = vmatpush1.msra.mxu0 0.0
    %2460 = vmatprep.subr.mxu0 0.0
    %2461 = vmatpush1.msra.mxu0 0.0
    %2462 = vmatprep.subr.mxu0 0.0
    %2463 = vmatpush1.msra.mxu0 0.0
    %2464 = vmatprep.subr.mxu0 0.0
    %2465 = vmatpush1.msra.mxu0 0.0
    %2466 = vmatprep.subr.mxu0 0.0
    %2467 = vmatpush1.msra.mxu0 0.0
    %2468 = vmatprep.subr.mxu0 0.0
    %2469 = vmatpush1.msra.mxu0 0.0
    %2470 = vmatprep.subr.mxu0 0.0
    %2471 = vmatpush1.msra.mxu0 0.0
    %2472 = vmatprep.subr.mxu0 0.0
    %2473 = vmatpush1.msra.mxu0 0.0
    %2474 = vmatprep.subr.mxu0 0.0
    %2475 = vmatpush1.msra.mxu0 0.0
    %2476 = vmatprep.subr.mxu0 0.0
    %2477 = vmatpush1.msra.mxu0 0.0
    %2478 = vmatprep.subr.mxu0 0.0
    %2479 = vmatpush1.msra.mxu0 0.0
    %2480 = vmatprep.subr.mxu0 0.0
    %v2481 = vand.u32 %v2111, 4294901760
    %v2482 = vsub.f32 %v2111, %v2481
    %v2483 = vand.u32 %v2482, 4294901760
    %2484 = vmatpush1.msra.mxu0 %v2483
    %2485 = vmatprep.subr.mxu0 0.0
    %2486 = vmatpush2.msra.mxu0 0.0
    %2487 = vmatprep.subr.mxu0 0.0
    %2488 = vmatpush2.msra.mxu0 0.0
    %2489 = vmatprep.subr.mxu0 0.0
    %2490 = vmatpush2.msra.mxu0 0.0
    %2491 = vmatprep.subr.mxu0 0.0
    %2492 = vmatpush2.msra.mxu0 0.0
    %2493 = vmatprep.subr.mxu0 0.0
    %2494 = vmatpush2.msra.mxu0 0.0
    %2495 = vmatprep.subr.mxu0 0.0
    %2496 = vmatpush2.msra.mxu0 0.0
    %2497 = vmatprep.subr.mxu0 0.0
    %2498 = vmatpush2.msra.mxu0 0.0
    %2499 = vmatprep.subr.mxu0 0.0
    %2500 = vmatpush2.msra.mxu0 0.0
    %2501 = vmatprep.subr.mxu0 0.0
    %2502 = vmatpush2.msra.mxu0 0.0
    %2503 = vmatprep.subr.mxu0 0.0
    %2504 = vmatpush2.msra.mxu0 0.0
    %2505 = vmatprep.subr.mxu0 0.0
    %2506 = vmatpush2.msra.mxu0 0.0
    %2507 = vmatprep.subr.mxu0 0.0
    %2508 = vmatpush2.msra.mxu0 0.0
    %2509 = vmatprep.subr.mxu0 0.0
    %2510 = vmatpush2.msra.mxu0 0.0
    %2511 = vmatprep.subr.mxu0 0.0
    %2512 = vmatpush2.msra.mxu0 0.0
    %2513 = vmatprep.subr.mxu0 0.0
    %2514 = vmatpush2.msra.mxu0 0.0
    %2515 = vmatprep.subr.mxu0 0.0
    %2516 = vmatpush2.msra.mxu0 0.0
    %2517 = vmatprep.mubr.f32.mxu0 0.0
    %v2518 = vand.u32 %v2114, 4294901760
    %2519 = vmatmul.mubr.f32.gmra.mxu0 %v2518
    %v2520 = vpop.f32.mrf.mxu0
    %v2521 = vadd.f32 %v2439, %v2520
    %v2522 = vpop.f32.mrf.mxu0
    %2523 = vmatprep.mubr.f32.mxu0 0.0
    %v2524 = vand.u32 %v2117, 4294901760
    %2525 = vmatmul.mubr.f32.gmra.mxu0 %v2524
    %v2526 = vpop.f32.mrf.mxu0
    %v2527 = vadd.f32 %v2447, %v2526
    %v2528 = vpop.f32.mrf.mxu0
    %2529 = vdwg.mxu0
    %2530 = vmatprep.subr.mxu0 0.0
    %2531 = vmatpush1.msra.mxu0 0.0
    %2532 = vmatprep.subr.mxu0 0.0
    %2533 = vmatpush1.msra.mxu0 0.0
    %2534 = vmatprep.subr.mxu0 0.0
    %2535 = vmatpush1.msra.mxu0 0.0
    %2536 = vmatprep.subr.mxu0 0.0
    %2537 = vmatpush1.msra.mxu0 0.0
    %2538 = vmatprep.subr.mxu0 0.0
    %2539 = vmatpush1.msra.mxu0 0.0
    %2540 = vmatprep.subr.mxu0 0.0
    %2541 = vmatpush1.msra.mxu0 0.0
    %2542 = vmatprep.subr.mxu0 0.0
    %2543 = vmatpush1.msra.mxu0 0.0
    %2544 = vmatprep.subr.mxu0 0.0
    %2545 = vmatpush1.msra.mxu0 0.0
    %2546 = vmatprep.subr.mxu0 0.0
    %2547 = vmatpush1.msra.mxu0 0.0
    %2548 = vmatprep.subr.mxu0 0.0
    %2549 = vmatpush1.msra.mxu0 0.0
    %2550 = vmatprep.subr.mxu0 0.0
    %2551 = vmatpush1.msra.mxu0 0.0
    %2552 = vmatprep.subr.mxu0 0.0
    %2553 = vmatpush1.msra.mxu0 0.0
    %2554 = vmatprep.subr.mxu0 0.0
    %2555 = vmatpush1.msra.mxu0 0.0
    %2556 = vmatprep.subr.mxu0 0.0
    %2557 = vmatpush1.msra.mxu0 0.0
    %2558 = vmatprep.subr.mxu0 0.0
    %2559 = vmatpush1.msra.mxu0 0.0
    %2560 = vmatprep.subr.mxu0 0.0
    %v2561 = vand.u32 %v2111, 4294901760
    %2562 = vmatpush1.msra.mxu0 %v2561
    %2563 = vmatprep.subr.mxu0 0.0
    %2564 = vmatpush2.msra.mxu0 0.0
    %2565 = vmatprep.subr.mxu0 0.0
    %2566 = vmatpush2.msra.mxu0 0.0
    %2567 = vmatprep.subr.mxu0 0.0
    %2568 = vmatpush2.msra.mxu0 0.0
    %2569 = vmatprep.subr.mxu0 0.0
    %2570 = vmatpush2.msra.mxu0 0.0
    %2571 = vmatprep.subr.mxu0 0.0
    %2572 = vmatpush2.msra.mxu0 0.0
    %2573 = vmatprep.subr.mxu0 0.0
    %2574 = vmatpush2.msra.mxu0 0.0
    %2575 = vmatprep.subr.mxu0 0.0
    %2576 = vmatpush2.msra.mxu0 0.0
    %2577 = vmatprep.subr.mxu0 0.0
    %2578 = vmatpush2.msra.mxu0 0.0
    %2579 = vmatprep.subr.mxu0 0.0
    %2580 = vmatpush2.msra.mxu0 0.0
    %2581 = vmatprep.subr.mxu0 0.0
    %2582 = vmatpush2.msra.mxu0 0.0
    %2583 = vmatprep.subr.mxu0 0.0
    %2584 = vmatpush2.msra.mxu0 0.0
    %2585 = vmatprep.subr.mxu0 0.0
    %2586 = vmatpush2.msra.mxu0 0.0
    %2587 = vmatprep.subr.mxu0 0.0
    %2588 = vmatpush2.msra.mxu0 0.0
    %2589 = vmatprep.subr.mxu0 0.0
    %2590 = vmatpush2.msra.mxu0 0.0
    %2591 = vmatprep.subr.mxu0 0.0
    %2592 = vmatpush2.msra.mxu0 0.0
    %2593 = vmatprep.subr.mxu0 0.0
    %2594 = vmatpush2.msra.mxu0 0.0
    %2595 = vmatprep.mubr.f32.mxu0 0.0
    %v2596 = vand.u32 %v2114, 4294901760
    %2597 = vmatmul.mubr.f32.gmra.mxu0 %v2596
    %v2598 = vpop.f32.mrf.mxu0
    %v2599 = vadd.f32 %v2521, %v2598
    %v2600 = vpop.f32.mrf.mxu0
    %2601 = vmatprep.mubr.f32.mxu0 0.0
    %v2602 = vand.u32 %v2117, 4294901760
    %2603 = vmatmul.mubr.f32.gmra.mxu0 %v2602
    %v2604 = vpop.f32.mrf.mxu0
    %v2605 = vadd.f32 %v2527, %v2604
    %v2606 = vpop.f32.mrf.mxu0
    %2607 = vdwg.mxu0
    %v2608 = vadd.f32 %v2092, %v2599
    %v2609 = vadd.f32 %v2093, %v2605
    %v2610 = vld [vmem:[#allocation2 + $0x8] sm:$0xff]
    %s2611 = scalar_lea.vmem %s3, 64
    %v2612 = vld [vmem:[%s2611] sm:$0xff]
    %v2613 = vld [vmem:[%s2611 + $0x8] sm:$0xff]
    %v2615 = vsel %vm586, %v2612, 0
    %v2618 = vsel %vm586, %v2613, 0
    %2620 = vmatprep.subr.mxu0 0.0
    %2621 = vmatpush1.msra.mxu0 0.0
    %2622 = vmatprep.subr.mxu0 0.0
    %2623 = vmatpush1.msra.mxu0 0.0
    %2624 = vmatprep.subr.mxu0 0.0
    %2625 = vmatpush1.msra.mxu0 0.0
    %2626 = vmatprep.subr.mxu0 0.0
    %2627 = vmatpush1.msra.mxu0 0.0
    %2628 = vmatprep.subr.mxu0 0.0
    %2629 = vmatpush1.msra.mxu0 0.0
    %2630 = vmatprep.subr.mxu0 0.0
    %2631 = vmatpush1.msra.mxu0 0.0
    %2632 = vmatprep.subr.mxu0 0.0
    %2633 = vmatpush1.msra.mxu0 0.0
    %2634 = vmatprep.subr.mxu0 0.0
    %2635 = vmatpush1.msra.mxu0 0.0
    %2636 = vmatprep.subr.mxu0 0.0
    %2637 = vmatpush1.msra.mxu0 0.0
    %2638 = vmatprep.subr.mxu0 0.0
    %2639 = vmatpush1.msra.mxu0 0.0
    %2640 = vmatprep.subr.mxu0 0.0
    %2641 = vmatpush1.msra.mxu0 0.0
    %2642 = vmatprep.subr.mxu0 0.0
    %2643 = vmatpush1.msra.mxu0 0.0
    %2644 = vmatprep.subr.mxu0 0.0
    %2645 = vmatpush1.msra.mxu0 0.0
    %2646 = vmatprep.subr.mxu0 0.0
    %2647 = vmatpush1.msra.mxu0 0.0
    %2648 = vmatprep.subr.mxu0 0.0
    %2649 = vmatpush1.msra.mxu0 0.0
    %2650 = vmatprep.subr.mxu0 0.0
    %v2651 = vand.u32 %v2610, 4294901760
    %2652 = vmatpush1.msra.mxu0 %v2651
    %2653 = vmatprep.subr.mxu0 0.0
    %2654 = vmatpush2.msra.mxu0 0.0
    %2655 = vmatprep.subr.mxu0 0.0
    %2656 = vmatpush2.msra.mxu0 0.0
    %2657 = vmatprep.subr.mxu0 0.0
    %2658 = vmatpush2.msra.mxu0 0.0
    %2659 = vmatprep.subr.mxu0 0.0
    %2660 = vmatpush2.msra.mxu0 0.0
    %2661 = vmatprep.subr.mxu0 0.0
    %2662 = vmatpush2.msra.mxu0 0.0
    %2663 = vmatprep.subr.mxu0 0.0
    %2664 = vmatpush2.msra.mxu0 0.0
    %2665 = vmatprep.subr.mxu0 0.0
    %2666 = vmatpush2.msra.mxu0 0.0
    %2667 = vmatprep.subr.mxu0 0.0
    %2668 = vmatpush2.msra.mxu0 0.0
    %2669 = vmatprep.subr.mxu0 0.0
    %2670 = vmatpush2.msra.mxu0 0.0
    %2671 = vmatprep.subr.mxu0 0.0
    %2672 = vmatpush2.msra.mxu0 0.0
    %2673 = vmatprep.subr.mxu0 0.0
    %2674 = vmatpush2.msra.mxu0 0.0
    %2675 = vmatprep.subr.mxu0 0.0
    %2676 = vmatpush2.msra.mxu0 0.0
    %2677 = vmatprep.subr.mxu0 0.0
    %2678 = vmatpush2.msra.mxu0 0.0
    %2679 = vmatprep.subr.mxu0 0.0
    %2680 = vmatpush2.msra.mxu0 0.0
    %2681 = vmatprep.subr.mxu0 0.0
    %2682 = vmatpush2.msra.mxu0 0.0
    %2683 = vmatprep.subr.mxu0 0.0
    %2684 = vmatpush2.msra.mxu0 0.0
    %2685 = vmatprep.mubr.f32.mxu0 0.0
    %v2686 = vand.u32 %v2615, 4294901760
    %v2687 = vsub.f32 %v2615, %v2686
    %v2688 = vand.u32 %v2687, 4294901760
    %v2689 = vsub.f32 %v2687, %v2688
    %v2690 = vand.u32 %v2689, 4294901760
    %2691 = vmatmul.mubr.f32.gmra.mxu0 %v2690
    %v2692 = vpop.f32.mrf.mxu0
    %v2693 = vadd.f32 0.0, %v2692
    %v2694 = vpop.f32.mrf.mxu0
    %2695 = vmatprep.mubr.f32.mxu0 0.0
    %v2696 = vand.u32 %v2618, 4294901760
    %v2697 = vsub.f32 %v2618, %v2696
    %v2698 = vand.u32 %v2697, 4294901760
    %v2699 = vsub.f32 %v2697, %v2698
    %v2700 = vand.u32 %v2699, 4294901760
    %2701 = vmatmul.mubr.f32.gmra.mxu0 %v2700
    %v2702 = vpop.f32.mrf.mxu0
    %v2703 = vadd.f32 0.0, %v2702
    %v2704 = vpop.f32.mrf.mxu0
    %2705 = vdwg.mxu0
    %2706 = vmatprep.subr.mxu0 0.0
    %2707 = vmatpush1.msra.mxu0 0.0
    %2708 = vmatprep.subr.mxu0 0.0
    %2709 = vmatpush1.msra.mxu0 0.0
    %2710 = vmatprep.subr.mxu0 0.0
    %2711 = vmatpush1.msra.mxu0 0.0
    %2712 = vmatprep.subr.mxu0 0.0
    %2713 = vmatpush1.msra.mxu0 0.0
    %2714 = vmatprep.subr.mxu0 0.0
    %2715 = vmatpush1.msra.mxu0 0.0
    %2716 = vmatprep.subr.mxu0 0.0
    %2717 = vmatpush1.msra.mxu0 0.0
    %2718 = vmatprep.subr.mxu0 0.0
    %2719 = vmatpush1.msra.mxu0 0.0
    %2720 = vmatprep.subr.mxu0 0.0
    %2721 = vmatpush1.msra.mxu0 0.0
    %2722 = vmatprep.subr.mxu0 0.0
    %2723 = vmatpush1.msra.mxu0 0.0
    %2724 = vmatprep.subr.mxu0 0.0
    %2725 = vmatpush1.msra.mxu0 0.0
    %2726 = vmatprep.subr.mxu0 0.0
    %2727 = vmatpush1.msra.mxu0 0.0
    %2728 = vmatprep.subr.mxu0 0.0
    %2729 = vmatpush1.msra.mxu0 0.0
    %2730 = vmatprep.subr.mxu0 0.0
    %2731 = vmatpush1.msra.mxu0 0.0
    %2732 = vmatprep.subr.mxu0 0.0
    %2733 = vmatpush1.msra.mxu0 0.0
    %2734 = vmatprep.subr.mxu0 0.0
    %2735 = vmatpush1.msra.mxu0 0.0
    %2736 = vmatprep.subr.mxu0 0.0
    %v2737 = vand.u32 %v2610, 4294901760
    %v2738 = vsub.f32 %v2610, %v2737
    %v2739 = vand.u32 %v2738, 4294901760
    %v2740 = vsub.f32 %v2738, %v2739
    %v2741 = vand.u32 %v2740, 4294901760
    %2742 = vmatpush1.msra.mxu0 %v2741
    %2743 = vmatprep.subr.mxu0 0.0
    %2744 = vmatpush2.msra.mxu0 0.0
    %2745 = vmatprep.subr.mxu0 0.0
    %2746 = vmatpush2.msra.mxu0 0.0
    %2747 = vmatprep.subr.mxu0 0.0
    %2748 = vmatpush2.msra.mxu0 0.0
    %2749 = vmatprep.subr.mxu0 0.0
    %2750 = vmatpush2.msra.mxu0 0.0
    %2751 = vmatprep.subr.mxu0 0.0
    %2752 = vmatpush2.msra.mxu0 0.0
    %2753 = vmatprep.subr.mxu0 0.0
    %2754 = vmatpush2.msra.mxu0 0.0
    %2755 = vmatprep.subr.mxu0 0.0
    %2756 = vmatpush2.msra.mxu0 0.0
    %2757 = vmatprep.subr.mxu0 0.0
    %2758 = vmatpush2.msra.mxu0 0.0
    %2759 = vmatprep.subr.mxu0 0.0
    %2760 = vmatpush2.msra.mxu0 0.0
    %2761 = vmatprep.subr.mxu0 0.0
    %2762 = vmatpush2.msra.mxu0 0.0
    %2763 = vmatprep.subr.mxu0 0.0
    %2764 = vmatpush2.msra.mxu0 0.0
    %2765 = vmatprep.subr.mxu0 0.0
    %2766 = vmatpush2.msra.mxu0 0.0
    %2767 = vmatprep.subr.mxu0 0.0
    %2768 = vmatpush2.msra.mxu0 0.0
    %2769 = vmatprep.subr.mxu0 0.0
    %2770 = vmatpush2.msra.mxu0 0.0
    %2771 = vmatprep.subr.mxu0 0.0
    %2772 = vmatpush2.msra.mxu0 0.0
    %2773 = vmatprep.subr.mxu0 0.0
    %2774 = vmatpush2.msra.mxu0 0.0
    %2775 = vmatprep.mubr.f32.mxu0 0.0
    %v2776 = vand.u32 %v2615, 4294901760
    %2777 = vmatmul.mubr.f32.gmra.mxu0 %v2776
    %v2778 = vpop.f32.mrf.mxu0
    %v2779 = vadd.f32 %v2693, %v2778
    %v2780 = vpop.f32.mrf.mxu0
    %2781 = vmatprep.mubr.f32.mxu0 0.0
    %v2782 = vand.u32 %v2618, 4294901760
    %2783 = vmatmul.mubr.f32.gmra.mxu0 %v2782
    %v2784 = vpop.f32.mrf.mxu0
    %v2785 = vadd.f32 %v2703, %v2784
    %v2786 = vpop.f32.mrf.mxu0
    %2787 = vdwg.mxu0
    %2788 = vmatprep.subr.mxu0 0.0
    %2789 = vmatpush1.msra.mxu0 0.0
    %2790 = vmatprep.subr.mxu0 0.0
    %2791 = vmatpush1.msra.mxu0 0.0
    %2792 = vmatprep.subr.mxu0 0.0
    %2793 = vmatpush1.msra.mxu0 0.0
    %2794 = vmatprep.subr.mxu0 0.0
    %2795 = vmatpush1.msra.mxu0 0.0
    %2796 = vmatprep.subr.mxu0 0.0
    %2797 = vmatpush1.msra.mxu0 0.0
    %2798 = vmatprep.subr.mxu0 0.0
    %2799 = vmatpush1.msra.mxu0 0.0
    %2800 = vmatprep.subr.mxu0 0.0
    %2801 = vmatpush1.msra.mxu0 0.0
    %2802 = vmatprep.subr.mxu0 0.0
    %2803 = vmatpush1.msra.mxu0 0.0
    %2804 = vmatprep.subr.mxu0 0.0
    %2805 = vmatpush1.msra.mxu0 0.0
    %2806 = vmatprep.subr.mxu0 0.0
    %2807 = vmatpush1.msra.mxu0 0.0
    %2808 = vmatprep.subr.mxu0 0.0
    %2809 = vmatpush1.msra.mxu0 0.0
    %2810 = vmatprep.subr.mxu0 0.0
    %2811 = vmatpush1.msra.mxu0 0.0
    %2812 = vmatprep.subr.mxu0 0.0
    %2813 = vmatpush1.msra.mxu0 0.0
    %2814 = vmatprep.subr.mxu0 0.0
    %2815 = vmatpush1.msra.mxu0 0.0
    %2816 = vmatprep.subr.mxu0 0.0
    %2817 = vmatpush1.msra.mxu0 0.0
    %2818 = vmatprep.subr.mxu0 0.0
    %v2819 = vand.u32 %v2610, 4294901760
    %v2820 = vsub.f32 %v2610, %v2819
    %2821 = vmatpush1.msra.mxu0 %v2820
    %2822 = vmatprep.subr.mxu0 0.0
    %2823 = vmatpush2.msra.mxu0 0.0
    %2824 = vmatprep.subr.mxu0 0.0
    %2825 = vmatpush2.msra.mxu0 0.0
    %2826 = vmatprep.subr.mxu0 0.0
    %2827 = vmatpush2.msra.mxu0 0.0
    %2828 = vmatprep.subr.mxu0 0.0
    %2829 = vmatpush2.msra.mxu0 0.0
    %2830 = vmatprep.subr.mxu0 0.0
    %2831 = vmatpush2.msra.mxu0 0.0
    %2832 = vmatprep.subr.mxu0 0.0
    %2833 = vmatpush2.msra.mxu0 0.0
    %2834 = vmatprep.subr.mxu0 0.0
    %2835 = vmatpush2.msra.mxu0 0.0
    %2836 = vmatprep.subr.mxu0 0.0
    %2837 = vmatpush2.msra.mxu0 0.0
    %2838 = vmatprep.subr.mxu0 0.0
    %2839 = vmatpush2.msra.mxu0 0.0
    %2840 = vmatprep.subr.mxu0 0.0
    %2841 = vmatpush2.msra.mxu0 0.0
    %2842 = vmatprep.subr.mxu0 0.0
    %2843 = vmatpush2.msra.mxu0 0.0
    %2844 = vmatprep.subr.mxu0 0.0
    %2845 = vmatpush2.msra.mxu0 0.0
    %2846 = vmatprep.subr.mxu0 0.0
    %2847 = vmatpush2.msra.mxu0 0.0
    %2848 = vmatprep.subr.mxu0 0.0
    %2849 = vmatpush2.msra.mxu0 0.0
    %2850 = vmatprep.subr.mxu0 0.0
    %2851 = vmatpush2.msra.mxu0 0.0
    %2852 = vmatprep.subr.mxu0 0.0
    %2853 = vmatpush2.msra.mxu0 0.0
    %2854 = vmatprep.mubr.f32.mxu0 0.0
    %v2855 = vand.u32 %v2615, 4294901760
    %v2856 = vsub.f32 %v2615, %v2855
    %2857 = vmatmul.mubr.f32.gmra.mxu0 %v2856
    %v2858 = vpop.f32.mrf.mxu0
    %v2859 = vadd.f32 %v2779, %v2858
    %v2860 = vpop.f32.mrf.mxu0
    %2861 = vmatprep.mubr.f32.mxu0 0.0
    %v2862 = vand.u32 %v2618, 4294901760
    %v2863 = vsub.f32 %v2618, %v2862
    %2864 = vmatmul.mubr.f32.gmra.mxu0 %v2863
    %v2865 = vpop.f32.mrf.mxu0
    %v2866 = vadd.f32 %v2785, %v2865
    %v2867 = vpop.f32.mrf.mxu0
    %2868 = vdwg.mxu0
    %2869 = vmatprep.subr.mxu0 0.0
    %2870 = vmatpush1.msra.mxu0 0.0
    %2871 = vmatprep.subr.mxu0 0.0
    %2872 = vmatpush1.msra.mxu0 0.0
    %2873 = vmatprep.subr.mxu0 0.0
    %2874 = vmatpush1.msra.mxu0 0.0
    %2875 = vmatprep.subr.mxu0 0.0
    %2876 = vmatpush1.msra.mxu0 0.0
    %2877 = vmatprep.subr.mxu0 0.0
    %2878 = vmatpush1.msra.mxu0 0.0
    %2879 = vmatprep.subr.mxu0 0.0
    %2880 = vmatpush1.msra.mxu0 0.0
    %2881 = vmatprep.subr.mxu0 0.0
    %2882 = vmatpush1.msra.mxu0 0.0
    %2883 = vmatprep.subr.mxu0 0.0
    %2884 = vmatpush1.msra.mxu0 0.0
    %2885 = vmatprep.subr.mxu0 0.0
    %2886 = vmatpush1.msra.mxu0 0.0
    %2887 = vmatprep.subr.mxu0 0.0
    %2888 = vmatpush1.msra.mxu0 0.0
    %2889 = vmatprep.subr.mxu0 0.0
    %2890 = vmatpush1.msra.mxu0 0.0
    %2891 = vmatprep.subr.mxu0 0.0
    %2892 = vmatpush1.msra.mxu0 0.0
    %2893 = vmatprep.subr.mxu0 0.0
    %2894 = vmatpush1.msra.mxu0 0.0
    %2895 = vmatprep.subr.mxu0 0.0
    %2896 = vmatpush1.msra.mxu0 0.0
    %2897 = vmatprep.subr.mxu0 0.0
    %2898 = vmatpush1.msra.mxu0 0.0
    %2899 = vmatprep.subr.mxu0 0.0
    %v2900 = vand.u32 %v2610, 4294901760
    %2901 = vmatpush1.msra.mxu0 %v2900
    %2902 = vmatprep.subr.mxu0 0.0
    %2903 = vmatpush2.msra.mxu0 0.0
    %2904 = vmatprep.subr.mxu0 0.0
    %2905 = vmatpush2.msra.mxu0 0.0
    %2906 = vmatprep.subr.mxu0 0.0
    %2907 = vmatpush2.msra.mxu0 0.0
    %2908 = vmatprep.subr.mxu0 0.0
    %2909 = vmatpush2.msra.mxu0 0.0
    %2910 = vmatprep.subr.mxu0 0.0
    %2911 = vmatpush2.msra.mxu0 0.0
    %2912 = vmatprep.subr.mxu0 0.0
    %2913 = vmatpush2.msra.mxu0 0.0
    %2914 = vmatprep.subr.mxu0 0.0
    %2915 = vmatpush2.msra.mxu0 0.0
    %2916 = vmatprep.subr.mxu0 0.0
    %2917 = vmatpush2.msra.mxu0 0.0
    %2918 = vmatprep.subr.mxu0 0.0
    %2919 = vmatpush2.msra.mxu0 0.0
    %2920 = vmatprep.subr.mxu0 0.0
    %2921 = vmatpush2.msra.mxu0 0.0
    %2922 = vmatprep.subr.mxu0 0.0
    %2923 = vmatpush2.msra.mxu0 0.0
    %2924 = vmatprep.subr.mxu0 0.0
    %2925 = vmatpush2.msra.mxu0 0.0
    %2926 = vmatprep.subr.mxu0 0.0
    %2927 = vmatpush2.msra.mxu0 0.0
    %2928 = vmatprep.subr.mxu0 0.0
    %2929 = vmatpush2.msra.mxu0 0.0
    %2930 = vmatprep.subr.mxu0 0.0
    %2931 = vmatpush2.msra.mxu0 0.0
    %2932 = vmatprep.subr.mxu0 0.0
    %2933 = vmatpush2.msra.mxu0 0.0
    %2934 = vmatprep.mubr.f32.mxu0 0.0
    %v2935 = vand.u32 %v2615, 4294901760
    %v2936 = vsub.f32 %v2615, %v2935
    %v2937 = vand.u32 %v2936, 4294901760
    %2938 = vmatmul.mubr.f32.gmra.mxu0 %v2937
    %v2939 = vpop.f32.mrf.mxu0
    %v2940 = vadd.f32 %v2859, %v2939
    %v2941 = vpop.f32.mrf.mxu0
    %2942 = vmatprep.mubr.f32.mxu0 0.0
    %v2943 = vand.u32 %v2618, 4294901760
    %v2944 = vsub.f32 %v2618, %v2943
    %v2945 = vand.u32 %v2944, 4294901760
    %2946 = vmatmul.mubr.f32.gmra.mxu0 %v2945
    %v2947 = vpop.f32.mrf.mxu0
    %v2948 = vadd.f32 %v2866, %v2947
    %v2949 = vpop.f32.mrf.mxu0
    %2950 = vdwg.mxu0
    %2951 = vmatprep.subr.mxu0 0.0
    %2952 = vmatpush1.msra.mxu0 0.0
    %2953 = vmatprep.subr.mxu0 0.0
    %2954 = vmatpush1.msra.mxu0 0.0
    %2955 = vmatprep.subr.mxu0 0.0
    %2956 = vmatpush1.msra.mxu0 0.0
    %2957 = vmatprep.subr.mxu0 0.0
    %2958 = vmatpush1.msra.mxu0 0.0
    %2959 = vmatprep.subr.mxu0 0.0
    %2960 = vmatpush1.msra.mxu0 0.0
    %2961 = vmatprep.subr.mxu0 0.0
    %2962 = vmatpush1.msra.mxu0 0.0
    %2963 = vmatprep.subr.mxu0 0.0
    %2964 = vmatpush1.msra.mxu0 0.0
    %2965 = vmatprep.subr.mxu0 0.0
    %2966 = vmatpush1.msra.mxu0 0.0
    %2967 = vmatprep.subr.mxu0 0.0
    %2968 = vmatpush1.msra.mxu0 0.0
    %2969 = vmatprep.subr.mxu0 0.0
    %2970 = vmatpush1.msra.mxu0 0.0
    %2971 = vmatprep.subr.mxu0 0.0
    %2972 = vmatpush1.msra.mxu0 0.0
    %2973 = vmatprep.subr.mxu0 0.0
    %2974 = vmatpush1.msra.mxu0 0.0
    %2975 = vmatprep.subr.mxu0 0.0
    %2976 = vmatpush1.msra.mxu0 0.0
    %2977 = vmatprep.subr.mxu0 0.0
    %2978 = vmatpush1.msra.mxu0 0.0
    %2979 = vmatprep.subr.mxu0 0.0
    %2980 = vmatpush1.msra.mxu0 0.0
    %2981 = vmatprep.subr.mxu0 0.0
    %v2982 = vand.u32 %v2610, 4294901760
    %v2983 = vsub.f32 %v2610, %v2982
    %v2984 = vand.u32 %v2983, 4294901760
    %2985 = vmatpush1.msra.mxu0 %v2984
    %2986 = vmatprep.subr.mxu0 0.0
    %2987 = vmatpush2.msra.mxu0 0.0
    %2988 = vmatprep.subr.mxu0 0.0
    %2989 = vmatpush2.msra.mxu0 0.0
    %2990 = vmatprep.subr.mxu0 0.0
    %2991 = vmatpush2.msra.mxu0 0.0
    %2992 = vmatprep.subr.mxu0 0.0
    %2993 = vmatpush2.msra.mxu0 0.0
    %2994 = vmatprep.subr.mxu0 0.0
    %2995 = vmatpush2.msra.mxu0 0.0
    %2996 = vmatprep.subr.mxu0 0.0
    %2997 = vmatpush2.msra.mxu0 0.0
    %2998 = vmatprep.subr.mxu0 0.0
    %2999 = vmatpush2.msra.mxu0 0.0
    %3000 = vmatprep.subr.mxu0 0.0
    %3001 = vmatpush2.msra.mxu0 0.0
    %3002 = vmatprep.subr.mxu0 0.0
    %3003 = vmatpush2.msra.mxu0 0.0
    %3004 = vmatprep.subr.mxu0 0.0
    %3005 = vmatpush2.msra.mxu0 0.0
    %3006 = vmatprep.subr.mxu0 0.0
    %3007 = vmatpush2.msra.mxu0 0.0
    %3008 = vmatprep.subr.mxu0 0.0
    %3009 = vmatpush2.msra.mxu0 0.0
    %3010 = vmatprep.subr.mxu0 0.0
    %3011 = vmatpush2.msra.mxu0 0.0
    %3012 = vmatprep.subr.mxu0 0.0
    %3013 = vmatpush2.msra.mxu0 0.0
    %3014 = vmatprep.subr.mxu0 0.0
    %3015 = vmatpush2.msra.mxu0 0.0
    %3016 = vmatprep.subr.mxu0 0.0
    %3017 = vmatpush2.msra.mxu0 0.0
    %3018 = vmatprep.mubr.f32.mxu0 0.0
    %v3019 = vand.u32 %v2615, 4294901760
    %3020 = vmatmul.mubr.f32.gmra.mxu0 %v3019
    %v3021 = vpop.f32.mrf.mxu0
    %v3022 = vadd.f32 %v2940, %v3021
    %v3023 = vpop.f32.mrf.mxu0
    %3024 = vmatprep.mubr.f32.mxu0 0.0
    %v3025 = vand.u32 %v2618, 4294901760
    %3026 = vmatmul.mubr.f32.gmra.mxu0 %v3025
    %v3027 = vpop.f32.mrf.mxu0
    %v3028 = vadd.f32 %v2948, %v3027
    %v3029 = vpop.f32.mrf.mxu0
    %3030 = vdwg.mxu0
    %3031 = vmatprep.subr.mxu0 0.0
    %3032 = vmatpush1.msra.mxu0 0.0
    %3033 = vmatprep.subr.mxu0 0.0
    %3034 = vmatpush1.msra.mxu0 0.0
    %3035 = vmatprep.subr.mxu0 0.0
    %3036 = vmatpush1.msra.mxu0 0.0
    %3037 = vmatprep.subr.mxu0 0.0
    %3038 = vmatpush1.msra.mxu0 0.0
    %3039 = vmatprep.subr.mxu0 0.0
    %3040 = vmatpush1.msra.mxu0 0.0
    %3041 = vmatprep.subr.mxu0 0.0
    %3042 = vmatpush1.msra.mxu0 0.0
    %3043 = vmatprep.subr.mxu0 0.0
    %3044 = vmatpush1.msra.mxu0 0.0
    %3045 = vmatprep.subr.mxu0 0.0
    %3046 = vmatpush1.msra.mxu0 0.0
    %3047 = vmatprep.subr.mxu0 0.0
    %3048 = vmatpush1.msra.mxu0 0.0
    %3049 = vmatprep.subr.mxu0 0.0
    %3050 = vmatpush1.msra.mxu0 0.0
    %3051 = vmatprep.subr.mxu0 0.0
    %3052 = vmatpush1.msra.mxu0 0.0
    %3053 = vmatprep.subr.mxu0 0.0
    %3054 = vmatpush1.msra.mxu0 0.0
    %3055 = vmatprep.subr.mxu0 0.0
    %3056 = vmatpush1.msra.mxu0 0.0
    %3057 = vmatprep.subr.mxu0 0.0
    %3058 = vmatpush1.msra.mxu0 0.0
    %3059 = vmatprep.subr.mxu0 0.0
    %3060 = vmatpush1.msra.mxu0 0.0
    %3061 = vmatprep.subr.mxu0 0.0
    %v3062 = vand.u32 %v2610, 4294901760
    %3063 = vmatpush1.msra.mxu0 %v3062
    %3064 = vmatprep.subr.mxu0 0.0
    %3065 = vmatpush2.msra.mxu0 0.0
    %3066 = vmatprep.subr.mxu0 0.0
    %3067 = vmatpush2.msra.mxu0 0.0
    %3068 = vmatprep.subr.mxu0 0.0
    %3069 = vmatpush2.msra.mxu0 0.0
    %3070 = vmatprep.subr.mxu0 0.0
    %3071 = vmatpush2.msra.mxu0 0.0
    %3072 = vmatprep.subr.mxu0 0.0
    %3073 = vmatpush2.msra.mxu0 0.0
    %3074 = vmatprep.subr.mxu0 0.0
    %3075 = vmatpush2.msra.mxu0 0.0
    %3076 = vmatprep.subr.mxu0 0.0
    %3077 = vmatpush2.msra.mxu0 0.0
    %3078 = vmatprep.subr.mxu0 0.0
    %3079 = vmatpush2.msra.mxu0 0.0
    %3080 = vmatprep.subr.mxu0 0.0
    %3081 = vmatpush2.msra.mxu0 0.0
    %3082 = vmatprep.subr.mxu0 0.0
    %3083 = vmatpush2.msra.mxu0 0.0
    %3084 = vmatprep.subr.mxu0 0.0
    %3085 = vmatpush2.msra.mxu0 0.0
    %3086 = vmatprep.subr.mxu0 0.0
    %3087 = vmatpush2.msra.mxu0 0.0
    %3088 = vmatprep.subr.mxu0 0.0
    %3089 = vmatpush2.msra.mxu0 0.0
    %3090 = vmatprep.subr.mxu0 0.0
    %3091 = vmatpush2.msra.mxu0 0.0
    %3092 = vmatprep.subr.mxu0 0.0
    %3093 = vmatpush2.msra.mxu0 0.0
    %3094 = vmatprep.subr.mxu0 0.0
    %3095 = vmatpush2.msra.mxu0 0.0
    %3096 = vmatprep.mubr.f32.mxu0 0.0
    %v3097 = vand.u32 %v2615, 4294901760
    %3098 = vmatmul.mubr.f32.gmra.mxu0 %v3097
    %v3099 = vpop.f32.mrf.mxu0
    %v3100 = vadd.f32 %v3022, %v3099
    %v3101 = vpop.f32.mrf.mxu0
    %3102 = vmatprep.mubr.f32.mxu0 0.0
    %v3103 = vand.u32 %v2618, 4294901760
    %3104 = vmatmul.mubr.f32.gmra.mxu0 %v3103
    %v3105 = vpop.f32.mrf.mxu0
    %v3106 = vadd.f32 %v3028, %v3105
    %v3107 = vpop.f32.mrf.mxu0
    %3108 = vdwg.mxu0
    %v3109 = vadd.f32 %v2608, %v3100
    %v3110 = vadd.f32 %v2609, %v3106
    %s3111 = scalar_lea.vmem %s3, 80
    %v3112 = vld [vmem:[%s3111] sm:$0xff]
    %v3113 = vld [vmem:[%s3111 + $0x8] sm:$0xff]
    %v3115 = vsel %vm586, %v3112, 0
    %v3118 = vsel %vm586, %v3113, 0
    %3120 = vmatprep.subr.mxu0 0.0
    %3121 = vmatpush1.msra.mxu0 0.0
    %3122 = vmatprep.subr.mxu0 0.0
    %3123 = vmatpush1.msra.mxu0 0.0
    %3124 = vmatprep.subr.mxu0 0.0
    %3125 = vmatpush1.msra.mxu0 0.0
    %3126 = vmatprep.subr.mxu0 0.0
    %3127 = vmatpush1.msra.mxu0 0.0
    %3128 = vmatprep.subr.mxu0 0.0
    %3129 = vmatpush1.msra.mxu0 0.0
    %3130 = vmatprep.subr.mxu0 0.0
    %3131 = vmatpush1.msra.mxu0 0.0
    %3132 = vmatprep.subr.mxu0 0.0
    %3133 = vmatpush1.msra.mxu0 0.0
    %3134 = vmatprep.subr.mxu0 0.0
    %3135 = vmatpush1.msra.mxu0 0.0
    %3136 = vmatprep.subr.mxu0 0.0
    %3137 = vmatpush1.msra.mxu0 0.0
    %3138 = vmatprep.subr.mxu0 0.0
    %3139 = vmatpush1.msra.mxu0 0.0
    %3140 = vmatprep.subr.mxu0 0.0
    %3141 = vmatpush1.msra.mxu0 0.0
    %3142 = vmatprep.subr.mxu0 0.0
    %3143 = vmatpush1.msra.mxu0 0.0
    %3144 = vmatprep.subr.mxu0 0.0
    %3145 = vmatpush1.msra.mxu0 0.0
    %3146 = vmatprep.subr.mxu0 0.0
    %3147 = vmatpush1.msra.mxu0 0.0
    %3148 = vmatprep.subr.mxu0 0.0
    %3149 = vmatpush1.msra.mxu0 0.0
    %3150 = vmatprep.subr.mxu0 0.0
    %v3151 = vand.u32 %v2095, 4294901760
    %3152 = vmatpush1.msra.mxu0 %v3151
    %3153 = vmatprep.subr.mxu0 0.0
    %3154 = vmatpush2.msra.mxu0 0.0
    %3155 = vmatprep.subr.mxu0 0.0
    %3156 = vmatpush2.msra.mxu0 0.0
    %3157 = vmatprep.subr.mxu0 0.0
    %3158 = vmatpush2.msra.mxu0 0.0
    %3159 = vmatprep.subr.mxu0 0.0
    %3160 = vmatpush2.msra.mxu0 0.0
    %3161 = vmatprep.subr.mxu0 0.0
    %3162 = vmatpush2.msra.mxu0 0.0
    %3163 = vmatprep.subr.mxu0 0.0
    %3164 = vmatpush2.msra.mxu0 0.0
    %3165 = vmatprep.subr.mxu0 0.0
    %3166 = vmatpush2.msra.mxu0 0.0
    %3167 = vmatprep.subr.mxu0 0.0
    %3168 = vmatpush2.msra.mxu0 0.0
    %3169 = vmatprep.subr.mxu0 0.0
    %3170 = vmatpush2.msra.mxu0 0.0
    %3171 = vmatprep.subr.mxu0 0.0
    %3172 = vmatpush2.msra.mxu0 0.0
    %3173 = vmatprep.subr.mxu0 0.0
    %3174 = vmatpush2.msra.mxu0 0.0
    %3175 = vmatprep.subr.mxu0 0.0
    %3176 = vmatpush2.msra.mxu0 0.0
    %3177 = vmatprep.subr.mxu0 0.0
    %3178 = vmatpush2.msra.mxu0 0.0
    %3179 = vmatprep.subr.mxu0 0.0
    %3180 = vmatpush2.msra.mxu0 0.0
    %3181 = vmatprep.subr.mxu0 0.0
    %3182 = vmatpush2.msra.mxu0 0.0
    %3183 = vmatprep.subr.mxu0 0.0
    %3184 = vmatpush2.msra.mxu0 0.0
    %3185 = vmatprep.mubr.f32.mxu0 0.0
    %v3186 = vand.u32 %v3115, 4294901760
    %v3187 = vsub.f32 %v3115, %v3186
    %v3188 = vand.u32 %v3187, 4294901760
    %v3189 = vsub.f32 %v3187, %v3188
    %v3190 = vand.u32 %v3189, 4294901760
    %3191 = vmatmul.mubr.f32.gmra.mxu0 %v3190
    %v3192 = vpop.f32.mrf.mxu0
    %v3193 = vadd.f32 0.0, %v3192
    %v3194 = vpop.f32.mrf.mxu0
    %3195 = vmatprep.mubr.f32.mxu0 0.0
    %v3196 = vand.u32 %v3118, 4294901760
    %v3197 = vsub.f32 %v3118, %v3196
    %v3198 = vand.u32 %v3197, 4294901760
    %v3199 = vsub.f32 %v3197, %v3198
    %v3200 = vand.u32 %v3199, 4294901760
    %3201 = vmatmul.mubr.f32.gmra.mxu0 %v3200
    %v3202 = vpop.f32.mrf.mxu0
    %v3203 = vadd.f32 0.0, %v3202
    %v3204 = vpop.f32.mrf.mxu0
    %3205 = vdwg.mxu0
    %3206 = vmatprep.subr.mxu0 0.0
    %3207 = vmatpush1.msra.mxu0 0.0
    %3208 = vmatprep.subr.mxu0 0.0
    %3209 = vmatpush1.msra.mxu0 0.0
    %3210 = vmatprep.subr.mxu0 0.0
    %3211 = vmatpush1.msra.mxu0 0.0
    %3212 = vmatprep.subr.mxu0 0.0
    %3213 = vmatpush1.msra.mxu0 0.0
    %3214 = vmatprep.subr.mxu0 0.0
    %3215 = vmatpush1.msra.mxu0 0.0
    %3216 = vmatprep.subr.mxu0 0.0
    %3217 = vmatpush1.msra.mxu0 0.0
    %3218 = vmatprep.subr.mxu0 0.0
    %3219 = vmatpush1.msra.mxu0 0.0
    %3220 = vmatprep.subr.mxu0 0.0
    %3221 = vmatpush1.msra.mxu0 0.0
    %3222 = vmatprep.subr.mxu0 0.0
    %3223 = vmatpush1.msra.mxu0 0.0
    %3224 = vmatprep.subr.mxu0 0.0
    %3225 = vmatpush1.msra.mxu0 0.0
    %3226 = vmatprep.subr.mxu0 0.0
    %3227 = vmatpush1.msra.mxu0 0.0
    %3228 = vmatprep.subr.mxu0 0.0
    %3229 = vmatpush1.msra.mxu0 0.0
    %3230 = vmatprep.subr.mxu0 0.0
    %3231 = vmatpush1.msra.mxu0 0.0
    %3232 = vmatprep.subr.mxu0 0.0
    %3233 = vmatpush1.msra.mxu0 0.0
    %3234 = vmatprep.subr.mxu0 0.0
    %3235 = vmatpush1.msra.mxu0 0.0
    %3236 = vmatprep.subr.mxu0 0.0
    %v3237 = vand.u32 %v2095, 4294901760
    %v3238 = vsub.f32 %v2095, %v3237
    %v3239 = vand.u32 %v3238, 4294901760
    %v3240 = vsub.f32 %v3238, %v3239
    %v3241 = vand.u32 %v3240, 4294901760
    %3242 = vmatpush1.msra.mxu0 %v3241
    %3243 = vmatprep.subr.mxu0 0.0
    %3244 = vmatpush2.msra.mxu0 0.0
    %3245 = vmatprep.subr.mxu0 0.0
    %3246 = vmatpush2.msra.mxu0 0.0
    %3247 = vmatprep.subr.mxu0 0.0
    %3248 = vmatpush2.msra.mxu0 0.0
    %3249 = vmatprep.subr.mxu0 0.0
    %3250 = vmatpush2.msra.mxu0 0.0
    %3251 = vmatprep.subr.mxu0 0.0
    %3252 = vmatpush2.msra.mxu0 0.0
    %3253 = vmatprep.subr.mxu0 0.0
    %3254 = vmatpush2.msra.mxu0 0.0
    %3255 = vmatprep.subr.mxu0 0.0
    %3256 = vmatpush2.msra.mxu0 0.0
    %3257 = vmatprep.subr.mxu0 0.0
    %3258 = vmatpush2.msra.mxu0 0.0
    %3259 = vmatprep.subr.mxu0 0.0
    %3260 = vmatpush2.msra.mxu0 0.0
    %3261 = vmatprep.subr.mxu0 0.0
    %3262 = vmatpush2.msra.mxu0 0.0
    %3263 = vmatprep.subr.mxu0 0.0
    %3264 = vmatpush2.msra.mxu0 0.0
    %3265 = vmatprep.subr.mxu0 0.0
    %3266 = vmatpush2.msra.mxu0 0.0
    %3267 = vmatprep.subr.mxu0 0.0
    %3268 = vmatpush2.msra.mxu0 0.0
    %3269 = vmatprep.subr.mxu0 0.0
    %3270 = vmatpush2.msra.mxu0 0.0
    %3271 = vmatprep.subr.mxu0 0.0
    %3272 = vmatpush2.msra.mxu0 0.0
    %3273 = vmatprep.subr.mxu0 0.0
    %3274 = vmatpush2.msra.mxu0 0.0
    %3275 = vmatprep.mubr.f32.mxu0 0.0
    %v3276 = vand.u32 %v3115, 4294901760
    %3277 = vmatmul.mubr.f32.gmra.mxu0 %v3276
    %v3278 = vpop.f32.mrf.mxu0
    %v3279 = vadd.f32 %v3193, %v3278
    %v3280 = vpop.f32.mrf.mxu0
    %3281 = vmatprep.mubr.f32.mxu0 0.0
    %v3282 = vand.u32 %v3118, 4294901760
    %3283 = vmatmul.mubr.f32.gmra.mxu0 %v3282
    %v3284 = vpop.f32.mrf.mxu0
    %v3285 = vadd.f32 %v3203, %v3284
    %v3286 = vpop.f32.mrf.mxu0
    %3287 = vdwg.mxu0
    %3288 = vmatprep.subr.mxu0 0.0
    %3289 = vmatpush1.msra.mxu0 0.0
    %3290 = vmatprep.subr.mxu0 0.0
    %3291 = vmatpush1.msra.mxu0 0.0
    %3292 = vmatprep.subr.mxu0 0.0
    %3293 = vmatpush1.msra.mxu0 0.0
    %3294 = vmatprep.subr.mxu0 0.0
    %3295 = vmatpush1.msra.mxu0 0.0
    %3296 = vmatprep.subr.mxu0 0.0
    %3297 = vmatpush1.msra.mxu0 0.0
    %3298 = vmatprep.subr.mxu0 0.0
    %3299 = vmatpush1.msra.mxu0 0.0
    %3300 = vmatprep.subr.mxu0 0.0
    %3301 = vmatpush1.msra.mxu0 0.0
    %3302 = vmatprep.subr.mxu0 0.0
    %3303 = vmatpush1.msra.mxu0 0.0
    %3304 = vmatprep.subr.mxu0 0.0
    %3305 = vmatpush1.msra.mxu0 0.0
    %3306 = vmatprep.subr.mxu0 0.0
    %3307 = vmatpush1.msra.mxu0 0.0
    %3308 = vmatprep.subr.mxu0 0.0
    %3309 = vmatpush1.msra.mxu0 0.0
    %3310 = vmatprep.subr.mxu0 0.0
    %3311 = vmatpush1.msra.mxu0 0.0
    %3312 = vmatprep.subr.mxu0 0.0
    %3313 = vmatpush1.msra.mxu0 0.0
    %3314 = vmatprep.subr.mxu0 0.0
    %3315 = vmatpush1.msra.mxu0 0.0
    %3316 = vmatprep.subr.mxu0 0.0
    %3317 = vmatpush1.msra.mxu0 0.0
    %3318 = vmatprep.subr.mxu0 0.0
    %v3319 = vand.u32 %v2095, 4294901760
    %v3320 = vsub.f32 %v2095, %v3319
    %3321 = vmatpush1.msra.mxu0 %v3320
    %3322 = vmatprep.subr.mxu0 0.0
    %3323 = vmatpush2.msra.mxu0 0.0
    %3324 = vmatprep.subr.mxu0 0.0
    %3325 = vmatpush2.msra.mxu0 0.0
    %3326 = vmatprep.subr.mxu0 0.0
    %3327 = vmatpush2.msra.mxu0 0.0
    %3328 = vmatprep.subr.mxu0 0.0
    %3329 = vmatpush2.msra.mxu0 0.0
    %3330 = vmatprep.subr.mxu0 0.0
    %3331 = vmatpush2.msra.mxu0 0.0
    %3332 = vmatprep.subr.mxu0 0.0
    %3333 = vmatpush2.msra.mxu0 0.0
    %3334 = vmatprep.subr.mxu0 0.0
    %3335 = vmatpush2.msra.mxu0 0.0
    %3336 = vmatprep.subr.mxu0 0.0
    %3337 = vmatpush2.msra.mxu0 0.0
    %3338 = vmatprep.subr.mxu0 0.0
    %3339 = vmatpush2.msra.mxu0 0.0
    %3340 = vmatprep.subr.mxu0 0.0
    %3341 = vmatpush2.msra.mxu0 0.0
    %3342 = vmatprep.subr.mxu0 0.0
    %3343 = vmatpush2.msra.mxu0 0.0
    %3344 = vmatprep.subr.mxu0 0.0
    %3345 = vmatpush2.msra.mxu0 0.0
    %3346 = vmatprep.subr.mxu0 0.0
    %3347 = vmatpush2.msra.mxu0 0.0
    %3348 = vmatprep.subr.mxu0 0.0
    %3349 = vmatpush2.msra.mxu0 0.0
    %3350 = vmatprep.subr.mxu0 0.0
    %3351 = vmatpush2.msra.mxu0 0.0
    %3352 = vmatprep.subr.mxu0 0.0
    %3353 = vmatpush2.msra.mxu0 0.0
    %3354 = vmatprep.mubr.f32.mxu0 0.0
    %v3355 = vand.u32 %v3115, 4294901760
    %v3356 = vsub.f32 %v3115, %v3355
    %3357 = vmatmul.mubr.f32.gmra.mxu0 %v3356
    %v3358 = vpop.f32.mrf.mxu0
    %v3359 = vadd.f32 %v3279, %v3358
    %v3360 = vpop.f32.mrf.mxu0
    %3361 = vmatprep.mubr.f32.mxu0 0.0
    %v3362 = vand.u32 %v3118, 4294901760
    %v3363 = vsub.f32 %v3118, %v3362
    %3364 = vmatmul.mubr.f32.gmra.mxu0 %v3363
    %v3365 = vpop.f32.mrf.mxu0
    %v3366 = vadd.f32 %v3285, %v3365
    %v3367 = vpop.f32.mrf.mxu0
    %3368 = vdwg.mxu0
    %3369 = vmatprep.subr.mxu0 0.0
    %3370 = vmatpush1.msra.mxu0 0.0
    %3371 = vmatprep.subr.mxu0 0.0
    %3372 = vmatpush1.msra.mxu0 0.0
    %3373 = vmatprep.subr.mxu0 0.0
    %3374 = vmatpush1.msra.mxu0 0.0
    %3375 = vmatprep.subr.mxu0 0.0
    %3376 = vmatpush1.msra.mxu0 0.0
    %3377 = vmatprep.subr.mxu0 0.0
    %3378 = vmatpush1.msra.mxu0 0.0
    %3379 = vmatprep.subr.mxu0 0.0
    %3380 = vmatpush1.msra.mxu0 0.0
    %3381 = vmatprep.subr.mxu0 0.0
    %3382 = vmatpush1.msra.mxu0 0.0
    %3383 = vmatprep.subr.mxu0 0.0
    %3384 = vmatpush1.msra.mxu0 0.0
    %3385 = vmatprep.subr.mxu0 0.0
    %3386 = vmatpush1.msra.mxu0 0.0
    %3387 = vmatprep.subr.mxu0 0.0
    %3388 = vmatpush1.msra.mxu0 0.0
    %3389 = vmatprep.subr.mxu0 0.0
    %3390 = vmatpush1.msra.mxu0 0.0
    %3391 = vmatprep.subr.mxu0 0.0
    %3392 = vmatpush1.msra.mxu0 0.0
    %3393 = vmatprep.subr.mxu0 0.0
    %3394 = vmatpush1.msra.mxu0 0.0
    %3395 = vmatprep.subr.mxu0 0.0
    %3396 = vmatpush1.msra.mxu0 0.0
    %3397 = vmatprep.subr.mxu0 0.0
    %3398 = vmatpush1.msra.mxu0 0.0
    %3399 = vmatprep.subr.mxu0 0.0
    %v3400 = vand.u32 %v2095, 4294901760
    %3401 = vmatpush1.msra.mxu0 %v3400
    %3402 = vmatprep.subr.mxu0 0.0
    %3403 = vmatpush2.msra.mxu0 0.0
    %3404 = vmatprep.subr.mxu0 0.0
    %3405 = vmatpush2.msra.mxu0 0.0
    %3406 = vmatprep.subr.mxu0 0.0
    %3407 = vmatpush2.msra.mxu0 0.0
    %3408 = vmatprep.subr.mxu0 0.0
    %3409 = vmatpush2.msra.mxu0 0.0
    %3410 = vmatprep.subr.mxu0 0.0
    %3411 = vmatpush2.msra.mxu0 0.0
    %3412 = vmatprep.subr.mxu0 0.0
    %3413 = vmatpush2.msra.mxu0 0.0
    %3414 = vmatprep.subr.mxu0 0.0
    %3415 = vmatpush2.msra.mxu0 0.0
    %3416 = vmatprep.subr.mxu0 0.0
    %3417 = vmatpush2.msra.mxu0 0.0
    %3418 = vmatprep.subr.mxu0 0.0
    %3419 = vmatpush2.msra.mxu0 0.0
    %3420 = vmatprep.subr.mxu0 0.0
    %3421 = vmatpush2.msra.mxu0 0.0
    %3422 = vmatprep.subr.mxu0 0.0
    %3423 = vmatpush2.msra.mxu0 0.0
    %3424 = vmatprep.subr.mxu0 0.0
    %3425 = vmatpush2.msra.mxu0 0.0
    %3426 = vmatprep.subr.mxu0 0.0
    %3427 = vmatpush2.msra.mxu0 0.0
    %3428 = vmatprep.subr.mxu0 0.0
    %3429 = vmatpush2.msra.mxu0 0.0
    %3430 = vmatprep.subr.mxu0 0.0
    %3431 = vmatpush2.msra.mxu0 0.0
    %3432 = vmatprep.subr.mxu0 0.0
    %3433 = vmatpush2.msra.mxu0 0.0
    %3434 = vmatprep.mubr.f32.mxu0 0.0
    %v3435 = vand.u32 %v3115, 4294901760
    %v3436 = vsub.f32 %v3115, %v3435
    %v3437 = vand.u32 %v3436, 4294901760
    %3438 = vmatmul.mubr.f32.gmra.mxu0 %v3437
    %v3439 = vpop.f32.mrf.mxu0
    %v3440 = vadd.f32 %v3359, %v3439
    %v3441 = vpop.f32.mrf.mxu0
    %3442 = vmatprep.mubr.f32.mxu0 0.0
    %v3443 = vand.u32 %v3118, 4294901760
    %v3444 = vsub.f32 %v3118, %v3443
    %v3445 = vand.u32 %v3444, 4294901760
    %3446 = vmatmul.mubr.f32.gmra.mxu0 %v3445
    %v3447 = vpop.f32.mrf.mxu0
    %v3448 = vadd.f32 %v3366, %v3447
    %v3449 = vpop.f32.mrf.mxu0
    %3450 = vdwg.mxu0
    %3451 = vmatprep.subr.mxu0 0.0
    %3452 = vmatpush1.msra.mxu0 0.0
    %3453 = vmatprep.subr.mxu0 0.0
    %3454 = vmatpush1.msra.mxu0 0.0
    %3455 = vmatprep.subr.mxu0 0.0
    %3456 = vmatpush1.msra.mxu0 0.0
    %3457 = vmatprep.subr.mxu0 0.0
    %3458 = vmatpush1.msra.mxu0 0.0
    %3459 = vmatprep.subr.mxu0 0.0
    %3460 = vmatpush1.msra.mxu0 0.0
    %3461 = vmatprep.subr.mxu0 0.0
    %3462 = vmatpush1.msra.mxu0 0.0
    %3463 = vmatprep.subr.mxu0 0.0
    %3464 = vmatpush1.msra.mxu0 0.0
    %3465 = vmatprep.subr.mxu0 0.0
    %3466 = vmatpush1.msra.mxu0 0.0
    %3467 = vmatprep.subr.mxu0 0.0
    %3468 = vmatpush1.msra.mxu0 0.0
    %3469 = vmatprep.subr.mxu0 0.0
    %3470 = vmatpush1.msra.mxu0 0.0
    %3471 = vmatprep.subr.mxu0 0.0
    %3472 = vmatpush1.msra.mxu0 0.0
    %3473 = vmatprep.subr.mxu0 0.0
    %3474 = vmatpush1.msra.mxu0 0.0
    %3475 = vmatprep.subr.mxu0 0.0
    %3476 = vmatpush1.msra.mxu0 0.0
    %3477 = vmatprep.subr.mxu0 0.0
    %3478 = vmatpush1.msra.mxu0 0.0
    %3479 = vmatprep.subr.mxu0 0.0
    %3480 = vmatpush1.msra.mxu0 0.0
    %3481 = vmatprep.subr.mxu0 0.0
    %v3482 = vand.u32 %v2095, 4294901760
    %v3483 = vsub.f32 %v2095, %v3482
    %v3484 = vand.u32 %v3483, 4294901760
    %3485 = vmatpush1.msra.mxu0 %v3484
    %3486 = vmatprep.subr.mxu0 0.0
    %3487 = vmatpush2.msra.mxu0 0.0
    %3488 = vmatprep.subr.mxu0 0.0
    %3489 = vmatpush2.msra.mxu0 0.0
    %3490 = vmatprep.subr.mxu0 0.0
    %3491 = vmatpush2.msra.mxu0 0.0
    %3492 = vmatprep.subr.mxu0 0.0
    %3493 = vmatpush2.msra.mxu0 0.0
    %3494 = vmatprep.subr.mxu0 0.0
    %3495 = vmatpush2.msra.mxu0 0.0
    %3496 = vmatprep.subr.mxu0 0.0
    %3497 = vmatpush2.msra.mxu0 0.0
    %3498 = vmatprep.subr.mxu0 0.0
    %3499 = vmatpush2.msra.mxu0 0.0
    %3500 = vmatprep.subr.mxu0 0.0
    %3501 = vmatpush2.msra.mxu0 0.0
    %3502 = vmatprep.subr.mxu0 0.0
    %3503 = vmatpush2.msra.mxu0 0.0
    %3504 = vmatprep.subr.mxu0 0.0
    %3505 = vmatpush2.msra.mxu0 0.0
    %3506 = vmatprep.subr.mxu0 0.0
    %3507 = vmatpush2.msra.mxu0 0.0
    %3508 = vmatprep.subr.mxu0 0.0
    %3509 = vmatpush2.msra.mxu0 0.0
    %3510 = vmatprep.subr.mxu0 0.0
    %3511 = vmatpush2.msra.mxu0 0.0
    %3512 = vmatprep.subr.mxu0 0.0
    %3513 = vmatpush2.msra.mxu0 0.0
    %3514 = vmatprep.subr.mxu0 0.0
    %3515 = vmatpush2.msra.mxu0 0.0
    %3516 = vmatprep.subr.mxu0 0.0
    %3517 = vmatpush2.msra.mxu0 0.0
    %3518 = vmatprep.mubr.f32.mxu0 0.0
    %v3519 = vand.u32 %v3115, 4294901760
    %3520 = vmatmul.mubr.f32.gmra.mxu0 %v3519
    %v3521 = vpop.f32.mrf.mxu0
    %v3522 = vadd.f32 %v3440, %v3521
    %v3523 = vpop.f32.mrf.mxu0
    %3524 = vmatprep.mubr.f32.mxu0 0.0
    %v3525 = vand.u32 %v3118, 4294901760
    %3526 = vmatmul.mubr.f32.gmra.mxu0 %v3525
    %v3527 = vpop.f32.mrf.mxu0
    %v3528 = vadd.f32 %v3448, %v3527
    %v3529 = vpop.f32.mrf.mxu0
    %3530 = vdwg.mxu0
    %3531 = vmatprep.subr.mxu0 0.0
    %3532 = vmatpush1.msra.mxu0 0.0
    %3533 = vmatprep.subr.mxu0 0.0
    %3534 = vmatpush1.msra.mxu0 0.0
    %3535 = vmatprep.subr.mxu0 0.0
    %3536 = vmatpush1.msra.mxu0 0.0
    %3537 = vmatprep.subr.mxu0 0.0
    %3538 = vmatpush1.msra.mxu0 0.0
    %3539 = vmatprep.subr.mxu0 0.0
    %3540 = vmatpush1.msra.mxu0 0.0
    %3541 = vmatprep.subr.mxu0 0.0
    %3542 = vmatpush1.msra.mxu0 0.0
    %3543 = vmatprep.subr.mxu0 0.0
    %3544 = vmatpush1.msra.mxu0 0.0
    %3545 = vmatprep.subr.mxu0 0.0
    %3546 = vmatpush1.msra.mxu0 0.0
    %3547 = vmatprep.subr.mxu0 0.0
    %3548 = vmatpush1.msra.mxu0 0.0
    %3549 = vmatprep.subr.mxu0 0.0
    %3550 = vmatpush1.msra.mxu0 0.0
    %3551 = vmatprep.subr.mxu0 0.0
    %3552 = vmatpush1.msra.mxu0 0.0
    %3553 = vmatprep.subr.mxu0 0.0
    %3554 = vmatpush1.msra.mxu0 0.0
    %3555 = vmatprep.subr.mxu0 0.0
    %3556 = vmatpush1.msra.mxu0 0.0
    %3557 = vmatprep.subr.mxu0 0.0
    %3558 = vmatpush1.msra.mxu0 0.0
    %3559 = vmatprep.subr.mxu0 0.0
    %3560 = vmatpush1.msra.mxu0 0.0
    %3561 = vmatprep.subr.mxu0 0.0
    %v3562 = vand.u32 %v2095, 4294901760
    %3563 = vmatpush1.msra.mxu0 %v3562
    %3564 = vmatprep.subr.mxu0 0.0
    %3565 = vmatpush2.msra.mxu0 0.0
    %3566 = vmatprep.subr.mxu0 0.0
    %3567 = vmatpush2.msra.mxu0 0.0
    %3568 = vmatprep.subr.mxu0 0.0
    %3569 = vmatpush2.msra.mxu0 0.0
    %3570 = vmatprep.subr.mxu0 0.0
    %3571 = vmatpush2.msra.mxu0 0.0
    %3572 = vmatprep.subr.mxu0 0.0
    %3573 = vmatpush2.msra.mxu0 0.0
    %3574 = vmatprep.subr.mxu0 0.0
    %3575 = vmatpush2.msra.mxu0 0.0
    %3576 = vmatprep.subr.mxu0 0.0
    %3577 = vmatpush2.msra.mxu0 0.0
    %3578 = vmatprep.subr.mxu0 0.0
    %3579 = vmatpush2.msra.mxu0 0.0
    %3580 = vmatprep.subr.mxu0 0.0
    %3581 = vmatpush2.msra.mxu0 0.0
    %3582 = vmatprep.subr.mxu0 0.0
    %3583 = vmatpush2.msra.mxu0 0.0
    %3584 = vmatprep.subr.mxu0 0.0
    %3585 = vmatpush2.msra.mxu0 0.0
    %3586 = vmatprep.subr.mxu0 0.0
    %3587 = vmatpush2.msra.mxu0 0.0
    %3588 = vmatprep.subr.mxu0 0.0
    %3589 = vmatpush2.msra.mxu0 0.0
    %3590 = vmatprep.subr.mxu0 0.0
    %3591 = vmatpush2.msra.mxu0 0.0
    %3592 = vmatprep.subr.mxu0 0.0
    %3593 = vmatpush2.msra.mxu0 0.0
    %3594 = vmatprep.subr.mxu0 0.0
    %3595 = vmatpush2.msra.mxu0 0.0
    %3596 = vmatprep.mubr.f32.mxu0 0.0
    %v3597 = vand.u32 %v3115, 4294901760
    %3598 = vmatmul.mubr.f32.gmra.mxu0 %v3597
    %v3599 = vpop.f32.mrf.mxu0
    %v3600 = vadd.f32 %v3522, %v3599
    %v3601 = vpop.f32.mrf.mxu0
    %3602 = vmatprep.mubr.f32.mxu0 0.0
    %v3603 = vand.u32 %v3118, 4294901760
    %3604 = vmatmul.mubr.f32.gmra.mxu0 %v3603
    %v3605 = vpop.f32.mrf.mxu0
    %v3606 = vadd.f32 %v3528, %v3605
    %v3607 = vpop.f32.mrf.mxu0
    %3608 = vdwg.mxu0
    %v3609 = vadd.f32 %v3109, %v3600
    %v3610 = vadd.f32 %v3110, %v3606
    %v3611 = vmul.f32 %v562, %v2097
    %v3612 = vmul.f32 %v563, %v2097
    %s3613 = scalar_lea.vmem %s3, 96
    %v3614 = vld [vmem:[%s3613] sm:$0xff]
    %v3615 = vld [vmem:[%s3613 + $0x8] sm:$0xff]
    %3618 = vrot.lane.b32.xlu0 %v3611, 1
    %v3619 = vpop.permute.xlu0 %3618
    %3620 = vrot.lane.b32.xlu0 %v3612, 1
    %v3621 = vpop.permute.xlu0 %3620
    %v3622 = vsel %vm2110, %v3619, %v3621
    %v3625 = vsel %vm586, %v3614, 0
    %v3628 = vsel %vm586, %v3615, 0
    %3630 = vmatprep.subr.mxu0 0.0
    %3631 = vmatpush1.msra.mxu0 0.0
    %3632 = vmatprep.subr.mxu0 0.0
    %3633 = vmatpush1.msra.mxu0 0.0
    %3634 = vmatprep.subr.mxu0 0.0
    %3635 = vmatpush1.msra.mxu0 0.0
    %3636 = vmatprep.subr.mxu0 0.0
    %3637 = vmatpush1.msra.mxu0 0.0
    %3638 = vmatprep.subr.mxu0 0.0
    %3639 = vmatpush1.msra.mxu0 0.0
    %3640 = vmatprep.subr.mxu0 0.0
    %3641 = vmatpush1.msra.mxu0 0.0
    %3642 = vmatprep.subr.mxu0 0.0
    %3643 = vmatpush1.msra.mxu0 0.0
    %3644 = vmatprep.subr.mxu0 0.0
    %3645 = vmatpush1.msra.mxu0 0.0
    %3646 = vmatprep.subr.mxu0 0.0
    %3647 = vmatpush1.msra.mxu0 0.0
    %3648 = vmatprep.subr.mxu0 0.0
    %3649 = vmatpush1.msra.mxu0 0.0
    %3650 = vmatprep.subr.mxu0 0.0
    %3651 = vmatpush1.msra.mxu0 0.0
    %3652 = vmatprep.subr.mxu0 0.0
    %3653 = vmatpush1.msra.mxu0 0.0
    %3654 = vmatprep.subr.mxu0 0.0
    %3655 = vmatpush1.msra.mxu0 0.0
    %3656 = vmatprep.subr.mxu0 0.0
    %3657 = vmatpush1.msra.mxu0 0.0
    %3658 = vmatprep.subr.mxu0 0.0
    %3659 = vmatpush1.msra.mxu0 0.0
    %3660 = vmatprep.subr.mxu0 0.0
    %v3661 = vand.u32 %v3622, 4294901760
    %3662 = vmatpush1.msra.mxu0 %v3661
    %3663 = vmatprep.subr.mxu0 0.0
    %3664 = vmatpush2.msra.mxu0 0.0
    %3665 = vmatprep.subr.mxu0 0.0
    %3666 = vmatpush2.msra.mxu0 0.0
    %3667 = vmatprep.subr.mxu0 0.0
    %3668 = vmatpush2.msra.mxu0 0.0
    %3669 = vmatprep.subr.mxu0 0.0
    %3670 = vmatpush2.msra.mxu0 0.0
    %3671 = vmatprep.subr.mxu0 0.0
    %3672 = vmatpush2.msra.mxu0 0.0
    %3673 = vmatprep.subr.mxu0 0.0
    %3674 = vmatpush2.msra.mxu0 0.0
    %3675 = vmatprep.subr.mxu0 0.0
    %3676 = vmatpush2.msra.mxu0 0.0
    %3677 = vmatprep.subr.mxu0 0.0
    %3678 = vmatpush2.msra.mxu0 0.0
    %3679 = vmatprep.subr.mxu0 0.0
    %3680 = vmatpush2.msra.mxu0 0.0
    %3681 = vmatprep.subr.mxu0 0.0
    %3682 = vmatpush2.msra.mxu0 0.0
    %3683 = vmatprep.subr.mxu0 0.0
    %3684 = vmatpush2.msra.mxu0 0.0
    %3685 = vmatprep.subr.mxu0 0.0
    %3686 = vmatpush2.msra.mxu0 0.0
    %3687 = vmatprep.subr.mxu0 0.0
    %3688 = vmatpush2.msra.mxu0 0.0
    %3689 = vmatprep.subr.mxu0 0.0
    %3690 = vmatpush2.msra.mxu0 0.0
    %3691 = vmatprep.subr.mxu0 0.0
    %3692 = vmatpush2.msra.mxu0 0.0
    %3693 = vmatprep.subr.mxu0 0.0
    %3694 = vmatpush2.msra.mxu0 0.0
    %3695 = vmatprep.mubr.f32.mxu0 0.0
    %v3696 = vand.u32 %v3625, 4294901760
    %v3697 = vsub.f32 %v3625, %v3696
    %v3698 = vand.u32 %v3697, 4294901760
    %v3699 = vsub.f32 %v3697, %v3698
    %v3700 = vand.u32 %v3699, 4294901760
    %3701 = vmatmul.mubr.f32.gmra.mxu0 %v3700
    %v3702 = vpop.f32.mrf.mxu0
    %v3703 = vadd.f32 0.0, %v3702
    %v3704 = vpop.f32.mrf.mxu0
    %3705 = vmatprep.mubr.f32.mxu0 0.0
    %v3706 = vand.u32 %v3628, 4294901760
    %v3707 = vsub.f32 %v3628, %v3706
    %v3708 = vand.u32 %v3707, 4294901760
    %v3709 = vsub.f32 %v3707, %v3708
    %v3710 = vand.u32 %v3709, 4294901760
    %3711 = vmatmul.mubr.f32.gmra.mxu0 %v3710
    %v3712 = vpop.f32.mrf.mxu0
    %v3713 = vadd.f32 0.0, %v3712
    %v3714 = vpop.f32.mrf.mxu0
    %3715 = vdwg.mxu0
    %3716 = vmatprep.subr.mxu0 0.0
    %3717 = vmatpush1.msra.mxu0 0.0
    %3718 = vmatprep.subr.mxu0 0.0
    %3719 = vmatpush1.msra.mxu0 0.0
    %3720 = vmatprep.subr.mxu0 0.0
    %3721 = vmatpush1.msra.mxu0 0.0
    %3722 = vmatprep.subr.mxu0 0.0
    %3723 = vmatpush1.msra.mxu0 0.0
    %3724 = vmatprep.subr.mxu0 0.0
    %3725 = vmatpush1.msra.mxu0 0.0
    %3726 = vmatprep.subr.mxu0 0.0
    %3727 = vmatpush1.msra.mxu0 0.0
    %3728 = vmatprep.subr.mxu0 0.0
    %3729 = vmatpush1.msra.mxu0 0.0
    %3730 = vmatprep.subr.mxu0 0.0
    %3731 = vmatpush1.msra.mxu0 0.0
    %3732 = vmatprep.subr.mxu0 0.0
    %3733 = vmatpush1.msra.mxu0 0.0
    %3734 = vmatprep.subr.mxu0 0.0
    %3735 = vmatpush1.msra.mxu0 0.0
    %3736 = vmatprep.subr.mxu0 0.0
    %3737 = vmatpush1.msra.mxu0 0.0
    %3738 = vmatprep.subr.mxu0 0.0
    %3739 = vmatpush1.msra.mxu0 0.0
    %3740 = vmatprep.subr.mxu0 0.0
    %3741 = vmatpush1.msra.mxu0 0.0
    %3742 = vmatprep.subr.mxu0 0.0
    %3743 = vmatpush1.msra.mxu0 0.0
    %3744 = vmatprep.subr.mxu0 0.0
    %3745 = vmatpush1.msra.mxu0 0.0
    %3746 = vmatprep.subr.mxu0 0.0
    %v3747 = vand.u32 %v3622, 4294901760
    %v3748 = vsub.f32 %v3622, %v3747
    %v3749 = vand.u32 %v3748, 4294901760
    %v3750 = vsub.f32 %v3748, %v3749
    %v3751 = vand.u32 %v3750, 4294901760
    %3752 = vmatpush1.msra.mxu0 %v3751
    %3753 = vmatprep.subr.mxu0 0.0
    %3754 = vmatpush2.msra.mxu0 0.0
    %3755 = vmatprep.subr.mxu0 0.0
    %3756 = vmatpush2.msra.mxu0 0.0
    %3757 = vmatprep.subr.mxu0 0.0
    %3758 = vmatpush2.msra.mxu0 0.0
    %3759 = vmatprep.subr.mxu0 0.0
    %3760 = vmatpush2.msra.mxu0 0.0
    %3761 = vmatprep.subr.mxu0 0.0
    %3762 = vmatpush2.msra.mxu0 0.0
    %3763 = vmatprep.subr.mxu0 0.0
    %3764 = vmatpush2.msra.mxu0 0.0
    %3765 = vmatprep.subr.mxu0 0.0
    %3766 = vmatpush2.msra.mxu0 0.0
    %3767 = vmatprep.subr.mxu0 0.0
    %3768 = vmatpush2.msra.mxu0 0.0
    %3769 = vmatprep.subr.mxu0 0.0
    %3770 = vmatpush2.msra.mxu0 0.0
    %3771 = vmatprep.subr.mxu0 0.0
    %3772 = vmatpush2.msra.mxu0 0.0
    %3773 = vmatprep.subr.mxu0 0.0
    %3774 = vmatpush2.msra.mxu0 0.0
    %3775 = vmatprep.subr.mxu0 0.0
    %3776 = vmatpush2.msra.mxu0 0.0
    %3777 = vmatprep.subr.mxu0 0.0
    %3778 = vmatpush2.msra.mxu0 0.0
    %3779 = vmatprep.subr.mxu0 0.0
    %3780 = vmatpush2.msra.mxu0 0.0
    %3781 = vmatprep.subr.mxu0 0.0
    %3782 = vmatpush2.msra.mxu0 0.0
    %3783 = vmatprep.subr.mxu0 0.0
    %3784 = vmatpush2.msra.mxu0 0.0
    %3785 = vmatprep.mubr.f32.mxu0 0.0
    %v3786 = vand.u32 %v3625, 4294901760
    %3787 = vmatmul.mubr.f32.gmra.mxu0 %v3786
    %v3788 = vpop.f32.mrf.mxu0
    %v3789 = vadd.f32 %v3703, %v3788
    %v3790 = vpop.f32.mrf.mxu0
    %3791 = vmatprep.mubr.f32.mxu0 0.0
    %v3792 = vand.u32 %v3628, 4294901760
    %3793 = vmatmul.mubr.f32.gmra.mxu0 %v3792
    %v3794 = vpop.f32.mrf.mxu0
    %v3795 = vadd.f32 %v3713, %v3794
    %v3796 = vpop.f32.mrf.mxu0
    %3797 = vdwg.mxu0
    %3798 = vmatprep.subr.mxu0 0.0
    %3799 = vmatpush1.msra.mxu0 0.0
    %3800 = vmatprep.subr.mxu0 0.0
    %3801 = vmatpush1.msra.mxu0 0.0
    %3802 = vmatprep.subr.mxu0 0.0
    %3803 = vmatpush1.msra.mxu0 0.0
    %3804 = vmatprep.subr.mxu0 0.0
    %3805 = vmatpush1.msra.mxu0 0.0
    %3806 = vmatprep.subr.mxu0 0.0
    %3807 = vmatpush1.msra.mxu0 0.0
    %3808 = vmatprep.subr.mxu0 0.0
    %3809 = vmatpush1.msra.mxu0 0.0
    %3810 = vmatprep.subr.mxu0 0.0
    %3811 = vmatpush1.msra.mxu0 0.0
    %3812 = vmatprep.subr.mxu0 0.0
    %3813 = vmatpush1.msra.mxu0 0.0
    %3814 = vmatprep.subr.mxu0 0.0
    %3815 = vmatpush1.msra.mxu0 0.0
    %3816 = vmatprep.subr.mxu0 0.0
    %3817 = vmatpush1.msra.mxu0 0.0
    %3818 = vmatprep.subr.mxu0 0.0
    %3819 = vmatpush1.msra.mxu0 0.0
    %3820 = vmatprep.subr.mxu0 0.0
    %3821 = vmatpush1.msra.mxu0 0.0
    %3822 = vmatprep.subr.mxu0 0.0
    %3823 = vmatpush1.msra.mxu0 0.0
    %3824 = vmatprep.subr.mxu0 0.0
    %3825 = vmatpush1.msra.mxu0 0.0
    %3826 = vmatprep.subr.mxu0 0.0
    %3827 = vmatpush1.msra.mxu0 0.0
    %3828 = vmatprep.subr.mxu0 0.0
    %v3829 = vand.u32 %v3622, 4294901760
    %v3830 = vsub.f32 %v3622, %v3829
    %3831 = vmatpush1.msra.mxu0 %v3830
    %3832 = vmatprep.subr.mxu0 0.0
    %3833 = vmatpush2.msra.mxu0 0.0
    %3834 = vmatprep.subr.mxu0 0.0
    %3835 = vmatpush2.msra.mxu0 0.0
    %3836 = vmatprep.subr.mxu0 0.0
    %3837 = vmatpush2.msra.mxu0 0.0
    %3838 = vmatprep.subr.mxu0 0.0
    %3839 = vmatpush2.msra.mxu0 0.0
    %3840 = vmatprep.subr.mxu0 0.0
    %3841 = vmatpush2.msra.mxu0 0.0
    %3842 = vmatprep.subr.mxu0 0.0
    %3843 = vmatpush2.msra.mxu0 0.0
    %3844 = vmatprep.subr.mxu0 0.0
    %3845 = vmatpush2.msra.mxu0 0.0
    %3846 = vmatprep.subr.mxu0 0.0
    %3847 = vmatpush2.msra.mxu0 0.0
    %3848 = vmatprep.subr.mxu0 0.0
    %3849 = vmatpush2.msra.mxu0 0.0
    %3850 = vmatprep.subr.mxu0 0.0
    %3851 = vmatpush2.msra.mxu0 0.0
    %3852 = vmatprep.subr.mxu0 0.0
    %3853 = vmatpush2.msra.mxu0 0.0
    %3854 = vmatprep.subr.mxu0 0.0
    %3855 = vmatpush2.msra.mxu0 0.0
    %3856 = vmatprep.subr.mxu0 0.0
    %3857 = vmatpush2.msra.mxu0 0.0
    %3858 = vmatprep.subr.mxu0 0.0
    %3859 = vmatpush2.msra.mxu0 0.0
    %3860 = vmatprep.subr.mxu0 0.0
    %3861 = vmatpush2.msra.mxu0 0.0
    %3862 = vmatprep.subr.mxu0 0.0
    %3863 = vmatpush2.msra.mxu0 0.0
    %3864 = vmatprep.mubr.f32.mxu0 0.0
    %v3865 = vand.u32 %v3625, 4294901760
    %v3866 = vsub.f32 %v3625, %v3865
    %3867 = vmatmul.mubr.f32.gmra.mxu0 %v3866
    %v3868 = vpop.f32.mrf.mxu0
    %v3869 = vadd.f32 %v3789, %v3868
    %v3870 = vpop.f32.mrf.mxu0
    %3871 = vmatprep.mubr.f32.mxu0 0.0
    %v3872 = vand.u32 %v3628, 4294901760
    %v3873 = vsub.f32 %v3628, %v3872
    %3874 = vmatmul.mubr.f32.gmra.mxu0 %v3873
    %v3875 = vpop.f32.mrf.mxu0
    %v3876 = vadd.f32 %v3795, %v3875
    %v3877 = vpop.f32.mrf.mxu0
    %3878 = vdwg.mxu0
    %3879 = vmatprep.subr.mxu0 0.0
    %3880 = vmatpush1.msra.mxu0 0.0
    %3881 = vmatprep.subr.mxu0 0.0
    %3882 = vmatpush1.msra.mxu0 0.0
    %3883 = vmatprep.subr.mxu0 0.0
    %3884 = vmatpush1.msra.mxu0 0.0
    %3885 = vmatprep.subr.mxu0 0.0
    %3886 = vmatpush1.msra.mxu0 0.0
    %3887 = vmatprep.subr.mxu0 0.0
    %3888 = vmatpush1.msra.mxu0 0.0
    %3889 = vmatprep.subr.mxu0 0.0
    %3890 = vmatpush1.msra.mxu0 0.0
    %3891 = vmatprep.subr.mxu0 0.0
    %3892 = vmatpush1.msra.mxu0 0.0
    %3893 = vmatprep.subr.mxu0 0.0
    %3894 = vmatpush1.msra.mxu0 0.0
    %3895 = vmatprep.subr.mxu0 0.0
    %3896 = vmatpush1.msra.mxu0 0.0
    %3897 = vmatprep.subr.mxu0 0.0
    %3898 = vmatpush1.msra.mxu0 0.0
    %3899 = vmatprep.subr.mxu0 0.0
    %3900 = vmatpush1.msra.mxu0 0.0
    %3901 = vmatprep.subr.mxu0 0.0
    %3902 = vmatpush1.msra.mxu0 0.0
    %3903 = vmatprep.subr.mxu0 0.0
    %3904 = vmatpush1.msra.mxu0 0.0
    %3905 = vmatprep.subr.mxu0 0.0
    %3906 = vmatpush1.msra.mxu0 0.0
    %3907 = vmatprep.subr.mxu0 0.0
    %3908 = vmatpush1.msra.mxu0 0.0
    %3909 = vmatprep.subr.mxu0 0.0
    %v3910 = vand.u32 %v3622, 4294901760
    %3911 = vmatpush1.msra.mxu0 %v3910
    %3912 = vmatprep.subr.mxu0 0.0
    %3913 = vmatpush2.msra.mxu0 0.0
    %3914 = vmatprep.subr.mxu0 0.0
    %3915 = vmatpush2.msra.mxu0 0.0
    %3916 = vmatprep.subr.mxu0 0.0
    %3917 = vmatpush2.msra.mxu0 0.0
    %3918 = vmatprep.subr.mxu0 0.0
    %3919 = vmatpush2.msra.mxu0 0.0
    %3920 = vmatprep.subr.mxu0 0.0
    %3921 = vmatpush2.msra.mxu0 0.0
    %3922 = vmatprep.subr.mxu0 0.0
    %3923 = vmatpush2.msra.mxu0 0.0
    %3924 = vmatprep.subr.mxu0 0.0
    %3925 = vmatpush2.msra.mxu0 0.0
    %3926 = vmatprep.subr.mxu0 0.0
    %3927 = vmatpush2.msra.mxu0 0.0
    %3928 = vmatprep.subr.mxu0 0.0
    %3929 = vmatpush2.msra.mxu0 0.0
    %3930 = vmatprep.subr.mxu0 0.0
    %3931 = vmatpush2.msra.mxu0 0.0
    %3932 = vmatprep.subr.mxu0 0.0
    %3933 = vmatpush2.msra.mxu0 0.0
    %3934 = vmatprep.subr.mxu0 0.0
    %3935 = vmatpush2.msra.mxu0 0.0
    %3936 = vmatprep.subr.mxu0 0.0
    %3937 = vmatpush2.msra.mxu0 0.0
    %3938 = vmatprep.subr.mxu0 0.0
    %3939 = vmatpush2.msra.mxu0 0.0
    %3940 = vmatprep.subr.mxu0 0.0
    %3941 = vmatpush2.msra.mxu0 0.0
    %3942 = vmatprep.subr.mxu0 0.0
    %3943 = vmatpush2.msra.mxu0 0.0
    %3944 = vmatprep.mubr.f32.mxu0 0.0
    %v3945 = vand.u32 %v3625, 4294901760
    %v3946 = vsub.f32 %v3625, %v3945
    %v3947 = vand.u32 %v3946, 4294901760
    %3948 = vmatmul.mubr.f32.gmra.mxu0 %v3947
    %v3949 = vpop.f32.mrf.mxu0
    %v3950 = vadd.f32 %v3869, %v3949
    %v3951 = vpop.f32.mrf.mxu0
    %3952 = vmatprep.mubr.f32.mxu0 0.0
    %v3953 = vand.u32 %v3628, 4294901760
    %v3954 = vsub.f32 %v3628, %v3953
    %v3955 = vand.u32 %v3954, 4294901760
    %3956 = vmatmul.mubr.f32.gmra.mxu0 %v3955
    %v3957 = vpop.f32.mrf.mxu0
    %v3958 = vadd.f32 %v3876, %v3957
    %v3959 = vpop.f32.mrf.mxu0
    %3960 = vdwg.mxu0
    %3961 = vmatprep.subr.mxu0 0.0
    %3962 = vmatpush1.msra.mxu0 0.0
    %3963 = vmatprep.subr.mxu0 0.0
    %3964 = vmatpush1.msra.mxu0 0.0
    %3965 = vmatprep.subr.mxu0 0.0
    %3966 = vmatpush1.msra.mxu0 0.0
    %3967 = vmatprep.subr.mxu0 0.0
    %3968 = vmatpush1.msra.mxu0 0.0
    %3969 = vmatprep.subr.mxu0 0.0
    %3970 = vmatpush1.msra.mxu0 0.0
    %3971 = vmatprep.subr.mxu0 0.0
    %3972 = vmatpush1.msra.mxu0 0.0
    %3973 = vmatprep.subr.mxu0 0.0
    %3974 = vmatpush1.msra.mxu0 0.0
    %3975 = vmatprep.subr.mxu0 0.0
    %3976 = vmatpush1.msra.mxu0 0.0
    %3977 = vmatprep.subr.mxu0 0.0
    %3978 = vmatpush1.msra.mxu0 0.0
    %3979 = vmatprep.subr.mxu0 0.0
    %3980 = vmatpush1.msra.mxu0 0.0
    %3981 = vmatprep.subr.mxu0 0.0
    %3982 = vmatpush1.msra.mxu0 0.0
    %3983 = vmatprep.subr.mxu0 0.0
    %3984 = vmatpush1.msra.mxu0 0.0
    %3985 = vmatprep.subr.mxu0 0.0
    %3986 = vmatpush1.msra.mxu0 0.0
    %3987 = vmatprep.subr.mxu0 0.0
    %3988 = vmatpush1.msra.mxu0 0.0
    %3989 = vmatprep.subr.mxu0 0.0
    %3990 = vmatpush1.msra.mxu0 0.0
    %3991 = vmatprep.subr.mxu0 0.0
    %v3992 = vand.u32 %v3622, 4294901760
    %v3993 = vsub.f32 %v3622, %v3992
    %v3994 = vand.u32 %v3993, 4294901760
    %3995 = vmatpush1.msra.mxu0 %v3994
    %3996 = vmatprep.subr.mxu0 0.0
    %3997 = vmatpush2.msra.mxu0 0.0
    %3998 = vmatprep.subr.mxu0 0.0
    %3999 = vmatpush2.msra.mxu0 0.0
    %4000 = vmatprep.subr.mxu0 0.0
    %4001 = vmatpush2.msra.mxu0 0.0
    %4002 = vmatprep.subr.mxu0 0.0
    %4003 = vmatpush2.msra.mxu0 0.0
    %4004 = vmatprep.subr.mxu0 0.0
    %4005 = vmatpush2.msra.mxu0 0.0
    %4006 = vmatprep.subr.mxu0 0.0
    %4007 = vmatpush2.msra.mxu0 0.0
    %4008 = vmatprep.subr.mxu0 0.0
    %4009 = vmatpush2.msra.mxu0 0.0
    %4010 = vmatprep.subr.mxu0 0.0
    %4011 = vmatpush2.msra.mxu0 0.0
    %4012 = vmatprep.subr.mxu0 0.0
    %4013 = vmatpush2.msra.mxu0 0.0
    %4014 = vmatprep.subr.mxu0 0.0
    %4015 = vmatpush2.msra.mxu0 0.0
    %4016 = vmatprep.subr.mxu0 0.0
    %4017 = vmatpush2.msra.mxu0 0.0
    %4018 = vmatprep.subr.mxu0 0.0
    %4019 = vmatpush2.msra.mxu0 0.0
    %4020 = vmatprep.subr.mxu0 0.0
    %4021 = vmatpush2.msra.mxu0 0.0
    %4022 = vmatprep.subr.mxu0 0.0
    %4023 = vmatpush2.msra.mxu0 0.0
    %4024 = vmatprep.subr.mxu0 0.0
    %4025 = vmatpush2.msra.mxu0 0.0
    %4026 = vmatprep.subr.mxu0 0.0
    %4027 = vmatpush2.msra.mxu0 0.0
    %4028 = vmatprep.mubr.f32.mxu0 0.0
    %v4029 = vand.u32 %v3625, 4294901760
    %4030 = vmatmul.mubr.f32.gmra.mxu0 %v4029
    %v4031 = vpop.f32.mrf.mxu0
    %v4032 = vadd.f32 %v3950, %v4031
    %v4033 = vpop.f32.mrf.mxu0
    %4034 = vmatprep.mubr.f32.mxu0 0.0
    %v4035 = vand.u32 %v3628, 4294901760
    %4036 = vmatmul.mubr.f32.gmra.mxu0 %v4035
    %v4037 = vpop.f32.mrf.mxu0
    %v4038 = vadd.f32 %v3958, %v4037
    %v4039 = vpop.f32.mrf.mxu0
    %4040 = vdwg.mxu0
    %4041 = vmatprep.subr.mxu0 0.0
    %4042 = vmatpush1.msra.mxu0 0.0
    %4043 = vmatprep.subr.mxu0 0.0
    %4044 = vmatpush1.msra.mxu0 0.0
    %4045 = vmatprep.subr.mxu0 0.0
    %4046 = vmatpush1.msra.mxu0 0.0
    %4047 = vmatprep.subr.mxu0 0.0
    %4048 = vmatpush1.msra.mxu0 0.0
    %4049 = vmatprep.subr.mxu0 0.0
    %4050 = vmatpush1.msra.mxu0 0.0
    %4051 = vmatprep.subr.mxu0 0.0
    %4052 = vmatpush1.msra.mxu0 0.0
    %4053 = vmatprep.subr.mxu0 0.0
    %4054 = vmatpush1.msra.mxu0 0.0
    %4055 = vmatprep.subr.mxu0 0.0
    %4056 = vmatpush1.msra.mxu0 0.0
    %4057 = vmatprep.subr.mxu0 0.0
    %4058 = vmatpush1.msra.mxu0 0.0
    %4059 = vmatprep.subr.mxu0 0.0
    %4060 = vmatpush1.msra.mxu0 0.0
    %4061 = vmatprep.subr.mxu0 0.0
    %4062 = vmatpush1.msra.mxu0 0.0
    %4063 = vmatprep.subr.mxu0 0.0
    %4064 = vmatpush1.msra.mxu0 0.0
    %4065 = vmatprep.subr.mxu0 0.0
    %4066 = vmatpush1.msra.mxu0 0.0
    %4067 = vmatprep.subr.mxu0 0.0
    %4068 = vmatpush1.msra.mxu0 0.0
    %4069 = vmatprep.subr.mxu0 0.0
    %4070 = vmatpush1.msra.mxu0 0.0
    %4071 = vmatprep.subr.mxu0 0.0
    %v4072 = vand.u32 %v3622, 4294901760
    %4073 = vmatpush1.msra.mxu0 %v4072
    %4074 = vmatprep.subr.mxu0 0.0
    %4075 = vmatpush2.msra.mxu0 0.0
    %4076 = vmatprep.subr.mxu0 0.0
    %4077 = vmatpush2.msra.mxu0 0.0
    %4078 = vmatprep.subr.mxu0 0.0
    %4079 = vmatpush2.msra.mxu0 0.0
    %4080 = vmatprep.subr.mxu0 0.0
    %4081 = vmatpush2.msra.mxu0 0.0
    %4082 = vmatprep.subr.mxu0 0.0
    %4083 = vmatpush2.msra.mxu0 0.0
    %4084 = vmatprep.subr.mxu0 0.0
    %4085 = vmatpush2.msra.mxu0 0.0
    %4086 = vmatprep.subr.mxu0 0.0
    %4087 = vmatpush2.msra.mxu0 0.0
    %4088 = vmatprep.subr.mxu0 0.0
    %4089 = vmatpush2.msra.mxu0 0.0
    %4090 = vmatprep.subr.mxu0 0.0
    %4091 = vmatpush2.msra.mxu0 0.0
    %4092 = vmatprep.subr.mxu0 0.0
    %4093 = vmatpush2.msra.mxu0 0.0
    %4094 = vmatprep.subr.mxu0 0.0
    %4095 = vmatpush2.msra.mxu0 0.0
    %4096 = vmatprep.subr.mxu0 0.0
    %4097 = vmatpush2.msra.mxu0 0.0
    %4098 = vmatprep.subr.mxu0 0.0
    %4099 = vmatpush2.msra.mxu0 0.0
    %4100 = vmatprep.subr.mxu0 0.0
    %4101 = vmatpush2.msra.mxu0 0.0
    %4102 = vmatprep.subr.mxu0 0.0
    %4103 = vmatpush2.msra.mxu0 0.0
    %4104 = vmatprep.subr.mxu0 0.0
    %4105 = vmatpush2.msra.mxu0 0.0
    %4106 = vmatprep.mubr.f32.mxu0 0.0
    %v4107 = vand.u32 %v3625, 4294901760
    %4108 = vmatmul.mubr.f32.gmra.mxu0 %v4107
    %v4109 = vpop.f32.mrf.mxu0
    %v4110 = vadd.f32 %v4032, %v4109
    %v4111 = vpop.f32.mrf.mxu0
    %4112 = vmatprep.mubr.f32.mxu0 0.0
    %v4113 = vand.u32 %v3628, 4294901760
    %4114 = vmatmul.mubr.f32.gmra.mxu0 %v4113
    %v4115 = vpop.f32.mrf.mxu0
    %v4116 = vadd.f32 %v4038, %v4115
    %v4117 = vpop.f32.mrf.mxu0
    %4118 = vdwg.mxu0
    %v4119 = vadd.f32 %v3609, %v4110
    %v4120 = vadd.f32 %v3610, %v4116
    %s4121 = scalar_lea.vmem %s3, 112
    %v4122 = vld [vmem:[%s4121] sm:$0xff]
    %v4123 = vld [vmem:[%s4121 + $0x8] sm:$0xff]
    %v4125 = vsel %vm586, %v4122, 0
    %v4128 = vsel %vm586, %v4123, 0
    %4130 = vmatprep.subr.mxu0 0.0
    %4131 = vmatpush1.msra.mxu0 0.0
    %4132 = vmatprep.subr.mxu0 0.0
    %4133 = vmatpush1.msra.mxu0 0.0
    %4134 = vmatprep.subr.mxu0 0.0
    %4135 = vmatpush1.msra.mxu0 0.0
    %4136 = vmatprep.subr.mxu0 0.0
    %4137 = vmatpush1.msra.mxu0 0.0
    %4138 = vmatprep.subr.mxu0 0.0
    %4139 = vmatpush1.msra.mxu0 0.0
    %4140 = vmatprep.subr.mxu0 0.0
    %4141 = vmatpush1.msra.mxu0 0.0
    %4142 = vmatprep.subr.mxu0 0.0
    %4143 = vmatpush1.msra.mxu0 0.0
    %4144 = vmatprep.subr.mxu0 0.0
    %4145 = vmatpush1.msra.mxu0 0.0
    %4146 = vmatprep.subr.mxu0 0.0
    %4147 = vmatpush1.msra.mxu0 0.0
    %4148 = vmatprep.subr.mxu0 0.0
    %4149 = vmatpush1.msra.mxu0 0.0
    %4150 = vmatprep.subr.mxu0 0.0
    %4151 = vmatpush1.msra.mxu0 0.0
    %4152 = vmatprep.subr.mxu0 0.0
    %4153 = vmatpush1.msra.mxu0 0.0
    %4154 = vmatprep.subr.mxu0 0.0
    %4155 = vmatpush1.msra.mxu0 0.0
    %4156 = vmatprep.subr.mxu0 0.0
    %4157 = vmatpush1.msra.mxu0 0.0
    %4158 = vmatprep.subr.mxu0 0.0
    %4159 = vmatpush1.msra.mxu0 0.0
    %4160 = vmatprep.subr.mxu0 0.0
    %v4161 = vand.u32 %v573, 4294901760
    %4162 = vmatpush1.msra.mxu0 %v4161
    %4163 = vmatprep.subr.mxu0 0.0
    %4164 = vmatpush2.msra.mxu0 0.0
    %4165 = vmatprep.subr.mxu0 0.0
    %4166 = vmatpush2.msra.mxu0 0.0
    %4167 = vmatprep.subr.mxu0 0.0
    %4168 = vmatpush2.msra.mxu0 0.0
    %4169 = vmatprep.subr.mxu0 0.0
    %4170 = vmatpush2.msra.mxu0 0.0
    %4171 = vmatprep.subr.mxu0 0.0
    %4172 = vmatpush2.msra.mxu0 0.0
    %4173 = vmatprep.subr.mxu0 0.0
    %4174 = vmatpush2.msra.mxu0 0.0
    %4175 = vmatprep.subr.mxu0 0.0
    %4176 = vmatpush2.msra.mxu0 0.0
    %4177 = vmatprep.subr.mxu0 0.0
    %4178 = vmatpush2.msra.mxu0 0.0
    %4179 = vmatprep.subr.mxu0 0.0
    %4180 = vmatpush2.msra.mxu0 0.0
    %4181 = vmatprep.subr.mxu0 0.0
    %4182 = vmatpush2.msra.mxu0 0.0
    %4183 = vmatprep.subr.mxu0 0.0
    %4184 = vmatpush2.msra.mxu0 0.0
    %4185 = vmatprep.subr.mxu0 0.0
    %4186 = vmatpush2.msra.mxu0 0.0
    %4187 = vmatprep.subr.mxu0 0.0
    %4188 = vmatpush2.msra.mxu0 0.0
    %4189 = vmatprep.subr.mxu0 0.0
    %4190 = vmatpush2.msra.mxu0 0.0
    %4191 = vmatprep.subr.mxu0 0.0
    %4192 = vmatpush2.msra.mxu0 0.0
    %4193 = vmatprep.subr.mxu0 0.0
    %4194 = vmatpush2.msra.mxu0 0.0
    %4195 = vmatprep.mubr.f32.mxu0 0.0
    %v4196 = vand.u32 %v4125, 4294901760
    %v4197 = vsub.f32 %v4125, %v4196
    %v4198 = vand.u32 %v4197, 4294901760
    %v4199 = vsub.f32 %v4197, %v4198
    %v4200 = vand.u32 %v4199, 4294901760
    %4201 = vmatmul.mubr.f32.gmra.mxu0 %v4200
    %v4202 = vpop.f32.mrf.mxu0
    %v4203 = vadd.f32 0.0, %v4202
    %v4204 = vpop.f32.mrf.mxu0
    %4205 = vmatprep.mubr.f32.mxu0 0.0
    %v4206 = vand.u32 %v4128, 4294901760
    %v4207 = vsub.f32 %v4128, %v4206
    %v4208 = vand.u32 %v4207, 4294901760
    %v4209 = vsub.f32 %v4207, %v4208
    %v4210 = vand.u32 %v4209, 4294901760
    %4211 = vmatmul.mubr.f32.gmra.mxu0 %v4210
    %v4212 = vpop.f32.mrf.mxu0
    %v4213 = vadd.f32 0.0, %v4212
    %v4214 = vpop.f32.mrf.mxu0
    %4215 = vdwg.mxu0
    %4216 = vmatprep.subr.mxu0 0.0
    %4217 = vmatpush1.msra.mxu0 0.0
    %4218 = vmatprep.subr.mxu0 0.0
    %4219 = vmatpush1.msra.mxu0 0.0
    %4220 = vmatprep.subr.mxu0 0.0
    %4221 = vmatpush1.msra.mxu0 0.0
    %4222 = vmatprep.subr.mxu0 0.0
    %4223 = vmatpush1.msra.mxu0 0.0
    %4224 = vmatprep.subr.mxu0 0.0
    %4225 = vmatpush1.msra.mxu0 0.0
    %4226 = vmatprep.subr.mxu0 0.0
    %4227 = vmatpush1.msra.mxu0 0.0
    %4228 = vmatprep.subr.mxu0 0.0
    %4229 = vmatpush1.msra.mxu0 0.0
    %4230 = vmatprep.subr.mxu0 0.0
    %4231 = vmatpush1.msra.mxu0 0.0
    %4232 = vmatprep.subr.mxu0 0.0
    %4233 = vmatpush1.msra.mxu0 0.0
    %4234 = vmatprep.subr.mxu0 0.0
    %4235 = vmatpush1.msra.mxu0 0.0
    %4236 = vmatprep.subr.mxu0 0.0
    %4237 = vmatpush1.msra.mxu0 0.0
    %4238 = vmatprep.subr.mxu0 0.0
    %4239 = vmatpush1.msra.mxu0 0.0
    %4240 = vmatprep.subr.mxu0 0.0
    %4241 = vmatpush1.msra.mxu0 0.0
    %4242 = vmatprep.subr.mxu0 0.0
    %4243 = vmatpush1.msra.mxu0 0.0
    %4244 = vmatprep.subr.mxu0 0.0
    %4245 = vmatpush1.msra.mxu0 0.0
    %4246 = vmatprep.subr.mxu0 0.0
    %v4247 = vand.u32 %v573, 4294901760
    %v4248 = vsub.f32 %v573, %v4247
    %v4249 = vand.u32 %v4248, 4294901760
    %v4250 = vsub.f32 %v4248, %v4249
    %v4251 = vand.u32 %v4250, 4294901760
    %4252 = vmatpush1.msra.mxu0 %v4251
    %4253 = vmatprep.subr.mxu0 0.0
    %4254 = vmatpush2.msra.mxu0 0.0
    %4255 = vmatprep.subr.mxu0 0.0
    %4256 = vmatpush2.msra.mxu0 0.0
    %4257 = vmatprep.subr.mxu0 0.0
    %4258 = vmatpush2.msra.mxu0 0.0
    %4259 = vmatprep.subr.mxu0 0.0
    %4260 = vmatpush2.msra.mxu0 0.0
    %4261 = vmatprep.subr.mxu0 0.0
    %4262 = vmatpush2.msra.mxu0 0.0
    %4263 = vmatprep.subr.mxu0 0.0
    %4264 = vmatpush2.msra.mxu0 0.0
    %4265 = vmatprep.subr.mxu0 0.0
    %4266 = vmatpush2.msra.mxu0 0.0
    %4267 = vmatprep.subr.mxu0 0.0
    %4268 = vmatpush2.msra.mxu0 0.0
    %4269 = vmatprep.subr.mxu0 0.0
    %4270 = vmatpush2.msra.mxu0 0.0
    %4271 = vmatprep.subr.mxu0 0.0
    %4272 = vmatpush2.msra.mxu0 0.0
    %4273 = vmatprep.subr.mxu0 0.0
    %4274 = vmatpush2.msra.mxu0 0.0
    %4275 = vmatprep.subr.mxu0 0.0
    %4276 = vmatpush2.msra.mxu0 0.0
    %4277 = vmatprep.subr.mxu0 0.0
    %4278 = vmatpush2.msra.mxu0 0.0
    %4279 = vmatprep.subr.mxu0 0.0
    %4280 = vmatpush2.msra.mxu0 0.0
    %4281 = vmatprep.subr.mxu0 0.0
    %4282 = vmatpush2.msra.mxu0 0.0
    %4283 = vmatprep.subr.mxu0 0.0
    %4284 = vmatpush2.msra.mxu0 0.0
    %4285 = vmatprep.mubr.f32.mxu0 0.0
    %v4286 = vand.u32 %v4125, 4294901760
    %4287 = vmatmul.mubr.f32.gmra.mxu0 %v4286
    %v4288 = vpop.f32.mrf.mxu0
    %v4289 = vadd.f32 %v4203, %v4288
    %v4290 = vpop.f32.mrf.mxu0
    %4291 = vmatprep.mubr.f32.mxu0 0.0
    %v4292 = vand.u32 %v4128, 4294901760
    %4293 = vmatmul.mubr.f32.gmra.mxu0 %v4292
    %v4294 = vpop.f32.mrf.mxu0
    %v4295 = vadd.f32 %v4213, %v4294
    %v4296 = vpop.f32.mrf.mxu0
    %4297 = vdwg.mxu0
    %4298 = vmatprep.subr.mxu0 0.0
    %4299 = vmatpush1.msra.mxu0 0.0
    %4300 = vmatprep.subr.mxu0 0.0
    %4301 = vmatpush1.msra.mxu0 0.0
    %4302 = vmatprep.subr.mxu0 0.0
    %4303 = vmatpush1.msra.mxu0 0.0
    %4304 = vmatprep.subr.mxu0 0.0
    %4305 = vmatpush1.msra.mxu0 0.0
    %4306 = vmatprep.subr.mxu0 0.0
    %4307 = vmatpush1.msra.mxu0 0.0
    %4308 = vmatprep.subr.mxu0 0.0
    %4309 = vmatpush1.msra.mxu0 0.0
    %4310 = vmatprep.subr.mxu0 0.0
    %4311 = vmatpush1.msra.mxu0 0.0
    %4312 = vmatprep.subr.mxu0 0.0
    %4313 = vmatpush1.msra.mxu0 0.0
    %4314 = vmatprep.subr.mxu0 0.0
    %4315 = vmatpush1.msra.mxu0 0.0
    %4316 = vmatprep.subr.mxu0 0.0
    %4317 = vmatpush1.msra.mxu0 0.0
    %4318 = vmatprep.subr.mxu0 0.0
    %4319 = vmatpush1.msra.mxu0 0.0
    %4320 = vmatprep.subr.mxu0 0.0
    %4321 = vmatpush1.msra.mxu0 0.0
    %4322 = vmatprep.subr.mxu0 0.0
    %4323 = vmatpush1.msra.mxu0 0.0
    %4324 = vmatprep.subr.mxu0 0.0
    %4325 = vmatpush1.msra.mxu0 0.0
    %4326 = vmatprep.subr.mxu0 0.0
    %4327 = vmatpush1.msra.mxu0 0.0
    %4328 = vmatprep.subr.mxu0 0.0
    %v4329 = vand.u32 %v573, 4294901760
    %v4330 = vsub.f32 %v573, %v4329
    %4331 = vmatpush1.msra.mxu0 %v4330
    %4332 = vmatprep.subr.mxu0 0.0
    %4333 = vmatpush2.msra.mxu0 0.0
    %4334 = vmatprep.subr.mxu0 0.0
    %4335 = vmatpush2.msra.mxu0 0.0
    %4336 = vmatprep.subr.mxu0 0.0
    %4337 = vmatpush2.msra.mxu0 0.0
    %4338 = vmatprep.subr.mxu0 0.0
    %4339 = vmatpush2.msra.mxu0 0.0
    %4340 = vmatprep.subr.mxu0 0.0
    %4341 = vmatpush2.msra.mxu0 0.0
    %4342 = vmatprep.subr.mxu0 0.0
    %4343 = vmatpush2.msra.mxu0 0.0
    %4344 = vmatprep.subr.mxu0 0.0
    %4345 = vmatpush2.msra.mxu0 0.0
    %4346 = vmatprep.subr.mxu0 0.0
    %4347 = vmatpush2.msra.mxu0 0.0
    %4348 = vmatprep.subr.mxu0 0.0
    %4349 = vmatpush2.msra.mxu0 0.0
    %4350 = vmatprep.subr.mxu0 0.0
    %4351 = vmatpush2.msra.mxu0 0.0
    %4352 = vmatprep.subr.mxu0 0.0
    %4353 = vmatpush2.msra.mxu0 0.0
    %4354 = vmatprep.subr.mxu0 0.0
    %4355 = vmatpush2.msra.mxu0 0.0
    %4356 = vmatprep.subr.mxu0 0.0
    %4357 = vmatpush2.msra.mxu0 0.0
    %4358 = vmatprep.subr.mxu0 0.0
    %4359 = vmatpush2.msra.mxu0 0.0
    %4360 = vmatprep.subr.mxu0 0.0
    %4361 = vmatpush2.msra.mxu0 0.0
    %4362 = vmatprep.subr.mxu0 0.0
    %4363 = vmatpush2.msra.mxu0 0.0
    %4364 = vmatprep.mubr.f32.mxu0 0.0
    %v4365 = vand.u32 %v4125, 4294901760
    %v4366 = vsub.f32 %v4125, %v4365
    %4367 = vmatmul.mubr.f32.gmra.mxu0 %v4366
    %v4368 = vpop.f32.mrf.mxu0
    %v4369 = vadd.f32 %v4289, %v4368
    %v4370 = vpop.f32.mrf.mxu0
    %4371 = vmatprep.mubr.f32.mxu0 0.0
    %v4372 = vand.u32 %v4128, 4294901760
    %v4373 = vsub.f32 %v4128, %v4372
    %4374 = vmatmul.mubr.f32.gmra.mxu0 %v4373
    %v4375 = vpop.f32.mrf.mxu0
    %v4376 = vadd.f32 %v4295, %v4375
    %v4377 = vpop.f32.mrf.mxu0
    %4378 = vdwg.mxu0
    %4379 = vmatprep.subr.mxu0 0.0
    %4380 = vmatpush1.msra.mxu0 0.0
    %4381 = vmatprep.subr.mxu0 0.0
    %4382 = vmatpush1.msra.mxu0 0.0
    %4383 = vmatprep.subr.mxu0 0.0
    %4384 = vmatpush1.msra.mxu0 0.0
    %4385 = vmatprep.subr.mxu0 0.0
    %4386 = vmatpush1.msra.mxu0 0.0
    %4387 = vmatprep.subr.mxu0 0.0
    %4388 = vmatpush1.msra.mxu0 0.0
    %4389 = vmatprep.subr.mxu0 0.0
    %4390 = vmatpush1.msra.mxu0 0.0
    %4391 = vmatprep.subr.mxu0 0.0
    %4392 = vmatpush1.msra.mxu0 0.0
    %4393 = vmatprep.subr.mxu0 0.0
    %4394 = vmatpush1.msra.mxu0 0.0
    %4395 = vmatprep.subr.mxu0 0.0
    %4396 = vmatpush1.msra.mxu0 0.0
    %4397 = vmatprep.subr.mxu0 0.0
    %4398 = vmatpush1.msra.mxu0 0.0
    %4399 = vmatprep.subr.mxu0 0.0
    %4400 = vmatpush1.msra.mxu0 0.0
    %4401 = vmatprep.subr.mxu0 0.0
    %4402 = vmatpush1.msra.mxu0 0.0
    %4403 = vmatprep.subr.mxu0 0.0
    %4404 = vmatpush1.msra.mxu0 0.0
    %4405 = vmatprep.subr.mxu0 0.0
    %4406 = vmatpush1.msra.mxu0 0.0
    %4407 = vmatprep.subr.mxu0 0.0
    %4408 = vmatpush1.msra.mxu0 0.0
    %4409 = vmatprep.subr.mxu0 0.0
    %v4410 = vand.u32 %v573, 4294901760
    %4411 = vmatpush1.msra.mxu0 %v4410
    %4412 = vmatprep.subr.mxu0 0.0
    %4413 = vmatpush2.msra.mxu0 0.0
    %4414 = vmatprep.subr.mxu0 0.0
    %4415 = vmatpush2.msra.mxu0 0.0
    %4416 = vmatprep.subr.mxu0 0.0
    %4417 = vmatpush2.msra.mxu0 0.0
    %4418 = vmatprep.subr.mxu0 0.0
    %4419 = vmatpush2.msra.mxu0 0.0
    %4420 = vmatprep.subr.mxu0 0.0
    %4421 = vmatpush2.msra.mxu0 0.0
    %4422 = vmatprep.subr.mxu0 0.0
    %4423 = vmatpush2.msra.mxu0 0.0
    %4424 = vmatprep.subr.mxu0 0.0
    %4425 = vmatpush2.msra.mxu0 0.0
    %4426 = vmatprep.subr.mxu0 0.0
    %4427 = vmatpush2.msra.mxu0 0.0
    %4428 = vmatprep.subr.mxu0 0.0
    %4429 = vmatpush2.msra.mxu0 0.0
    %4430 = vmatprep.subr.mxu0 0.0
    %4431 = vmatpush2.msra.mxu0 0.0
    %4432 = vmatprep.subr.mxu0 0.0
    %4433 = vmatpush2.msra.mxu0 0.0
    %4434 = vmatprep.subr.mxu0 0.0
    %4435 = vmatpush2.msra.mxu0 0.0
    %4436 = vmatprep.subr.mxu0 0.0
    %4437 = vmatpush2.msra.mxu0 0.0
    %4438 = vmatprep.subr.mxu0 0.0
    %4439 = vmatpush2.msra.mxu0 0.0
    %4440 = vmatprep.subr.mxu0 0.0
    %4441 = vmatpush2.msra.mxu0 0.0
    %4442 = vmatprep.subr.mxu0 0.0
    %4443 = vmatpush2.msra.mxu0 0.0
    %4444 = vmatprep.mubr.f32.mxu0 0.0
    %v4445 = vand.u32 %v4125, 4294901760
    %v4446 = vsub.f32 %v4125, %v4445
    %v4447 = vand.u32 %v4446, 4294901760
    %4448 = vmatmul.mubr.f32.gmra.mxu0 %v4447
    %v4449 = vpop.f32.mrf.mxu0
    %v4450 = vadd.f32 %v4369, %v4449
    %v4451 = vpop.f32.mrf.mxu0
    %4452 = vmatprep.mubr.f32.mxu0 0.0
    %v4453 = vand.u32 %v4128, 4294901760
    %v4454 = vsub.f32 %v4128, %v4453
    %v4455 = vand.u32 %v4454, 4294901760
    %4456 = vmatmul.mubr.f32.gmra.mxu0 %v4455
    %v4457 = vpop.f32.mrf.mxu0
    %v4458 = vadd.f32 %v4376, %v4457
    %v4459 = vpop.f32.mrf.mxu0
    %4460 = vdwg.mxu0
    %4461 = vmatprep.subr.mxu0 0.0
    %4462 = vmatpush1.msra.mxu0 0.0
    %4463 = vmatprep.subr.mxu0 0.0
    %4464 = vmatpush1.msra.mxu0 0.0
    %4465 = vmatprep.subr.mxu0 0.0
    %4466 = vmatpush1.msra.mxu0 0.0
    %4467 = vmatprep.subr.mxu0 0.0
    %4468 = vmatpush1.msra.mxu0 0.0
    %4469 = vmatprep.subr.mxu0 0.0
    %4470 = vmatpush1.msra.mxu0 0.0
    %4471 = vmatprep.subr.mxu0 0.0
    %4472 = vmatpush1.msra.mxu0 0.0
    %4473 = vmatprep.subr.mxu0 0.0
    %4474 = vmatpush1.msra.mxu0 0.0
    %4475 = vmatprep.subr.mxu0 0.0
    %4476 = vmatpush1.msra.mxu0 0.0
    %4477 = vmatprep.subr.mxu0 0.0
    %4478 = vmatpush1.msra.mxu0 0.0
    %4479 = vmatprep.subr.mxu0 0.0
    %4480 = vmatpush1.msra.mxu0 0.0
    %4481 = vmatprep.subr.mxu0 0.0
    %4482 = vmatpush1.msra.mxu0 0.0
    %4483 = vmatprep.subr.mxu0 0.0
    %4484 = vmatpush1.msra.mxu0 0.0
    %4485 = vmatprep.subr.mxu0 0.0
    %4486 = vmatpush1.msra.mxu0 0.0
    %4487 = vmatprep.subr.mxu0 0.0
    %4488 = vmatpush1.msra.mxu0 0.0
    %4489 = vmatprep.subr.mxu0 0.0
    %4490 = vmatpush1.msra.mxu0 0.0
    %4491 = vmatprep.subr.mxu0 0.0
    %v4492 = vand.u32 %v573, 4294901760
    %v4493 = vsub.f32 %v573, %v4492
    %v4494 = vand.u32 %v4493, 4294901760
    %4495 = vmatpush1.msra.mxu0 %v4494
    %4496 = vmatprep.subr.mxu0 0.0
    %4497 = vmatpush2.msra.mxu0 0.0
    %4498 = vmatprep.subr.mxu0 0.0
    %4499 = vmatpush2.msra.mxu0 0.0
    %4500 = vmatprep.subr.mxu0 0.0
    %4501 = vmatpush2.msra.mxu0 0.0
    %4502 = vmatprep.subr.mxu0 0.0
    %4503 = vmatpush2.msra.mxu0 0.0
    %4504 = vmatprep.subr.mxu0 0.0
    %4505 = vmatpush2.msra.mxu0 0.0
    %4506 = vmatprep.subr.mxu0 0.0
    %4507 = vmatpush2.msra.mxu0 0.0
    %4508 = vmatprep.subr.mxu0 0.0
    %4509 = vmatpush2.msra.mxu0 0.0
    %4510 = vmatprep.subr.mxu0 0.0
    %4511 = vmatpush2.msra.mxu0 0.0
    %4512 = vmatprep.subr.mxu0 0.0
    %4513 = vmatpush2.msra.mxu0 0.0
    %4514 = vmatprep.subr.mxu0 0.0
    %4515 = vmatpush2.msra.mxu0 0.0
    %4516 = vmatprep.subr.mxu0 0.0
    %4517 = vmatpush2.msra.mxu0 0.0
    %4518 = vmatprep.subr.mxu0 0.0
    %4519 = vmatpush2.msra.mxu0 0.0
    %4520 = vmatprep.subr.mxu0 0.0
    %4521 = vmatpush2.msra.mxu0 0.0
    %4522 = vmatprep.subr.mxu0 0.0
    %4523 = vmatpush2.msra.mxu0 0.0
    %4524 = vmatprep.subr.mxu0 0.0
    %4525 = vmatpush2.msra.mxu0 0.0
    %4526 = vmatprep.subr.mxu0 0.0
    %4527 = vmatpush2.msra.mxu0 0.0
    %4528 = vmatprep.mubr.f32.mxu0 0.0
    %v4529 = vand.u32 %v4125, 4294901760
    %4530 = vmatmul.mubr.f32.gmra.mxu0 %v4529
    %v4531 = vpop.f32.mrf.mxu0
    %v4532 = vadd.f32 %v4450, %v4531
    %v4533 = vpop.f32.mrf.mxu0
    %4534 = vmatprep.mubr.f32.mxu0 0.0
    %v4535 = vand.u32 %v4128, 4294901760
    %4536 = vmatmul.mubr.f32.gmra.mxu0 %v4535
    %v4537 = vpop.f32.mrf.mxu0
    %v4538 = vadd.f32 %v4458, %v4537
    %v4539 = vpop.f32.mrf.mxu0
    %4540 = vdwg.mxu0
    %4541 = vmatprep.subr.mxu0 0.0
    %4542 = vmatpush1.msra.mxu0 0.0
    %4543 = vmatprep.subr.mxu0 0.0
    %4544 = vmatpush1.msra.mxu0 0.0
    %4545 = vmatprep.subr.mxu0 0.0
    %4546 = vmatpush1.msra.mxu0 0.0
    %4547 = vmatprep.subr.mxu0 0.0
    %4548 = vmatpush1.msra.mxu0 0.0
    %4549 = vmatprep.subr.mxu0 0.0
    %4550 = vmatpush1.msra.mxu0 0.0
    %4551 = vmatprep.subr.mxu0 0.0
    %4552 = vmatpush1.msra.mxu0 0.0
    %4553 = vmatprep.subr.mxu0 0.0
    %4554 = vmatpush1.msra.mxu0 0.0
    %4555 = vmatprep.subr.mxu0 0.0
    %4556 = vmatpush1.msra.mxu0 0.0
    %4557 = vmatprep.subr.mxu0 0.0
    %4558 = vmatpush1.msra.mxu0 0.0
    %4559 = vmatprep.subr.mxu0 0.0
    %4560 = vmatpush1.msra.mxu0 0.0
    %4561 = vmatprep.subr.mxu0 0.0
    %4562 = vmatpush1.msra.mxu0 0.0
    %4563 = vmatprep.subr.mxu0 0.0
    %4564 = vmatpush1.msra.mxu0 0.0
    %4565 = vmatprep.subr.mxu0 0.0
    %4566 = vmatpush1.msra.mxu0 0.0
    %4567 = vmatprep.subr.mxu0 0.0
    %4568 = vmatpush1.msra.mxu0 0.0
    %4569 = vmatprep.subr.mxu0 0.0
    %4570 = vmatpush1.msra.mxu0 0.0
    %4571 = vmatprep.subr.mxu0 0.0
    %v4572 = vand.u32 %v573, 4294901760
    %4573 = vmatpush1.msra.mxu0 %v4572
    %4574 = vmatprep.subr.mxu0 0.0
    %4575 = vmatpush2.msra.mxu0 0.0
    %4576 = vmatprep.subr.mxu0 0.0
    %4577 = vmatpush2.msra.mxu0 0.0
    %4578 = vmatprep.subr.mxu0 0.0
    %4579 = vmatpush2.msra.mxu0 0.0
    %4580 = vmatprep.subr.mxu0 0.0
    %4581 = vmatpush2.msra.mxu0 0.0
    %4582 = vmatprep.subr.mxu0 0.0
    %4583 = vmatpush2.msra.mxu0 0.0
    %4584 = vmatprep.subr.mxu0 0.0
    %4585 = vmatpush2.msra.mxu0 0.0
    %4586 = vmatprep.subr.mxu0 0.0
    %4587 = vmatpush2.msra.mxu0 0.0
    %4588 = vmatprep.subr.mxu0 0.0
    %4589 = vmatpush2.msra.mxu0 0.0
    %4590 = vmatprep.subr.mxu0 0.0
    %4591 = vmatpush2.msra.mxu0 0.0
    %4592 = vmatprep.subr.mxu0 0.0
    %4593 = vmatpush2.msra.mxu0 0.0
    %4594 = vmatprep.subr.mxu0 0.0
    %4595 = vmatpush2.msra.mxu0 0.0
    %4596 = vmatprep.subr.mxu0 0.0
    %4597 = vmatpush2.msra.mxu0 0.0
    %4598 = vmatprep.subr.mxu0 0.0
    %4599 = vmatpush2.msra.mxu0 0.0
    %4600 = vmatprep.subr.mxu0 0.0
    %4601 = vmatpush2.msra.mxu0 0.0
    %4602 = vmatprep.subr.mxu0 0.0
    %4603 = vmatpush2.msra.mxu0 0.0
    %4604 = vmatprep.subr.mxu0 0.0
    %4605 = vmatpush2.msra.mxu0 0.0
    %4606 = vmatprep.mubr.f32.mxu0 0.0
    %v4607 = vand.u32 %v4125, 4294901760
    %4608 = vmatmul.mubr.f32.gmra.mxu0 %v4607
    %v4609 = vpop.f32.mrf.mxu0
    %v4610 = vadd.f32 %v4532, %v4609
    %v4611 = vpop.f32.mrf.mxu0
    %4612 = vmatprep.mubr.f32.mxu0 0.0
    %v4613 = vand.u32 %v4128, 4294901760
    %4614 = vmatmul.mubr.f32.gmra.mxu0 %v4613
    %v4615 = vpop.f32.mrf.mxu0
    %v4616 = vadd.f32 %v4538, %v4615
    %v4617 = vpop.f32.mrf.mxu0
    %4618 = vdwg.mxu0
    %v4619 = vadd.f32 %v4119, %v4610
    %v4620 = vadd.f32 %v4120, %v4616
    %s4621 = scalar_lea.vmem %s3, 128
    %v4622 = vld [vmem:[%s4621] sm:$0xff]
    %v4623 = vld [vmem:[%s4621 + $0x8] sm:$0xff]
    %v4625 = vsel %vm586, %v4622, 0
    %v4628 = vsel %vm586, %v4623, 0
    %4630 = vmatprep.subr.mxu0 0.0
    %4631 = vmatpush1.msra.mxu0 0.0
    %4632 = vmatprep.subr.mxu0 0.0
    %4633 = vmatpush1.msra.mxu0 0.0
    %4634 = vmatprep.subr.mxu0 0.0
    %4635 = vmatpush1.msra.mxu0 0.0
    %4636 = vmatprep.subr.mxu0 0.0
    %4637 = vmatpush1.msra.mxu0 0.0
    %4638 = vmatprep.subr.mxu0 0.0
    %4639 = vmatpush1.msra.mxu0 0.0
    %4640 = vmatprep.subr.mxu0 0.0
    %4641 = vmatpush1.msra.mxu0 0.0
    %4642 = vmatprep.subr.mxu0 0.0
    %4643 = vmatpush1.msra.mxu0 0.0
    %4644 = vmatprep.subr.mxu0 0.0
    %4645 = vmatpush1.msra.mxu0 0.0
    %4646 = vmatprep.subr.mxu0 0.0
    %4647 = vmatpush1.msra.mxu0 0.0
    %4648 = vmatprep.subr.mxu0 0.0
    %4649 = vmatpush1.msra.mxu0 0.0
    %4650 = vmatprep.subr.mxu0 0.0
    %4651 = vmatpush1.msra.mxu0 0.0
    %4652 = vmatprep.subr.mxu0 0.0
    %4653 = vmatpush1.msra.mxu0 0.0
    %4654 = vmatprep.subr.mxu0 0.0
    %4655 = vmatpush1.msra.mxu0 0.0
    %4656 = vmatprep.subr.mxu0 0.0
    %4657 = vmatpush1.msra.mxu0 0.0
    %4658 = vmatprep.subr.mxu0 0.0
    %4659 = vmatpush1.msra.mxu0 0.0
    %4660 = vmatprep.subr.mxu0 0.0
    %v4661 = vand.u32 %v563, 4294901760
    %4662 = vmatpush1.msra.mxu0 %v4661
    %4663 = vmatprep.subr.mxu0 0.0
    %4664 = vmatpush2.msra.mxu0 0.0
    %4665 = vmatprep.subr.mxu0 0.0
    %4666 = vmatpush2.msra.mxu0 0.0
    %4667 = vmatprep.subr.mxu0 0.0
    %4668 = vmatpush2.msra.mxu0 0.0
    %4669 = vmatprep.subr.mxu0 0.0
    %4670 = vmatpush2.msra.mxu0 0.0
    %4671 = vmatprep.subr.mxu0 0.0
    %4672 = vmatpush2.msra.mxu0 0.0
    %4673 = vmatprep.subr.mxu0 0.0
    %4674 = vmatpush2.msra.mxu0 0.0
    %4675 = vmatprep.subr.mxu0 0.0
    %4676 = vmatpush2.msra.mxu0 0.0
    %4677 = vmatprep.subr.mxu0 0.0
    %4678 = vmatpush2.msra.mxu0 0.0
    %4679 = vmatprep.subr.mxu0 0.0
    %4680 = vmatpush2.msra.mxu0 0.0
    %4681 = vmatprep.subr.mxu0 0.0
    %4682 = vmatpush2.msra.mxu0 0.0
    %4683 = vmatprep.subr.mxu0 0.0
    %4684 = vmatpush2.msra.mxu0 0.0
    %4685 = vmatprep.subr.mxu0 0.0
    %4686 = vmatpush2.msra.mxu0 0.0
    %4687 = vmatprep.subr.mxu0 0.0
    %4688 = vmatpush2.msra.mxu0 0.0
    %4689 = vmatprep.subr.mxu0 0.0
    %4690 = vmatpush2.msra.mxu0 0.0
    %4691 = vmatprep.subr.mxu0 0.0
    %4692 = vmatpush2.msra.mxu0 0.0
    %4693 = vmatprep.subr.mxu0 0.0
    %4694 = vmatpush2.msra.mxu0 0.0
    %4695 = vmatprep.mubr.f32.mxu0 0.0
    %v4696 = vand.u32 %v4625, 4294901760
    %v4697 = vsub.f32 %v4625, %v4696
    %v4698 = vand.u32 %v4697, 4294901760
    %v4699 = vsub.f32 %v4697, %v4698
    %v4700 = vand.u32 %v4699, 4294901760
    %4701 = vmatmul.mubr.f32.gmra.mxu0 %v4700
    %v4702 = vpop.f32.mrf.mxu0
    %v4703 = vadd.f32 0.0, %v4702
    %v4704 = vpop.f32.mrf.mxu0
    %4705 = vmatprep.mubr.f32.mxu0 0.0
    %v4706 = vand.u32 %v4628, 4294901760
    %v4707 = vsub.f32 %v4628, %v4706
    %v4708 = vand.u32 %v4707, 4294901760
    %v4709 = vsub.f32 %v4707, %v4708
    %v4710 = vand.u32 %v4709, 4294901760
    %4711 = vmatmul.mubr.f32.gmra.mxu0 %v4710
    %v4712 = vpop.f32.mrf.mxu0
    %v4713 = vadd.f32 0.0, %v4712
    %v4714 = vpop.f32.mrf.mxu0
    %4715 = vdwg.mxu0
    %4716 = vmatprep.subr.mxu0 0.0
    %4717 = vmatpush1.msra.mxu0 0.0
    %4718 = vmatprep.subr.mxu0 0.0
    %4719 = vmatpush1.msra.mxu0 0.0
    %4720 = vmatprep.subr.mxu0 0.0
    %4721 = vmatpush1.msra.mxu0 0.0
    %4722 = vmatprep.subr.mxu0 0.0
    %4723 = vmatpush1.msra.mxu0 0.0
    %4724 = vmatprep.subr.mxu0 0.0
    %4725 = vmatpush1.msra.mxu0 0.0
    %4726 = vmatprep.subr.mxu0 0.0
    %4727 = vmatpush1.msra.mxu0 0.0
    %4728 = vmatprep.subr.mxu0 0.0
    %4729 = vmatpush1.msra.mxu0 0.0
    %4730 = vmatprep.subr.mxu0 0.0
    %4731 = vmatpush1.msra.mxu0 0.0
    %4732 = vmatprep.subr.mxu0 0.0
    %4733 = vmatpush1.msra.mxu0 0.0
    %4734 = vmatprep.subr.mxu0 0.0
    %4735 = vmatpush1.msra.mxu0 0.0
    %4736 = vmatprep.subr.mxu0 0.0
    %4737 = vmatpush1.msra.mxu0 0.0
    %4738 = vmatprep.subr.mxu0 0.0
    %4739 = vmatpush1.msra.mxu0 0.0
    %4740 = vmatprep.subr.mxu0 0.0
    %4741 = vmatpush1.msra.mxu0 0.0
    %4742 = vmatprep.subr.mxu0 0.0
    %4743 = vmatpush1.msra.mxu0 0.0
    %4744 = vmatprep.subr.mxu0 0.0
    %4745 = vmatpush1.msra.mxu0 0.0
    %4746 = vmatprep.subr.mxu0 0.0
    %v4747 = vand.u32 %v563, 4294901760
    %v4748 = vsub.f32 %v563, %v4747
    %v4749 = vand.u32 %v4748, 4294901760
    %v4750 = vsub.f32 %v4748, %v4749
    %v4751 = vand.u32 %v4750, 4294901760
    %4752 = vmatpush1.msra.mxu0 %v4751
    %4753 = vmatprep.subr.mxu0 0.0
    %4754 = vmatpush2.msra.mxu0 0.0
    %4755 = vmatprep.subr.mxu0 0.0
    %4756 = vmatpush2.msra.mxu0 0.0
    %4757 = vmatprep.subr.mxu0 0.0
    %4758 = vmatpush2.msra.mxu0 0.0
    %4759 = vmatprep.subr.mxu0 0.0
    %4760 = vmatpush2.msra.mxu0 0.0
    %4761 = vmatprep.subr.mxu0 0.0
    %4762 = vmatpush2.msra.mxu0 0.0
    %4763 = vmatprep.subr.mxu0 0.0
    %4764 = vmatpush2.msra.mxu0 0.0
    %4765 = vmatprep.subr.mxu0 0.0
    %4766 = vmatpush2.msra.mxu0 0.0
    %4767 = vmatprep.subr.mxu0 0.0
    %4768 = vmatpush2.msra.mxu0 0.0
    %4769 = vmatprep.subr.mxu0 0.0
    %4770 = vmatpush2.msra.mxu0 0.0
    %4771 = vmatprep.subr.mxu0 0.0
    %4772 = vmatpush2.msra.mxu0 0.0
    %4773 = vmatprep.subr.mxu0 0.0
    %4774 = vmatpush2.msra.mxu0 0.0
    %4775 = vmatprep.subr.mxu0 0.0
    %4776 = vmatpush2.msra.mxu0 0.0
    %4777 = vmatprep.subr.mxu0 0.0
    %4778 = vmatpush2.msra.mxu0 0.0
    %4779 = vmatprep.subr.mxu0 0.0
    %4780 = vmatpush2.msra.mxu0 0.0
    %4781 = vmatprep.subr.mxu0 0.0
    %4782 = vmatpush2.msra.mxu0 0.0
    %4783 = vmatprep.subr.mxu0 0.0
    %4784 = vmatpush2.msra.mxu0 0.0
    %4785 = vmatprep.mubr.f32.mxu0 0.0
    %v4786 = vand.u32 %v4625, 4294901760
    %4787 = vmatmul.mubr.f32.gmra.mxu0 %v4786
    %v4788 = vpop.f32.mrf.mxu0
    %v4789 = vadd.f32 %v4703, %v4788
    %v4790 = vpop.f32.mrf.mxu0
    %4791 = vmatprep.mubr.f32.mxu0 0.0
    %v4792 = vand.u32 %v4628, 4294901760
    %4793 = vmatmul.mubr.f32.gmra.mxu0 %v4792
    %v4794 = vpop.f32.mrf.mxu0
    %v4795 = vadd.f32 %v4713, %v4794
    %v4796 = vpop.f32.mrf.mxu0
    %4797 = vdwg.mxu0
    %4798 = vmatprep.subr.mxu0 0.0
    %4799 = vmatpush1.msra.mxu0 0.0
    %4800 = vmatprep.subr.mxu0 0.0
    %4801 = vmatpush1.msra.mxu0 0.0
    %4802 = vmatprep.subr.mxu0 0.0
    %4803 = vmatpush1.msra.mxu0 0.0
    %4804 = vmatprep.subr.mxu0 0.0
    %4805 = vmatpush1.msra.mxu0 0.0
    %4806 = vmatprep.subr.mxu0 0.0
    %4807 = vmatpush1.msra.mxu0 0.0
    %4808 = vmatprep.subr.mxu0 0.0
    %4809 = vmatpush1.msra.mxu0 0.0
    %4810 = vmatprep.subr.mxu0 0.0
    %4811 = vmatpush1.msra.mxu0 0.0
    %4812 = vmatprep.subr.mxu0 0.0
    %4813 = vmatpush1.msra.mxu0 0.0
    %4814 = vmatprep.subr.mxu0 0.0
    %4815 = vmatpush1.msra.mxu0 0.0
    %4816 = vmatprep.subr.mxu0 0.0
    %4817 = vmatpush1.msra.mxu0 0.0
    %4818 = vmatprep.subr.mxu0 0.0
    %4819 = vmatpush1.msra.mxu0 0.0
    %4820 = vmatprep.subr.mxu0 0.0
    %4821 = vmatpush1.msra.mxu0 0.0
    %4822 = vmatprep.subr.mxu0 0.0
    %4823 = vmatpush1.msra.mxu0 0.0
    %4824 = vmatprep.subr.mxu0 0.0
    %4825 = vmatpush1.msra.mxu0 0.0
    %4826 = vmatprep.subr.mxu0 0.0
    %4827 = vmatpush1.msra.mxu0 0.0
    %4828 = vmatprep.subr.mxu0 0.0
    %v4829 = vand.u32 %v563, 4294901760
    %v4830 = vsub.f32 %v563, %v4829
    %4831 = vmatpush1.msra.mxu0 %v4830
    %4832 = vmatprep.subr.mxu0 0.0
    %4833 = vmatpush2.msra.mxu0 0.0
    %4834 = vmatprep.subr.mxu0 0.0
    %4835 = vmatpush2.msra.mxu0 0.0
    %4836 = vmatprep.subr.mxu0 0.0
    %4837 = vmatpush2.msra.mxu0 0.0
    %4838 = vmatprep.subr.mxu0 0.0
    %4839 = vmatpush2.msra.mxu0 0.0
    %4840 = vmatprep.subr.mxu0 0.0
    %4841 = vmatpush2.msra.mxu0 0.0
    %4842 = vmatprep.subr.mxu0 0.0
    %4843 = vmatpush2.msra.mxu0 0.0
    %4844 = vmatprep.subr.mxu0 0.0
    %4845 = vmatpush2.msra.mxu0 0.0
    %4846 = vmatprep.subr.mxu0 0.0
    %4847 = vmatpush2.msra.mxu0 0.0
    %4848 = vmatprep.subr.mxu0 0.0
    %4849 = vmatpush2.msra.mxu0 0.0
    %4850 = vmatprep.subr.mxu0 0.0
    %4851 = vmatpush2.msra.mxu0 0.0
    %4852 = vmatprep.subr.mxu0 0.0
    %4853 = vmatpush2.msra.mxu0 0.0
    %4854 = vmatprep.subr.mxu0 0.0
    %4855 = vmatpush2.msra.mxu0 0.0
    %4856 = vmatprep.subr.mxu0 0.0
    %4857 = vmatpush2.msra.mxu0 0.0
    %4858 = vmatprep.subr.mxu0 0.0
    %4859 = vmatpush2.msra.mxu0 0.0
    %4860 = vmatprep.subr.mxu0 0.0
    %4861 = vmatpush2.msra.mxu0 0.0
    %4862 = vmatprep.subr.mxu0 0.0
    %4863 = vmatpush2.msra.mxu0 0.0
    %4864 = vmatprep.mubr.f32.mxu0 0.0
    %v4865 = vand.u32 %v4625, 4294901760
    %v4866 = vsub.f32 %v4625, %v4865
    %4867 = vmatmul.mubr.f32.gmra.mxu0 %v4866
    %v4868 = vpop.f32.mrf.mxu0
    %v4869 = vadd.f32 %v4789, %v4868
    %v4870 = vpop.f32.mrf.mxu0
    %4871 = vmatprep.mubr.f32.mxu0 0.0
    %v4872 = vand.u32 %v4628, 4294901760
    %v4873 = vsub.f32 %v4628, %v4872
    %4874 = vmatmul.mubr.f32.gmra.mxu0 %v4873
    %v4875 = vpop.f32.mrf.mxu0
    %v4876 = vadd.f32 %v4795, %v4875
    %v4877 = vpop.f32.mrf.mxu0
    %4878 = vdwg.mxu0
    %4879 = vmatprep.subr.mxu0 0.0
    %4880 = vmatpush1.msra.mxu0 0.0
    %4881 = vmatprep.subr.mxu0 0.0
    %4882 = vmatpush1.msra.mxu0 0.0
    %4883 = vmatprep.subr.mxu0 0.0
    %4884 = vmatpush1.msra.mxu0 0.0
    %4885 = vmatprep.subr.mxu0 0.0
    %4886 = vmatpush1.msra.mxu0 0.0
    %4887 = vmatprep.subr.mxu0 0.0
    %4888 = vmatpush1.msra.mxu0 0.0
    %4889 = vmatprep.subr.mxu0 0.0
    %4890 = vmatpush1.msra.mxu0 0.0
    %4891 = vmatprep.subr.mxu0 0.0
    %4892 = vmatpush1.msra.mxu0 0.0
    %4893 = vmatprep.subr.mxu0 0.0
    %4894 = vmatpush1.msra.mxu0 0.0
    %4895 = vmatprep.subr.mxu0 0.0
    %4896 = vmatpush1.msra.mxu0 0.0
    %4897 = vmatprep.subr.mxu0 0.0
    %4898 = vmatpush1.msra.mxu0 0.0
    %4899 = vmatprep.subr.mxu0 0.0
    %4900 = vmatpush1.msra.mxu0 0.0
    %4901 = vmatprep.subr.mxu0 0.0
    %4902 = vmatpush1.msra.mxu0 0.0
    %4903 = vmatprep.subr.mxu0 0.0
    %4904 = vmatpush1.msra.mxu0 0.0
    %4905 = vmatprep.subr.mxu0 0.0
    %4906 = vmatpush1.msra.mxu0 0.0
    %4907 = vmatprep.subr.mxu0 0.0
    %4908 = vmatpush1.msra.mxu0 0.0
    %4909 = vmatprep.subr.mxu0 0.0
    %v4910 = vand.u32 %v563, 4294901760
    %4911 = vmatpush1.msra.mxu0 %v4910
    %4912 = vmatprep.subr.mxu0 0.0
    %4913 = vmatpush2.msra.mxu0 0.0
    %4914 = vmatprep.subr.mxu0 0.0
    %4915 = vmatpush2.msra.mxu0 0.0
    %4916 = vmatprep.subr.mxu0 0.0
    %4917 = vmatpush2.msra.mxu0 0.0
    %4918 = vmatprep.subr.mxu0 0.0
    %4919 = vmatpush2.msra.mxu0 0.0
    %4920 = vmatprep.subr.mxu0 0.0
    %4921 = vmatpush2.msra.mxu0 0.0
    %4922 = vmatprep.subr.mxu0 0.0
    %4923 = vmatpush2.msra.mxu0 0.0
    %4924 = vmatprep.subr.mxu0 0.0
    %4925 = vmatpush2.msra.mxu0 0.0
    %4926 = vmatprep.subr.mxu0 0.0
    %4927 = vmatpush2.msra.mxu0 0.0
    %4928 = vmatprep.subr.mxu0 0.0
    %4929 = vmatpush2.msra.mxu0 0.0
    %4930 = vmatprep.subr.mxu0 0.0
    %4931 = vmatpush2.msra.mxu0 0.0
    %4932 = vmatprep.subr.mxu0 0.0
    %4933 = vmatpush2.msra.mxu0 0.0
    %4934 = vmatprep.subr.mxu0 0.0
    %4935 = vmatpush2.msra.mxu0 0.0
    %4936 = vmatprep.subr.mxu0 0.0
    %4937 = vmatpush2.msra.mxu0 0.0
    %4938 = vmatprep.subr.mxu0 0.0
    %4939 = vmatpush2.msra.mxu0 0.0
    %4940 = vmatprep.subr.mxu0 0.0
    %4941 = vmatpush2.msra.mxu0 0.0
    %4942 = vmatprep.subr.mxu0 0.0
    %4943 = vmatpush2.msra.mxu0 0.0
    %4944 = vmatprep.mubr.f32.mxu0 0.0
    %v4945 = vand.u32 %v4625, 4294901760
    %v4946 = vsub.f32 %v4625, %v4945
    %v4947 = vand.u32 %v4946, 4294901760
    %4948 = vmatmul.mubr.f32.gmra.mxu0 %v4947
    %v4949 = vpop.f32.mrf.mxu0
    %v4950 = vadd.f32 %v4869, %v4949
    %v4951 = vpop.f32.mrf.mxu0
    %4952 = vmatprep.mubr.f32.mxu0 0.0
    %v4953 = vand.u32 %v4628, 4294901760
    %v4954 = vsub.f32 %v4628, %v4953
    %v4955 = vand.u32 %v4954, 4294901760
    %4956 = vmatmul.mubr.f32.gmra.mxu0 %v4955
    %v4957 = vpop.f32.mrf.mxu0
    %v4958 = vadd.f32 %v4876, %v4957
    %v4959 = vpop.f32.mrf.mxu0
    %4960 = vdwg.mxu0
    %4961 = vmatprep.subr.mxu0 0.0
    %4962 = vmatpush1.msra.mxu0 0.0
    %4963 = vmatprep.subr.mxu0 0.0
    %4964 = vmatpush1.msra.mxu0 0.0
    %4965 = vmatprep.subr.mxu0 0.0
    %4966 = vmatpush1.msra.mxu0 0.0
    %4967 = vmatprep.subr.mxu0 0.0
    %4968 = vmatpush1.msra.mxu0 0.0
    %4969 = vmatprep.subr.mxu0 0.0
    %4970 = vmatpush1.msra.mxu0 0.0
    %4971 = vmatprep.subr.mxu0 0.0
    %4972 = vmatpush1.msra.mxu0 0.0
    %4973 = vmatprep.subr.mxu0 0.0
    %4974 = vmatpush1.msra.mxu0 0.0
    %4975 = vmatprep.subr.mxu0 0.0
    %4976 = vmatpush1.msra.mxu0 0.0
    %4977 = vmatprep.subr.mxu0 0.0
    %4978 = vmatpush1.msra.mxu0 0.0
    %4979 = vmatprep.subr.mxu0 0.0
    %4980 = vmatpush1.msra.mxu0 0.0
    %4981 = vmatprep.subr.mxu0 0.0
    %4982 = vmatpush1.msra.mxu0 0.0
    %4983 = vmatprep.subr.mxu0 0.0
    %4984 = vmatpush1.msra.mxu0 0.0
    %4985 = vmatprep.subr.mxu0 0.0
    %4986 = vmatpush1.msra.mxu0 0.0
    %4987 = vmatprep.subr.mxu0 0.0
    %4988 = vmatpush1.msra.mxu0 0.0
    %4989 = vmatprep.subr.mxu0 0.0
    %4990 = vmatpush1.msra.mxu0 0.0
    %4991 = vmatprep.subr.mxu0 0.0
    %v4992 = vand.u32 %v563, 4294901760
    %v4993 = vsub.f32 %v563, %v4992
    %v4994 = vand.u32 %v4993, 4294901760
    %4995 = vmatpush1.msra.mxu0 %v4994
    %4996 = vmatprep.subr.mxu0 0.0
    %4997 = vmatpush2.msra.mxu0 0.0
    %4998 = vmatprep.subr.mxu0 0.0
    %4999 = vmatpush2.msra.mxu0 0.0
    %5000 = vmatprep.subr.mxu0 0.0
    %5001 = vmatpush2.msra.mxu0 0.0
    %5002 = vmatprep.subr.mxu0 0.0
    %5003 = vmatpush2.msra.mxu0 0.0
    %5004 = vmatprep.subr.mxu0 0.0
    %5005 = vmatpush2.msra.mxu0 0.0
    %5006 = vmatprep.subr.mxu0 0.0
    %5007 = vmatpush2.msra.mxu0 0.0
    %5008 = vmatprep.subr.mxu0 0.0
    %5009 = vmatpush2.msra.mxu0 0.0
    %5010 = vmatprep.subr.mxu0 0.0
    %5011 = vmatpush2.msra.mxu0 0.0
    %5012 = vmatprep.subr.mxu0 0.0
    %5013 = vmatpush2.msra.mxu0 0.0
    %5014 = vmatprep.subr.mxu0 0.0
    %5015 = vmatpush2.msra.mxu0 0.0
    %5016 = vmatprep.subr.mxu0 0.0
    %5017 = vmatpush2.msra.mxu0 0.0
    %5018 = vmatprep.subr.mxu0 0.0
    %5019 = vmatpush2.msra.mxu0 0.0
    %5020 = vmatprep.subr.mxu0 0.0
    %5021 = vmatpush2.msra.mxu0 0.0
    %5022 = vmatprep.subr.mxu0 0.0
    %5023 = vmatpush2.msra.mxu0 0.0
    %5024 = vmatprep.subr.mxu0 0.0
    %5025 = vmatpush2.msra.mxu0 0.0
    %5026 = vmatprep.subr.mxu0 0.0
    %5027 = vmatpush2.msra.mxu0 0.0
    %5028 = vmatprep.mubr.f32.mxu0 0.0
    %v5029 = vand.u32 %v4625, 4294901760
    %5030 = vmatmul.mubr.f32.gmra.mxu0 %v5029
    %v5031 = vpop.f32.mrf.mxu0
    %v5032 = vadd.f32 %v4950, %v5031
    %v5033 = vpop.f32.mrf.mxu0
    %5034 = vmatprep.mubr.f32.mxu0 0.0
    %v5035 = vand.u32 %v4628, 4294901760
    %5036 = vmatmul.mubr.f32.gmra.mxu0 %v5035
    %v5037 = vpop.f32.mrf.mxu0
    %v5038 = vadd.f32 %v4958, %v5037
    %v5039 = vpop.f32.mrf.mxu0
    %5040 = vdwg.mxu0
    %5041 = vmatprep.subr.mxu0 0.0
    %5042 = vmatpush1.msra.mxu0 0.0
    %5043 = vmatprep.subr.mxu0 0.0
    %5044 = vmatpush1.msra.mxu0 0.0
    %5045 = vmatprep.subr.mxu0 0.0
    %5046 = vmatpush1.msra.mxu0 0.0
    %5047 = vmatprep.subr.mxu0 0.0
    %5048 = vmatpush1.msra.mxu0 0.0
    %5049 = vmatprep.subr.mxu0 0.0
    %5050 = vmatpush1.msra.mxu0 0.0
    %5051 = vmatprep.subr.mxu0 0.0
    %5052 = vmatpush1.msra.mxu0 0.0
    %5053 = vmatprep.subr.mxu0 0.0
    %5054 = vmatpush1.msra.mxu0 0.0
    %5055 = vmatprep.subr.mxu0 0.0
    %5056 = vmatpush1.msra.mxu0 0.0
    %5057 = vmatprep.subr.mxu0 0.0
    %5058 = vmatpush1.msra.mxu0 0.0
    %5059 = vmatprep.subr.mxu0 0.0
    %5060 = vmatpush1.msra.mxu0 0.0
    %5061 = vmatprep.subr.mxu0 0.0
    %5062 = vmatpush1.msra.mxu0 0.0
    %5063 = vmatprep.subr.mxu0 0.0
    %5064 = vmatpush1.msra.mxu0 0.0
    %5065 = vmatprep.subr.mxu0 0.0
    %5066 = vmatpush1.msra.mxu0 0.0
    %5067 = vmatprep.subr.mxu0 0.0
    %5068 = vmatpush1.msra.mxu0 0.0
    %5069 = vmatprep.subr.mxu0 0.0
    %5070 = vmatpush1.msra.mxu0 0.0
    %5071 = vmatprep.subr.mxu0 0.0
    %v5072 = vand.u32 %v563, 4294901760
    %5073 = vmatpush1.msra.mxu0 %v5072
    %5074 = vmatprep.subr.mxu0 0.0
    %5075 = vmatpush2.msra.mxu0 0.0
    %5076 = vmatprep.subr.mxu0 0.0
    %5077 = vmatpush2.msra.mxu0 0.0
    %5078 = vmatprep.subr.mxu0 0.0
    %5079 = vmatpush2.msra.mxu0 0.0
    %5080 = vmatprep.subr.mxu0 0.0
    %5081 = vmatpush2.msra.mxu0 0.0
    %5082 = vmatprep.subr.mxu0 0.0
    %5083 = vmatpush2.msra.mxu0 0.0
    %5084 = vmatprep.subr.mxu0 0.0
    %5085 = vmatpush2.msra.mxu0 0.0
    %5086 = vmatprep.subr.mxu0 0.0
    %5087 = vmatpush2.msra.mxu0 0.0
    %5088 = vmatprep.subr.mxu0 0.0
    %5089 = vmatpush2.msra.mxu0 0.0
    %5090 = vmatprep.subr.mxu0 0.0
    %5091 = vmatpush2.msra.mxu0 0.0
    %5092 = vmatprep.subr.mxu0 0.0
    %5093 = vmatpush2.msra.mxu0 0.0
    %5094 = vmatprep.subr.mxu0 0.0
    %5095 = vmatpush2.msra.mxu0 0.0
    %5096 = vmatprep.subr.mxu0 0.0
    %5097 = vmatpush2.msra.mxu0 0.0
    %5098 = vmatprep.subr.mxu0 0.0
    %5099 = vmatpush2.msra.mxu0 0.0
    %5100 = vmatprep.subr.mxu0 0.0
    %5101 = vmatpush2.msra.mxu0 0.0
    %5102 = vmatprep.subr.mxu0 0.0
    %5103 = vmatpush2.msra.mxu0 0.0
    %5104 = vmatprep.subr.mxu0 0.0
    %5105 = vmatpush2.msra.mxu0 0.0
    %5106 = vmatprep.mubr.f32.mxu0 0.0
    %v5107 = vand.u32 %v4625, 4294901760
    %5108 = vmatmul.mubr.f32.gmra.mxu0 %v5107
    %v5109 = vpop.f32.mrf.mxu0
    %v5110 = vadd.f32 %v5032, %v5109
    %v5111 = vpop.f32.mrf.mxu0
    %5112 = vmatprep.mubr.f32.mxu0 0.0
    %v5113 = vand.u32 %v4628, 4294901760
    %5114 = vmatmul.mubr.f32.gmra.mxu0 %v5113
    %v5115 = vpop.f32.mrf.mxu0
    %v5116 = vadd.f32 %v5038, %v5115
    %v5117 = vpop.f32.mrf.mxu0
    %5118 = vdwg.mxu0
    %v5119 = vadd.f32 %v4619, %v5110
    %v5120 = vadd.f32 %v4620, %v5116
    %v5121 = vld [vmem:[%s4] sm:$0xff]
    %v5122 = vld [vmem:[%s4 + $0x8] sm:$0xff]
    %5124 = vset.pattern.permute.xlu0 0
    %5125 = vperm.xlu0 %5124, %v5121
    %v5126 = vpop.permute.xlu0 %5125
    %5129 = vset.pattern.permute.xlu0 0
    %5130 = vperm.xlu0 %5129, %v5122
    %v5131 = vpop.permute.xlu0 %5130
    %v5133 = vadd.f32 %v5119, %v5126
    %v5134 = vadd.f32 %v5120, %v5131
    %v5135 = vmax.f32 %v5133, 0.0
    %v5136 = vmax.f32 %v5134, 0.0
    %s5137 = smul.u32 %s42, 16
    %s5138 = scalar_lea.vmem %s5, %s5137
    %5139 = vst.msk [vmem:[%s5138] sm:$0xff] %vm182, %v5135
    %5140 = vst.msk [vmem:[%s5138 + $0x8] sm:$0xff] %vm182, %v5136
  $region26: #{face_loc_encoder_forward.1} parent=0 // loop_footer
    %s46 = sadd.s32 1, %s42
  $region27: #{face_loc_encoder_forward.1} parent=0 // loop_footer_branch
    %41 = sbr.rel target = $region23
  $region28: #{face_loc_encoder_forward.1} parent=0 // loop_exit
    _
  // Predicated region
  $region29: #{face_loc_encoder_forward.1} parent=0 // pred_check
    _
  $region30: #{face_loc_encoder_forward.1} parent=0 // pred_check_branch
    %5142 = sbr.rel (0) target = $region32
  $region31: #{face_loc_encoder_forward.1} parent=0 // pred_region
    _
  $region32: #{face_loc_encoder_forward.1} parent=0 // pred_fallthru
    _
  // Predicated region
  $region33: #{face_loc_encoder_forward.1} parent=0 // pred_check
    _
  $region34: #{face_loc_encoder_forward.1} parent=0 // pred_check_branch
    %5144 = sbr.rel (0) target = $region36
  $region35: #{face_loc_encoder_forward.1} parent=0 // pred_region
    _
  $region36: #{face_loc_encoder_forward.1} parent=0 // pred_fallthru
    _

</llo_original>
